<compile_context>
chip_gen: v6e
topology: v6e:2x2x1
jax: 0.10.0
libtpu: 0.0.40
codegen_flags: <defaults>
</compile_context>

<pallas_src>
import functools

import jax
import jax.numpy as jnp
from jax.experimental import pallas as pl
from jax.experimental.pallas import tpu as pltpu


DP = 128          # padded activation / output lane width
HP = 32           # padded LSTM hidden width == per-gate sub-block width
GP = 4 * HP       # packed gate lanes (i | f | g | o), 128 total

_VMEM = pl.BlockSpec(memory_space=pltpu.MemorySpace.VMEM)


# ---------------------------------------------------------------------------
# Fused whole-network kernel (single invocation, everything resident in VMEM)
# ---------------------------------------------------------------------------

def fused_net_kernel(p_ref, nbr_ref, wih_ref, whh_ref, blstm_ref,
                     wself_ref, wneigh_ref, bsage_ref, wlin_ref, blin_ref,
                     out_ref):
    """Whole Net forward in one kernel.

      p_ref      : (N, P)        f32   raw node features g.ndata['p']
      nbr_ref    : (N, K)        int32 in-neighbor ids of each node
      wih_ref    : (L, DP, GP)   bf16  LSTM input->gates, gates packed at HP offsets
      whh_ref    : (L, HP, GP)   bf16  LSTM hidden->gates
      blstm_ref  : (L, 1,  GP)   f32   combined LSTM bias (b_ih + b_hh)
      wself_ref  : (L, DP, DP)   bf16  fc_self weight
      wneigh_ref : (L, HP, DP)   bf16  fc_neigh weight
      bsage_ref  : (L, 1,  DP)   f32   SAGE bias
      wlin_ref   : (DP, DP)      bf16  final linear weight
      blin_ref   : (1, DP)       f32   final linear bias
      out_ref    : (N, DP)       f32   padded logits
    """
    n, p_dim = p_ref.shape
    k_steps = nbr_ref.shape[1]
    n_layers = wih_ref.shape[0]
    f32, bf16 = jnp.float32, jnp.bfloat16

    # ---- input features [in_deg/N | p | 0...] built entirely in-kernel -----
    # K-regular neighbor format => in_degree == K for every node (matches the
    # reference).  TODO(synk): pass real per-node in-degrees for general graphs.
    deg = float(k_steps) / float(n)
    deg_col = jnp.full((n, 1), deg, f32)
    lane_pad = jnp.zeros((n, DP - 1 - p_dim), f32)
    h = jnp.concatenate([deg_col, p_ref[...], lane_pad], axis=1)    # (N, DP)

    # ---- per-step one-hot neighbor selection matrices (shared by layers) ---
    col = jax.lax.broadcasted_iota(jnp.int32, (n, n), 1)
    nbr = nbr_ref[...]                                              # (N, K)
    sel = [(col == nbr[:, k:k + 1]).astype(f32) for k in range(k_steps)]

    for l in range(n_layers):                  # static unroll over layers
        # Per-node gate pre-activations; gathered per step below (project once,
        # gather K times -- each sel row sums to 1, so folding the bias is exact).
        hp = jnp.dot(h.astype(bf16), wih_ref[l],
                     preferred_element_type=f32) + blstm_ref[l]     # (N, GP)

        hl = jnp.zeros((n, HP), f32)
        cl = jnp.zeros((n, HP), f32)
        for k in range(k_steps):               # static unroll, carries in vregs
            z = jnp.dot(sel[k], hp, preferred_element_type=f32)     # exact gather
            if k > 0:                          # h_l == 0 at k == 0 -> skip matmul
                z = z + jnp.dot(hl.astype(bf16), whh_ref[l],
                                preferred_element_type=f32)
            i_g = jax.nn.sigmoid(z[:, 0 * HP:1 * HP])
            f_g = jax.nn.sigmoid(z[:, 1 * HP:2 * HP])
            g_g = jnp.tanh(z[:, 2 * HP:3 * HP])
            o_g = jax.nn.sigmoid(z[:, 3 * HP:4 * HP])
            cl = f_g * cl + i_g * g_g
            hl = o_g * jnp.tanh(cl)

        # SAGE combine: h_self @ W_self + h_neigh @ W_neigh + bias.
        h = (jnp.dot(h.astype(bf16), wself_ref[l], preferred_element_type=f32)
             + jnp.dot(hl.astype(bf16), wneigh_ref[l], preferred_element_type=f32)
             + bsage_ref[l])

    out_ref[...] = (jnp.dot(h.astype(bf16), wlin_ref[...],
                            preferred_element_type=f32) + blin_ref[...])


# ---------------------------------------------------------------------------
# Wrapper (single VMEM block; total footprint < 1 MiB at these sizes)
# ---------------------------------------------------------------------------

@functools.partial(jax.jit, static_argnames=("n_classes",))
def net_forward(p_feat, nbrs, params, n_classes):
    n = p_feat.shape[0]
    out_pad = pl.pallas_call(
        fused_net_kernel,
        out_shape=jax.ShapeDtypeStruct((n, DP), jnp.float32),
        in_specs=[_VMEM] * 10,
        out_specs=_VMEM,
    )(p_feat, nbrs, params["wih"], params["whh"], params["blstm"],
      params["wself"], params["wneigh"], params["bsage"],
      params["wlin"], params["blin"])
    # TODO(synk): for large N, re-tile with a node-blocked grid
    # (dimension_semantics=("parallel",) for v7x's 2 TCs, blocks sized for its
    # 64 MiB VMEM) and keep the bf16 gate-packed weight set resident per core.
    return out_pad[:, :n_classes]


# ---------------------------------------------------------------------------
# Parameter construction (natural sizes) and packing to kernel layout
# ---------------------------------------------------------------------------

def init_layer_nat(key, d_in, d_out):
    ks = jax.random.split(key, 6)
    sc = 0.1
    return dict(
        # LSTM aggregator: hidden size == d_in, fused gate order (i, f, g, o).
        w_ih=sc * jax.random.normal(ks[0], (d_in, 4 * d_in), jnp.float32),
        w_hh=sc * jax.random.normal(ks[1], (d_in, 4 * d_in), jnp.float32),
        b_lstm=sc * jax.random.normal(ks[2], (1, 4 * d_in), jnp.float32),
        # fc_self / fc_neigh (stored transposed for x @ W) + bias.
        w_self=sc * jax.random.normal(ks[3], (d_in, d_out), jnp.float32),
        w_neigh=sc * jax.random.normal(ks[4], (d_in, d_out), jnp.float32),
        bias=sc * jax.random.normal(ks[5], (1, d_out), jnp.float32),
    )


def init_net_nat(key, in_dim, hidden_dim, n_classes):
    k0, k1, k2, k3 = jax.random.split(key, 4)
    layers = [init_layer_nat(k0, in_dim, hidden_dim),
              init_layer_nat(k1, hidden_dim, hidden_dim),
              init_layer_nat(k2, hidden_dim, hidden_dim)]
    ka, kb = jax.random.split(k3)
    lin = dict(w=0.1 * jax.random.normal(ka, (hidden_dim, n_classes), jnp.float32),
               b=0.1 * jax.random.normal(kb, (1, n_classes), jnp.float32))
    return layers, lin


def pad_params(layers_nat, lin_nat):
    """Pack gates at HP=32-lane offsets, zero-pad feature dims, cast MXU
    weight operands to bf16 (biases stay f32)."""
    wih_s, whh_s, bl_s, ws_s, wn_s, bs_s = [], [], [], [], [], []
    for p in layers_nat:
        d_in = p["w_ih"].shape[0]
        d_out = p["w_self"].shape[1]
        assert d_in <= HP and d_out <= DP
        wih = jnp.zeros((DP, GP), jnp.float32)
        whh = jnp.zeros((HP, GP), jnp.float32)
        b = jnp.zeros((1, GP), jnp.float32)
        for g in range(4):   # gate g lives at lane offset g*HP in the packed layout
            wih = wih.at[:d_in, g * HP:g * HP + d_in].set(
                p["w_ih"][:, g * d_in:(g + 1) * d_in])
            whh = whh.at[:d_in, g * HP:g * HP + d_in].set(
                p["w_hh"][:, g * d_in:(g + 1) * d_in])
            b = b.at[:, g * HP:g * HP + d_in].set(
                p["b_lstm"][:, g * d_in:(g + 1) * d_in])
        wself = jnp.zeros((DP, DP), jnp.float32).at[:d_in, :d_out].set(p["w_self"])
        wneigh = jnp.zeros((HP, DP), jnp.float32).at[:d_in, :d_out].set(p["w_neigh"])
        bsage = jnp.zeros((1, DP), jnp.float32).at[:, :d_out].set(p["bias"])
        wih_s.append(wih); whh_s.append(whh); bl_s.append(b)
        ws_s.append(wself); wn_s.append(wneigh); bs_s.append(bsage)

    d_h, n_cls = lin_nat["w"].shape
    wlin = jnp.zeros((DP, DP), jnp.float32).at[:d_h, :n_cls].set(lin_nat["w"])
    blin = jnp.zeros((1, DP), jnp.float32).at[:, :n_cls].set(lin_nat["b"])
    bf = jnp.bfloat16
    return dict(
        wih=jnp.stack(wih_s).astype(bf), whh=jnp.stack(whh_s).astype(bf),
        blstm=jnp.stack(bl_s),
        wself=jnp.stack(ws_s).astype(bf), wneigh=jnp.stack(wn_s).astype(bf),
        bsage=jnp.stack(bs_s),
        wlin=wlin.astype(bf), blin=blin,
    )


# ---------------------------------------------------------------------------
# Pure-JAX f32 reference (natural sizes) for a correctness check
# ---------------------------------------------------------------------------

def reference_forward(p_feat, nbrs, layers_nat, lin_nat):
    n = p_feat.shape[0]
    k = nbrs.shape[1]
    deg = jnp.full((n, 1), float(k) / float(n), jnp.float32)
    h = jnp.concatenate([deg, p_feat], axis=1)
    for p in layers_nat:
        d_in = p["w_ih"].shape[0]
        m = jnp.transpose(h[nbrs], (1, 0, 2))          # (K, N, d_in), time-major
        hl = jnp.zeros((n, d_in), jnp.float32)
        cl = jnp.zeros((n, d_in), jnp.float32)
        for t in range(k):
            z = m[t] @ p["w_ih"] + hl @ p["w_hh"] + p["b_lstm"]
            i_g = jax.nn.sigmoid(z[:, 0:d_in])
            f_g = jax.nn.sigmoid(z[:, d_in:2 * d_in])
            g_g = jnp.tanh(z[:, 2 * d_in:3 * d_in])
            o_g = jax.nn.sigmoid(z[:, 3 * d_in:4 * d_in])
            cl = f_g * cl + i_g * g_g
            hl = o_g * jnp.tanh(cl)
        h = h @ p["w_self"] + hl @ p["w_neigh"] + p["bias"]
    return h @ lin_nat["w"] + lin_nat["b"]


# ---------------------------------------------------------------------------

if __name__ == "__main__":
    N_NODES = 16        # graph nodes
    K_NBRS = 4          # fixed in-degree (K-regular graph)
    P_DIM = 7           # g.ndata['p'] feature width
    IN_DIM = 1 + P_DIM  # degree feature + p
    HIDDEN = 32
    N_CLASSES = 4

    key = jax.random.PRNGKey(0)
    k_p, k_params = jax.random.split(key)

    # Synthetic graph node data and neighbor lists (deterministic ring-like graph).
    p_feat = jax.random.normal(k_p, (N_NODES, P_DIM), jnp.float32)
    nbrs = jnp.stack(
        [(jnp.arange(N_NODES) + j + 1) % N_NODES for j in range(K_NBRS)], axis=1
    ).astype(jnp.int32)                                        # (N, K)

    layers_nat, lin_nat = init_net_nat(k_params, IN_DIM, HIDDEN, N_CLASSES)
    params = pad_params(layers_nat, lin_nat)

    out = net_forward(p_feat, nbrs, params, n_classes=N_CLASSES)
    out = jax.block_until_ready(out)

    assert out.shape == (N_NODES, N_CLASSES)
    assert bool(jnp.all(jnp.isfinite(out)))

    ref = reference_forward(p_feat, nbrs, layers_nat, lin_nat)
    max_err = float(jnp.max(jnp.abs(out - ref)))
    assert max_err < 5e-2, f"kernel/reference mismatch: max abs err = {max_err}"

    print("KERNEL_OK")
</pallas_src>

<mosaic_0001>
module attributes {stable_mosaic.version = 11 : i64} {
  func.func @fused_net_kernel(%arg0: memref<16x7xf32, #tpu.memory_space<vmem>>, %arg1: memref<16x4xi32, #tpu.memory_space<vmem>>, %arg2: memref<3x128x128xbf16, #tpu.memory_space<vmem>>, %arg3: memref<3x32x128xbf16, #tpu.memory_space<vmem>>, %arg4: memref<3x1x128xf32, #tpu.memory_space<vmem>>, %arg5: memref<3x128x128xbf16, #tpu.memory_space<vmem>>, %arg6: memref<3x32x128xbf16, #tpu.memory_space<vmem>>, %arg7: memref<3x1x128xf32, #tpu.memory_space<vmem>>, %arg8: memref<128x128xbf16, #tpu.memory_space<vmem>>, %arg9: memref<1x128xf32, #tpu.memory_space<vmem>>, %arg10: memref<16x128xf32, #tpu.memory_space<vmem>>) attributes {dimension_semantics = [], scalar_prefetch = 0 : i64, scratch_operands = 0 : i64, tpu.core_type = #tpu.core_type<tc>} {
    %cst = arith.constant 2.500000e-01 : f32
    %0 = vector.broadcast %cst : f32 to vector<16x1xf32>
    %cst_0 = arith.constant 0.000000e+00 : f32
    %1 = vector.broadcast %cst_0 : f32 to vector<16x120xf32>
    %c0 = arith.constant 0 : index
    %c0_1 = arith.constant 0 : index
    %2 = vector.load %arg0[%c0, %c0_1] : memref<16x7xf32, #tpu.memory_space<vmem>>, vector<16x7xf32>
    %3 = tpu.concatenate %0, %2, %1 in 1 : vector<16x1xf32>, vector<16x7xf32>, vector<16x120xf32> -> vector<16x128xf32>
    %4 = tpu.iota {dimensions = array<i32: 1>} : vector<16x16xi32>
    %c0_2 = arith.constant 0 : index
    %c0_3 = arith.constant 0 : index
    %5 = vector.load %arg1[%c0_2, %c0_3] : memref<16x4xi32, #tpu.memory_space<vmem>>, vector<16x4xi32>
    %6 = vector.extract_strided_slice %5 {offsets = [0, 0], sizes = [16, 1], strides = [1, 1]} : vector<16x4xi32> to vector<16x1xi32>
    %7 = vector.broadcast %6 : vector<16x1xi32> to vector<16x16xi32>
    %8 = arith.cmpi eq, %4, %7 : vector<16x16xi32>
    %9 = arith.extui %8 : vector<16x16xi1> to vector<16x16xi32>
    %10 = arith.sitofp %9 : vector<16x16xi32> to vector<16x16xf32>
    %11 = vector.extract_strided_slice %5 {offsets = [0, 1], sizes = [16, 1], strides = [1, 1]} : vector<16x4xi32> to vector<16x1xi32>
    %12 = vector.broadcast %11 : vector<16x1xi32> to vector<16x16xi32>
    %13 = arith.cmpi eq, %4, %12 : vector<16x16xi32>
    %14 = arith.extui %13 : vector<16x16xi1> to vector<16x16xi32>
    %15 = arith.sitofp %14 : vector<16x16xi32> to vector<16x16xf32>
    %16 = vector.extract_strided_slice %5 {offsets = [0, 2], sizes = [16, 1], strides = [1, 1]} : vector<16x4xi32> to vector<16x1xi32>
    %17 = vector.broadcast %16 : vector<16x1xi32> to vector<16x16xi32>
    %18 = arith.cmpi eq, %4, %17 : vector<16x16xi32>
    %19 = arith.extui %18 : vector<16x16xi1> to vector<16x16xi32>
    %20 = arith.sitofp %19 : vector<16x16xi32> to vector<16x16xf32>
    %21 = vector.extract_strided_slice %5 {offsets = [0, 3], sizes = [16, 1], strides = [1, 1]} : vector<16x4xi32> to vector<16x1xi32>
    %22 = vector.broadcast %21 : vector<16x1xi32> to vector<16x16xi32>
    %23 = arith.cmpi eq, %4, %22 : vector<16x16xi32>
    %24 = arith.extui %23 : vector<16x16xi1> to vector<16x16xi32>
    %25 = arith.sitofp %24 : vector<16x16xi32> to vector<16x16xf32>
    %26 = arith.truncf %3 : vector<16x128xf32> to vector<16x128xbf16>
    %c0_4 = arith.constant 0 : index
    %c0_5 = arith.constant 0 : index
    %c0_6 = arith.constant 0 : index
    %27 = vector.load %arg2[%c0_4, %c0_5, %c0_6] : memref<3x128x128xbf16, #tpu.memory_space<vmem>>, vector<1x128x128xbf16>
    %28 = vector.shape_cast %27 : vector<1x128x128xbf16> to vector<128x128xbf16>
    %cst_7 = arith.constant dense<0.000000e+00> : vector<16x128xf32>
    %29 = tpu.matmul %26, %28, %cst_7 {dimension_numbers = #tpu.dot_dimension_numbers<[1], [0], [0], [1], [0, 0, 1, 1], [], []>} : vector<16x128xbf16>, vector<128x128xbf16>, vector<16x128xf32> -> vector<16x128xf32>
    %c0_8 = arith.constant 0 : index
    %c0_9 = arith.constant 0 : index
    %c0_10 = arith.constant 0 : index
    %30 = vector.load %arg4[%c0_8, %c0_9, %c0_10] : memref<3x1x128xf32, #tpu.memory_space<vmem>>, vector<1x1x128xf32>
    %31 = vector.shape_cast %30 : vector<1x1x128xf32> to vector<1x128xf32>
    %32 = vector.broadcast %31 : vector<1x128xf32> to vector<16x128xf32>
    %33 = arith.addf %29, %32 : vector<16x128xf32>
    %cst_11 = arith.constant 0.000000e+00 : f32
    %34 = vector.broadcast %cst_11 : f32 to vector<16x32xf32>
    %cst_12 = arith.constant dense<0.000000e+00> : vector<16x128xf32>
    %35 = tpu.matmul %10, %33, %cst_12 {dimension_numbers = #tpu.dot_dimension_numbers<[1], [0], [0], [1], [0, 0, 1, 1], [], []>} : vector<16x16xf32>, vector<16x128xf32>, vector<16x128xf32> -> vector<16x128xf32>
    %36 = vector.extract_strided_slice %35 {offsets = [0, 0], sizes = [16, 32], strides = [1, 1]} : vector<16x128xf32> to vector<16x32xf32>
    %37 = arith.negf %36 : vector<16x32xf32>
    %38 = math.exp %37 : vector<16x32xf32>
    %cst_13 = arith.constant 1.000000e+00 : f32
    %39 = vector.broadcast %cst_13 : f32 to vector<16x32xf32>
    %40 = arith.addf %39, %38 : vector<16x32xf32>
    %41 = arith.divf %39, %40 : vector<16x32xf32>
    %42 = vector.extract_strided_slice %35 {offsets = [0, 32], sizes = [16, 32], strides = [1, 1]} : vector<16x128xf32> to vector<16x32xf32>
    %43 = arith.negf %42 : vector<16x32xf32>
    %44 = math.exp %43 : vector<16x32xf32>
    %cst_14 = arith.constant 1.000000e+00 : f32
    %45 = vector.broadcast %cst_14 : f32 to vector<16x32xf32>
    %46 = arith.addf %45, %44 : vector<16x32xf32>
    %47 = arith.divf %45, %46 : vector<16x32xf32>
    %48 = vector.extract_strided_slice %35 {offsets = [0, 64], sizes = [16, 32], strides = [1, 1]} : vector<16x128xf32> to vector<16x32xf32>
    %49 = math.tanh %48 : vector<16x32xf32>
    %50 = vector.extract_strided_slice %35 {offsets = [0, 96], sizes = [16, 32], strides = [1, 1]} : vector<16x128xf32> to vector<16x32xf32>
    %51 = arith.negf %50 : vector<16x32xf32>
    %52 = math.exp %51 : vector<16x32xf32>
    %cst_15 = arith.constant 1.000000e+00 : f32
    %53 = vector.broadcast %cst_15 : f32 to vector<16x32xf32>
    %54 = arith.addf %53, %52 : vector<16x32xf32>
    %55 = arith.divf %53, %54 : vector<16x32xf32>
    %56 = arith.mulf %47, %34 : vector<16x32xf32>
    %57 = arith.mulf %41, %49 : vector<16x32xf32>
    %58 = arith.addf %56, %57 : vector<16x32xf32>
    %59 = math.tanh %58 : vector<16x32xf32>
    %60 = arith.mulf %55, %59 : vector<16x32xf32>
    %cst_16 = arith.constant dense<0.000000e+00> : vector<16x128xf32>
    %61 = tpu.matmul %15, %33, %cst_16 {dimension_numbers = #tpu.dot_dimension_numbers<[1], [0], [0], [1], [0, 0, 1, 1], [], []>} : vector<16x16xf32>, vector<16x128xf32>, vector<16x128xf32> -> vector<16x128xf32>
    %62 = arith.truncf %60 : vector<16x32xf32> to vector<16x32xbf16>
    %c0_17 = arith.constant 0 : index
    %c0_18 = arith.constant 0 : index
    %c0_19 = arith.constant 0 : index
    %63 = vector.load %arg3[%c0_17, %c0_18, %c0_19] : memref<3x32x128xbf16, #tpu.memory_space<vmem>>, vector<1x32x128xbf16>
    %64 = vector.shape_cast %63 : vector<1x32x128xbf16> to vector<32x128xbf16>
    %cst_20 = arith.constant dense<0.000000e+00> : vector<16x128xf32>
    %65 = tpu.matmul %62, %64, %cst_20 {dimension_numbers = #tpu.dot_dimension_numbers<[1], [0], [0], [1], [0, 0, 1, 1], [], []>} : vector<16x32xbf16>, vector<32x128xbf16>, vector<16x128xf32> -> vector<16x128xf32>
    %66 = arith.addf %61, %65 : vector<16x128xf32>
    %67 = vector.extract_strided_slice %66 {offsets = [0, 0], sizes = [16, 32], strides = [1, 1]} : vector<16x128xf32> to vector<16x32xf32>
    %68 = arith.negf %67 : vector<16x32xf32>
    %69 = math.exp %68 : vector<16x32xf32>
    %cst_21 = arith.constant 1.000000e+00 : f32
    %70 = vector.broadcast %cst_21 : f32 to vector<16x32xf32>
    %71 = arith.addf %70, %69 : vector<16x32xf32>
    %72 = arith.divf %70, %71 : vector<16x32xf32>
    %73 = vector.extract_strided_slice %66 {offsets = [0, 32], sizes = [16, 32], strides = [1, 1]} : vector<16x128xf32> to vector<16x32xf32>
    %74 = arith.negf %73 : vector<16x32xf32>
    %75 = math.exp %74 : vector<16x32xf32>
    %cst_22 = arith.constant 1.000000e+00 : f32
    %76 = vector.broadcast %cst_22 : f32 to vector<16x32xf32>
    %77 = arith.addf %76, %75 : vector<16x32xf32>
    %78 = arith.divf %76, %77 : vector<16x32xf32>
    %79 = vector.extract_strided_slice %66 {offsets = [0, 64], sizes = [16, 32], strides = [1, 1]} : vector<16x128xf32> to vector<16x32xf32>
    %80 = math.tanh %79 : vector<16x32xf32>
    %81 = vector.extract_strided_slice %66 {offsets = [0, 96], sizes = [16, 32], strides = [1, 1]} : vector<16x128xf32> to vector<16x32xf32>
    %82 = arith.negf %81 : vector<16x32xf32>
    %83 = math.exp %82 : vector<16x32xf32>
    %cst_23 = arith.constant 1.000000e+00 : f32
    %84 = vector.broadcast %cst_23 : f32 to vector<16x32xf32>
    %85 = arith.addf %84, %83 : vector<16x32xf32>
    %86 = arith.divf %84, %85 : vector<16x32xf32>
    %87 = arith.mulf %78, %58 : vector<16x32xf32>
    %88 = arith.mulf %72, %80 : vector<16x32xf32>
    %89 = arith.addf %87, %88 : vector<16x32xf32>
    %90 = math.tanh %89 : vector<16x32xf32>
    %91 = arith.mulf %86, %90 : vector<16x32xf32>
    %cst_24 = arith.constant dense<0.000000e+00> : vector<16x128xf32>
    %92 = tpu.matmul %20, %33, %cst_24 {dimension_numbers = #tpu.dot_dimension_numbers<[1], [0], [0], [1], [0, 0, 1, 1], [], []>} : vector<16x16xf32>, vector<16x128xf32>, vector<16x128xf32> -> vector<16x128xf32>
    %93 = arith.truncf %91 : vector<16x32xf32> to vector<16x32xbf16>
    %c0_25 = arith.constant 0 : index
    %c0_26 = arith.constant 0 : index
    %c0_27 = arith.constant 0 : index
    %94 = vector.load %arg3[%c0_25, %c0_26, %c0_27] : memref<3x32x128xbf16, #tpu.memory_space<vmem>>, vector<1x32x128xbf16>
    %95 = vector.shape_cast %94 : vector<1x32x128xbf16> to vector<32x128xbf16>
    %cst_28 = arith.constant dense<0.000000e+00> : vector<16x128xf32>
    %96 = tpu.matmul %93, %95, %cst_28 {dimension_numbers = #tpu.dot_dimension_numbers<[1], [0], [0], [1], [0, 0, 1, 1], [], []>} : vector<16x32xbf16>, vector<32x128xbf16>, vector<16x128xf32> -> vector<16x128xf32>
    %97 = arith.addf %92, %96 : vector<16x128xf32>
    %98 = vector.extract_strided_slice %97 {offsets = [0, 0], sizes = [16, 32], strides = [1, 1]} : vector<16x128xf32> to vector<16x32xf32>
    %99 = arith.negf %98 : vector<16x32xf32>
    %100 = math.exp %99 : vector<16x32xf32>
    %cst_29 = arith.constant 1.000000e+00 : f32
    %101 = vector.broadcast %cst_29 : f32 to vector<16x32xf32>
    %102 = arith.addf %101, %100 : vector<16x32xf32>
    %103 = arith.divf %101, %102 : vector<16x32xf32>
    %104 = vector.extract_strided_slice %97 {offsets = [0, 32], sizes = [16, 32], strides = [1, 1]} : vector<16x128xf32> to vector<16x32xf32>
    %105 = arith.negf %104 : vector<16x32xf32>
    %106 = math.exp %105 : vector<16x32xf32>
    %cst_30 = arith.constant 1.000000e+00 : f32
    %107 = vector.broadcast %cst_30 : f32 to vector<16x32xf32>
    %108 = arith.addf %107, %106 : vector<16x32xf32>
    %109 = arith.divf %107, %108 : vector<16x32xf32>
    %110 = vector.extract_strided_slice %97 {offsets = [0, 64], sizes = [16, 32], strides = [1, 1]} : vector<16x128xf32> to vector<16x32xf32>
    %111 = math.tanh %110 : vector<16x32xf32>
    %112 = vector.extract_strided_slice %97 {offsets = [0, 96], sizes = [16, 32], strides = [1, 1]} : vector<16x128xf32> to vector<16x32xf32>
    %113 = arith.negf %112 : vector<16x32xf32>
    %114 = math.exp %113 : vector<16x32xf32>
    %cst_31 = arith.constant 1.000000e+00 : f32
    %115 = vector.broadcast %cst_31 : f32 to vector<16x32xf32>
    %116 = arith.addf %115, %114 : vector<16x32xf32>
    %117 = arith.divf %115, %116 : vector<16x32xf32>
    %118 = arith.mulf %109, %89 : vector<16x32xf32>
    %119 = arith.mulf %103, %111 : vector<16x32xf32>
    %120 = arith.addf %118, %119 : vector<16x32xf32>
    %121 = math.tanh %120 : vector<16x32xf32>
    %122 = arith.mulf %117, %121 : vector<16x32xf32>
    %cst_32 = arith.constant dense<0.000000e+00> : vector<16x128xf32>
    %123 = tpu.matmul %25, %33, %cst_32 {dimension_numbers = #tpu.dot_dimension_numbers<[1], [0], [0], [1], [0, 0, 1, 1], [], []>} : vector<16x16xf32>, vector<16x128xf32>, vector<16x128xf32> -> vector<16x128xf32>
    %124 = arith.truncf %122 : vector<16x32xf32> to vector<16x32xbf16>
    %c0_33 = arith.constant 0 : index
    %c0_34 = arith.constant 0 : index
    %c0_35 = arith.constant 0 : index
    %125 = vector.load %arg3[%c0_33, %c0_34, %c0_35] : memref<3x32x128xbf16, #tpu.memory_space<vmem>>, vector<1x32x128xbf16>
    %126 = vector.shape_cast %125 : vector<1x32x128xbf16> to vector<32x128xbf16>
    %cst_36 = arith.constant dense<0.000000e+00> : vector<16x128xf32>
    %127 = tpu.matmul %124, %126, %cst_36 {dimension_numbers = #tpu.dot_dimension_numbers<[1], [0], [0], [1], [0, 0, 1, 1], [], []>} : vector<16x32xbf16>, vector<32x128xbf16>, vector<16x128xf32> -> vector<16x128xf32>
    %128 = arith.addf %123, %127 : vector<16x128xf32>
    %129 = vector.extract_strided_slice %128 {offsets = [0, 0], sizes = [16, 32], strides = [1, 1]} : vector<16x128xf32> to vector<16x32xf32>
    %130 = arith.negf %129 : vector<16x32xf32>
    %131 = math.exp %130 : vector<16x32xf32>
    %cst_37 = arith.constant 1.000000e+00 : f32
    %132 = vector.broadcast %cst_37 : f32 to vector<16x32xf32>
    %133 = arith.addf %132, %131 : vector<16x32xf32>
    %134 = arith.divf %132, %133 : vector<16x32xf32>
    %135 = vector.extract_strided_slice %128 {offsets = [0, 32], sizes = [16, 32], strides = [1, 1]} : vector<16x128xf32> to vector<16x32xf32>
    %136 = arith.negf %135 : vector<16x32xf32>
    %137 = math.exp %136 : vector<16x32xf32>
    %cst_38 = arith.constant 1.000000e+00 : f32
    %138 = vector.broadcast %cst_38 : f32 to vector<16x32xf32>
    %139 = arith.addf %138, %137 : vector<16x32xf32>
    %140 = arith.divf %138, %139 : vector<16x32xf32>
    %141 = vector.extract_strided_slice %128 {offsets = [0, 64], sizes = [16, 32], strides = [1, 1]} : vector<16x128xf32> to vector<16x32xf32>
    %142 = math.tanh %141 : vector<16x32xf32>
    %143 = vector.extract_strided_slice %128 {offsets = [0, 96], sizes = [16, 32], strides = [1, 1]} : vector<16x128xf32> to vector<16x32xf32>
    %144 = arith.negf %143 : vector<16x32xf32>
    %145 = math.exp %144 : vector<16x32xf32>
    %cst_39 = arith.constant 1.000000e+00 : f32
    %146 = vector.broadcast %cst_39 : f32 to vector<16x32xf32>
    %147 = arith.addf %146, %145 : vector<16x32xf32>
    %148 = arith.divf %146, %147 : vector<16x32xf32>
    %149 = arith.mulf %140, %120 : vector<16x32xf32>
    %150 = arith.mulf %134, %142 : vector<16x32xf32>
    %151 = arith.addf %149, %150 : vector<16x32xf32>
    %152 = math.tanh %151 : vector<16x32xf32>
    %153 = arith.mulf %148, %152 : vector<16x32xf32>
    %154 = arith.truncf %3 : vector<16x128xf32> to vector<16x128xbf16>
    %c0_40 = arith.constant 0 : index
    %c0_41 = arith.constant 0 : index
    %c0_42 = arith.constant 0 : index
    %155 = vector.load %arg5[%c0_40, %c0_41, %c0_42] : memref<3x128x128xbf16, #tpu.memory_space<vmem>>, vector<1x128x128xbf16>
    %156 = vector.shape_cast %155 : vector<1x128x128xbf16> to vector<128x128xbf16>
    %cst_43 = arith.constant dense<0.000000e+00> : vector<16x128xf32>
    %157 = tpu.matmul %154, %156, %cst_43 {dimension_numbers = #tpu.dot_dimension_numbers<[1], [0], [0], [1], [0, 0, 1, 1], [], []>} : vector<16x128xbf16>, vector<128x128xbf16>, vector<16x128xf32> -> vector<16x128xf32>
    %158 = arith.truncf %153 : vector<16x32xf32> to vector<16x32xbf16>
    %c0_44 = arith.constant 0 : index
    %c0_45 = arith.constant 0 : index
    %c0_46 = arith.constant 0 : index
    %159 = vector.load %arg6[%c0_44, %c0_45, %c0_46] : memref<3x32x128xbf16, #tpu.memory_space<vmem>>, vector<1x32x128xbf16>
    %160 = vector.shape_cast %159 : vector<1x32x128xbf16> to vector<32x128xbf16>
    %cst_47 = arith.constant dense<0.000000e+00> : vector<16x128xf32>
    %161 = tpu.matmul %158, %160, %cst_47 {dimension_numbers = #tpu.dot_dimension_numbers<[1], [0], [0], [1], [0, 0, 1, 1], [], []>} : vector<16x32xbf16>, vector<32x128xbf16>, vector<16x128xf32> -> vector<16x128xf32>
    %162 = arith.addf %157, %161 : vector<16x128xf32>
    %c0_48 = arith.constant 0 : index
    %c0_49 = arith.constant 0 : index
    %c0_50 = arith.constant 0 : index
    %163 = vector.load %arg7[%c0_48, %c0_49, %c0_50] : memref<3x1x128xf32, #tpu.memory_space<vmem>>, vector<1x1x128xf32>
    %164 = vector.shape_cast %163 : vector<1x1x128xf32> to vector<1x128xf32>
    %165 = vector.broadcast %164 : vector<1x128xf32> to vector<16x128xf32>
    %166 = arith.addf %162, %165 : vector<16x128xf32>
    %167 = arith.truncf %166 : vector<16x128xf32> to vector<16x128xbf16>
    %c1 = arith.constant 1 : index
    %c0_51 = arith.constant 0 : index
    %c0_52 = arith.constant 0 : index
    %168 = vector.load %arg2[%c1, %c0_51, %c0_52] : memref<3x128x128xbf16, #tpu.memory_space<vmem>>, vector<1x128x128xbf16>
    %169 = vector.shape_cast %168 : vector<1x128x128xbf16> to vector<128x128xbf16>
    %cst_53 = arith.constant dense<0.000000e+00> : vector<16x128xf32>
    %170 = tpu.matmul %167, %169, %cst_53 {dimension_numbers = #tpu.dot_dimension_numbers<[1], [0], [0], [1], [0, 0, 1, 1], [], []>} : vector<16x128xbf16>, vector<128x128xbf16>, vector<16x128xf32> -> vector<16x128xf32>
    %c1_54 = arith.constant 1 : index
    %c0_55 = arith.constant 0 : index
    %c0_56 = arith.constant 0 : index
    %171 = vector.load %arg4[%c1_54, %c0_55, %c0_56] : memref<3x1x128xf32, #tpu.memory_space<vmem>>, vector<1x1x128xf32>
    %172 = vector.shape_cast %171 : vector<1x1x128xf32> to vector<1x128xf32>
    %173 = vector.broadcast %172 : vector<1x128xf32> to vector<16x128xf32>
    %174 = arith.addf %170, %173 : vector<16x128xf32>
    %cst_57 = arith.constant 0.000000e+00 : f32
    %175 = vector.broadcast %cst_57 : f32 to vector<16x32xf32>
    %cst_58 = arith.constant dense<0.000000e+00> : vector<16x128xf32>
    %176 = tpu.matmul %10, %174, %cst_58 {dimension_numbers = #tpu.dot_dimension_numbers<[1], [0], [0], [1], [0, 0, 1, 1], [], []>} : vector<16x16xf32>, vector<16x128xf32>, vector<16x128xf32> -> vector<16x128xf32>
    %177 = vector.extract_strided_slice %176 {offsets = [0, 0], sizes = [16, 32], strides = [1, 1]} : vector<16x128xf32> to vector<16x32xf32>
    %178 = arith.negf %177 : vector<16x32xf32>
    %179 = math.exp %178 : vector<16x32xf32>
    %cst_59 = arith.constant 1.000000e+00 : f32
    %180 = vector.broadcast %cst_59 : f32 to vector<16x32xf32>
    %181 = arith.addf %180, %179 : vector<16x32xf32>
    %182 = arith.divf %180, %181 : vector<16x32xf32>
    %183 = vector.extract_strided_slice %176 {offsets = [0, 32], sizes = [16, 32], strides = [1, 1]} : vector<16x128xf32> to vector<16x32xf32>
    %184 = arith.negf %183 : vector<16x32xf32>
    %185 = math.exp %184 : vector<16x32xf32>
    %cst_60 = arith.constant 1.000000e+00 : f32
    %186 = vector.broadcast %cst_60 : f32 to vector<16x32xf32>
    %187 = arith.addf %186, %185 : vector<16x32xf32>
    %188 = arith.divf %186, %187 : vector<16x32xf32>
    %189 = vector.extract_strided_slice %176 {offsets = [0, 64], sizes = [16, 32], strides = [1, 1]} : vector<16x128xf32> to vector<16x32xf32>
    %190 = math.tanh %189 : vector<16x32xf32>
    %191 = vector.extract_strided_slice %176 {offsets = [0, 96], sizes = [16, 32], strides = [1, 1]} : vector<16x128xf32> to vector<16x32xf32>
    %192 = arith.negf %191 : vector<16x32xf32>
    %193 = math.exp %192 : vector<16x32xf32>
    %cst_61 = arith.constant 1.000000e+00 : f32
    %194 = vector.broadcast %cst_61 : f32 to vector<16x32xf32>
    %195 = arith.addf %194, %193 : vector<16x32xf32>
    %196 = arith.divf %194, %195 : vector<16x32xf32>
    %197 = arith.mulf %188, %175 : vector<16x32xf32>
    %198 = arith.mulf %182, %190 : vector<16x32xf32>
    %199 = arith.addf %197, %198 : vector<16x32xf32>
    %200 = math.tanh %199 : vector<16x32xf32>
    %201 = arith.mulf %196, %200 : vector<16x32xf32>
    %cst_62 = arith.constant dense<0.000000e+00> : vector<16x128xf32>
    %202 = tpu.matmul %15, %174, %cst_62 {dimension_numbers = #tpu.dot_dimension_numbers<[1], [0], [0], [1], [0, 0, 1, 1], [], []>} : vector<16x16xf32>, vector<16x128xf32>, vector<16x128xf32> -> vector<16x128xf32>
    %203 = arith.truncf %201 : vector<16x32xf32> to vector<16x32xbf16>
    %c1_63 = arith.constant 1 : index
    %c0_64 = arith.constant 0 : index
    %c0_65 = arith.constant 0 : index
    %204 = vector.load %arg3[%c1_63, %c0_64, %c0_65] : memref<3x32x128xbf16, #tpu.memory_space<vmem>>, vector<1x32x128xbf16>
    %205 = vector.shape_cast %204 : vector<1x32x128xbf16> to vector<32x128xbf16>
    %cst_66 = arith.constant dense<0.000000e+00> : vector<16x128xf32>
    %206 = tpu.matmul %203, %205, %cst_66 {dimension_numbers = #tpu.dot_dimension_numbers<[1], [0], [0], [1], [0, 0, 1, 1], [], []>} : vector<16x32xbf16>, vector<32x128xbf16>, vector<16x128xf32> -> vector<16x128xf32>
    %207 = arith.addf %202, %206 : vector<16x128xf32>
    %208 = vector.extract_strided_slice %207 {offsets = [0, 0], sizes = [16, 32], strides = [1, 1]} : vector<16x128xf32> to vector<16x32xf32>
    %209 = arith.negf %208 : vector<16x32xf32>
    %210 = math.exp %209 : vector<16x32xf32>
    %cst_67 = arith.constant 1.000000e+00 : f32
    %211 = vector.broadcast %cst_67 : f32 to vector<16x32xf32>
    %212 = arith.addf %211, %210 : vector<16x32xf32>
    %213 = arith.divf %211, %212 : vector<16x32xf32>
    %214 = vector.extract_strided_slice %207 {offsets = [0, 32], sizes = [16, 32], strides = [1, 1]} : vector<16x128xf32> to vector<16x32xf32>
    %215 = arith.negf %214 : vector<16x32xf32>
    %216 = math.exp %215 : vector<16x32xf32>
    %cst_68 = arith.constant 1.000000e+00 : f32
    %217 = vector.broadcast %cst_68 : f32 to vector<16x32xf32>
    %218 = arith.addf %217, %216 : vector<16x32xf32>
    %219 = arith.divf %217, %218 : vector<16x32xf32>
    %220 = vector.extract_strided_slice %207 {offsets = [0, 64], sizes = [16, 32], strides = [1, 1]} : vector<16x128xf32> to vector<16x32xf32>
    %221 = math.tanh %220 : vector<16x32xf32>
    %222 = vector.extract_strided_slice %207 {offsets = [0, 96], sizes = [16, 32], strides = [1, 1]} : vector<16x128xf32> to vector<16x32xf32>
    %223 = arith.negf %222 : vector<16x32xf32>
    %224 = math.exp %223 : vector<16x32xf32>
    %cst_69 = arith.constant 1.000000e+00 : f32
    %225 = vector.broadcast %cst_69 : f32 to vector<16x32xf32>
    %226 = arith.addf %225, %224 : vector<16x32xf32>
    %227 = arith.divf %225, %226 : vector<16x32xf32>
    %228 = arith.mulf %219, %199 : vector<16x32xf32>
    %229 = arith.mulf %213, %221 : vector<16x32xf32>
    %230 = arith.addf %228, %229 : vector<16x32xf32>
    %231 = math.tanh %230 : vector<16x32xf32>
    %232 = arith.mulf %227, %231 : vector<16x32xf32>
    %cst_70 = arith.constant dense<0.000000e+00> : vector<16x128xf32>
    %233 = tpu.matmul %20, %174, %cst_70 {dimension_numbers = #tpu.dot_dimension_numbers<[1], [0], [0], [1], [0, 0, 1, 1], [], []>} : vector<16x16xf32>, vector<16x128xf32>, vector<16x128xf32> -> vector<16x128xf32>
    %234 = arith.truncf %232 : vector<16x32xf32> to vector<16x32xbf16>
    %c1_71 = arith.constant 1 : index
    %c0_72 = arith.constant 0 : index
    %c0_73 = arith.constant 0 : index
    %235 = vector.load %arg3[%c1_71, %c0_72, %c0_73] : memref<3x32x128xbf16, #tpu.memory_space<vmem>>, vector<1x32x128xbf16>
    %236 = vector.shape_cast %235 : vector<1x32x128xbf16> to vector<32x128xbf16>
    %cst_74 = arith.constant dense<0.000000e+00> : vector<16x128xf32>
    %237 = tpu.matmul %234, %236, %cst_74 {dimension_numbers = #tpu.dot_dimension_numbers<[1], [0], [0], [1], [0, 0, 1, 1], [], []>} : vector<16x32xbf16>, vector<32x128xbf16>, vector<16x128xf32> -> vector<16x128xf32>
    %238 = arith.addf %233, %237 : vector<16x128xf32>
    %239 = vector.extract_strided_slice %238 {offsets = [0, 0], sizes = [16, 32], strides = [1, 1]} : vector<16x128xf32> to vector<16x32xf32>
    %240 = arith.negf %239 : vector<16x32xf32>
    %241 = math.exp %240 : vector<16x32xf32>
    %cst_75 = arith.constant 1.000000e+00 : f32
    %242 = vector.broadcast %cst_75 : f32 to vector<16x32xf32>
    %243 = arith.addf %242, %241 : vector<16x32xf32>
    %244 = arith.divf %242, %243 : vector<16x32xf32>
    %245 = vector.extract_strided_slice %238 {offsets = [0, 32], sizes = [16, 32], strides = [1, 1]} : vector<16x128xf32> to vector<16x32xf32>
    %246 = arith.negf %245 : vector<16x32xf32>
    %247 = math.exp %246 : vector<16x32xf32>
    %cst_76 = arith.constant 1.000000e+00 : f32
    %248 = vector.broadcast %cst_76 : f32 to vector<16x32xf32>
    %249 = arith.addf %248, %247 : vector<16x32xf32>
    %250 = arith.divf %248, %249 : vector<16x32xf32>
    %251 = vector.extract_strided_slice %238 {offsets = [0, 64], sizes = [16, 32], strides = [1, 1]} : vector<16x128xf32> to vector<16x32xf32>
    %252 = math.tanh %251 : vector<16x32xf32>
    %253 = vector.extract_strided_slice %238 {offsets = [0, 96], sizes = [16, 32], strides = [1, 1]} : vector<16x128xf32> to vector<16x32xf32>
    %254 = arith.negf %253 : vector<16x32xf32>
    %255 = math.exp %254 : vector<16x32xf32>
    %cst_77 = arith.constant 1.000000e+00 : f32
    %256 = vector.broadcast %cst_77 : f32 to vector<16x32xf32>
    %257 = arith.addf %256, %255 : vector<16x32xf32>
    %258 = arith.divf %256, %257 : vector<16x32xf32>
    %259 = arith.mulf %250, %230 : vector<16x32xf32>
    %260 = arith.mulf %244, %252 : vector<16x32xf32>
    %261 = arith.addf %259, %260 : vector<16x32xf32>
    %262 = math.tanh %261 : vector<16x32xf32>
    %263 = arith.mulf %258, %262 : vector<16x32xf32>
    %cst_78 = arith.constant dense<0.000000e+00> : vector<16x128xf32>
    %264 = tpu.matmul %25, %174, %cst_78 {dimension_numbers = #tpu.dot_dimension_numbers<[1], [0], [0], [1], [0, 0, 1, 1], [], []>} : vector<16x16xf32>, vector<16x128xf32>, vector<16x128xf32> -> vector<16x128xf32>
    %265 = arith.truncf %263 : vector<16x32xf32> to vector<16x32xbf16>
    %c1_79 = arith.constant 1 : index
    %c0_80 = arith.constant 0 : index
    %c0_81 = arith.constant 0 : index
    %266 = vector.load %arg3[%c1_79, %c0_80, %c0_81] : memref<3x32x128xbf16, #tpu.memory_space<vmem>>, vector<1x32x128xbf16>
    %267 = vector.shape_cast %266 : vector<1x32x128xbf16> to vector<32x128xbf16>
    %cst_82 = arith.constant dense<0.000000e+00> : vector<16x128xf32>
    %268 = tpu.matmul %265, %267, %cst_82 {dimension_numbers = #tpu.dot_dimension_numbers<[1], [0], [0], [1], [0, 0, 1, 1], [], []>} : vector<16x32xbf16>, vector<32x128xbf16>, vector<16x128xf32> -> vector<16x128xf32>
    %269 = arith.addf %264, %268 : vector<16x128xf32>
    %270 = vector.extract_strided_slice %269 {offsets = [0, 0], sizes = [16, 32], strides = [1, 1]} : vector<16x128xf32> to vector<16x32xf32>
    %271 = arith.negf %270 : vector<16x32xf32>
    %272 = math.exp %271 : vector<16x32xf32>
    %cst_83 = arith.constant 1.000000e+00 : f32
    %273 = vector.broadcast %cst_83 : f32 to vector<16x32xf32>
    %274 = arith.addf %273, %272 : vector<16x32xf32>
    %275 = arith.divf %273, %274 : vector<16x32xf32>
    %276 = vector.extract_strided_slice %269 {offsets = [0, 32], sizes = [16, 32], strides = [1, 1]} : vector<16x128xf32> to vector<16x32xf32>
    %277 = arith.negf %276 : vector<16x32xf32>
    %278 = math.exp %277 : vector<16x32xf32>
    %cst_84 = arith.constant 1.000000e+00 : f32
    %279 = vector.broadcast %cst_84 : f32 to vector<16x32xf32>
    %280 = arith.addf %279, %278 : vector<16x32xf32>
    %281 = arith.divf %279, %280 : vector<16x32xf32>
    %282 = vector.extract_strided_slice %269 {offsets = [0, 64], sizes = [16, 32], strides = [1, 1]} : vector<16x128xf32> to vector<16x32xf32>
    %283 = math.tanh %282 : vector<16x32xf32>
    %284 = vector.extract_strided_slice %269 {offsets = [0, 96], sizes = [16, 32], strides = [1, 1]} : vector<16x128xf32> to vector<16x32xf32>
    %285 = arith.negf %284 : vector<16x32xf32>
    %286 = math.exp %285 : vector<16x32xf32>
    %cst_85 = arith.constant 1.000000e+00 : f32
    %287 = vector.broadcast %cst_85 : f32 to vector<16x32xf32>
    %288 = arith.addf %287, %286 : vector<16x32xf32>
    %289 = arith.divf %287, %288 : vector<16x32xf32>
    %290 = arith.mulf %281, %261 : vector<16x32xf32>
    %291 = arith.mulf %275, %283 : vector<16x32xf32>
    %292 = arith.addf %290, %291 : vector<16x32xf32>
    %293 = math.tanh %292 : vector<16x32xf32>
    %294 = arith.mulf %289, %293 : vector<16x32xf32>
    %295 = arith.truncf %166 : vector<16x128xf32> to vector<16x128xbf16>
    %c1_86 = arith.constant 1 : index
    %c0_87 = arith.constant 0 : index
    %c0_88 = arith.constant 0 : index
    %296 = vector.load %arg5[%c1_86, %c0_87, %c0_88] : memref<3x128x128xbf16, #tpu.memory_space<vmem>>, vector<1x128x128xbf16>
    %297 = vector.shape_cast %296 : vector<1x128x128xbf16> to vector<128x128xbf16>
    %cst_89 = arith.constant dense<0.000000e+00> : vector<16x128xf32>
    %298 = tpu.matmul %295, %297, %cst_89 {dimension_numbers = #tpu.dot_dimension_numbers<[1], [0], [0], [1], [0, 0, 1, 1], [], []>} : vector<16x128xbf16>, vector<128x128xbf16>, vector<16x128xf32> -> vector<16x128xf32>
    %299 = arith.truncf %294 : vector<16x32xf32> to vector<16x32xbf16>
    %c1_90 = arith.constant 1 : index
    %c0_91 = arith.constant 0 : index
    %c0_92 = arith.constant 0 : index
    %300 = vector.load %arg6[%c1_90, %c0_91, %c0_92] : memref<3x32x128xbf16, #tpu.memory_space<vmem>>, vector<1x32x128xbf16>
    %301 = vector.shape_cast %300 : vector<1x32x128xbf16> to vector<32x128xbf16>
    %cst_93 = arith.constant dense<0.000000e+00> : vector<16x128xf32>
    %302 = tpu.matmul %299, %301, %cst_93 {dimension_numbers = #tpu.dot_dimension_numbers<[1], [0], [0], [1], [0, 0, 1, 1], [], []>} : vector<16x32xbf16>, vector<32x128xbf16>, vector<16x128xf32> -> vector<16x128xf32>
    %303 = arith.addf %298, %302 : vector<16x128xf32>
    %c1_94 = arith.constant 1 : index
    %c0_95 = arith.constant 0 : index
    %c0_96 = arith.constant 0 : index
    %304 = vector.load %arg7[%c1_94, %c0_95, %c0_96] : memref<3x1x128xf32, #tpu.memory_space<vmem>>, vector<1x1x128xf32>
    %305 = vector.shape_cast %304 : vector<1x1x128xf32> to vector<1x128xf32>
    %306 = vector.broadcast %305 : vector<1x128xf32> to vector<16x128xf32>
    %307 = arith.addf %303, %306 : vector<16x128xf32>
    %308 = arith.truncf %307 : vector<16x128xf32> to vector<16x128xbf16>
    %c2 = arith.constant 2 : index
    %c0_97 = arith.constant 0 : index
    %c0_98 = arith.constant 0 : index
    %309 = vector.load %arg2[%c2, %c0_97, %c0_98] : memref<3x128x128xbf16, #tpu.memory_space<vmem>>, vector<1x128x128xbf16>
    %310 = vector.shape_cast %309 : vector<1x128x128xbf16> to vector<128x128xbf16>
    %cst_99 = arith.constant dense<0.000000e+00> : vector<16x128xf32>
    %311 = tpu.matmul %308, %310, %cst_99 {dimension_numbers = #tpu.dot_dimension_numbers<[1], [0], [0], [1], [0, 0, 1, 1], [], []>} : vector<16x128xbf16>, vector<128x128xbf16>, vector<16x128xf32> -> vector<16x128xf32>
    %c2_100 = arith.constant 2 : index
    %c0_101 = arith.constant 0 : index
    %c0_102 = arith.constant 0 : index
    %312 = vector.load %arg4[%c2_100, %c0_101, %c0_102] : memref<3x1x128xf32, #tpu.memory_space<vmem>>, vector<1x1x128xf32>
    %313 = vector.shape_cast %312 : vector<1x1x128xf32> to vector<1x128xf32>
    %314 = vector.broadcast %313 : vector<1x128xf32> to vector<16x128xf32>
    %315 = arith.addf %311, %314 : vector<16x128xf32>
    %cst_103 = arith.constant 0.000000e+00 : f32
    %316 = vector.broadcast %cst_103 : f32 to vector<16x32xf32>
    %cst_104 = arith.constant dense<0.000000e+00> : vector<16x128xf32>
    %317 = tpu.matmul %10, %315, %cst_104 {dimension_numbers = #tpu.dot_dimension_numbers<[1], [0], [0], [1], [0, 0, 1, 1], [], []>} : vector<16x16xf32>, vector<16x128xf32>, vector<16x128xf32> -> vector<16x128xf32>
    %318 = vector.extract_strided_slice %317 {offsets = [0, 0], sizes = [16, 32], strides = [1, 1]} : vector<16x128xf32> to vector<16x32xf32>
    %319 = arith.negf %318 : vector<16x32xf32>
    %320 = math.exp %319 : vector<16x32xf32>
    %cst_105 = arith.constant 1.000000e+00 : f32
    %321 = vector.broadcast %cst_105 : f32 to vector<16x32xf32>
    %322 = arith.addf %321, %320 : vector<16x32xf32>
    %323 = arith.divf %321, %322 : vector<16x32xf32>
    %324 = vector.extract_strided_slice %317 {offsets = [0, 32], sizes = [16, 32], strides = [1, 1]} : vector<16x128xf32> to vector<16x32xf32>
    %325 = arith.negf %324 : vector<16x32xf32>
    %326 = math.exp %325 : vector<16x32xf32>
    %cst_106 = arith.constant 1.000000e+00 : f32
    %327 = vector.broadcast %cst_106 : f32 to vector<16x32xf32>
    %328 = arith.addf %327, %326 : vector<16x32xf32>
    %329 = arith.divf %327, %328 : vector<16x32xf32>
    %330 = vector.extract_strided_slice %317 {offsets = [0, 64], sizes = [16, 32], strides = [1, 1]} : vector<16x128xf32> to vector<16x32xf32>
    %331 = math.tanh %330 : vector<16x32xf32>
    %332 = vector.extract_strided_slice %317 {offsets = [0, 96], sizes = [16, 32], strides = [1, 1]} : vector<16x128xf32> to vector<16x32xf32>
    %333 = arith.negf %332 : vector<16x32xf32>
    %334 = math.exp %333 : vector<16x32xf32>
    %cst_107 = arith.constant 1.000000e+00 : f32
    %335 = vector.broadcast %cst_107 : f32 to vector<16x32xf32>
    %336 = arith.addf %335, %334 : vector<16x32xf32>
    %337 = arith.divf %335, %336 : vector<16x32xf32>
    %338 = arith.mulf %329, %316 : vector<16x32xf32>
    %339 = arith.mulf %323, %331 : vector<16x32xf32>
    %340 = arith.addf %338, %339 : vector<16x32xf32>
    %341 = math.tanh %340 : vector<16x32xf32>
    %342 = arith.mulf %337, %341 : vector<16x32xf32>
    %cst_108 = arith.constant dense<0.000000e+00> : vector<16x128xf32>
    %343 = tpu.matmul %15, %315, %cst_108 {dimension_numbers = #tpu.dot_dimension_numbers<[1], [0], [0], [1], [0, 0, 1, 1], [], []>} : vector<16x16xf32>, vector<16x128xf32>, vector<16x128xf32> -> vector<16x128xf32>
    %344 = arith.truncf %342 : vector<16x32xf32> to vector<16x32xbf16>
    %c2_109 = arith.constant 2 : index
    %c0_110 = arith.constant 0 : index
    %c0_111 = arith.constant 0 : index
    %345 = vector.load %arg3[%c2_109, %c0_110, %c0_111] : memref<3x32x128xbf16, #tpu.memory_space<vmem>>, vector<1x32x128xbf16>
    %346 = vector.shape_cast %345 : vector<1x32x128xbf16> to vector<32x128xbf16>
    %cst_112 = arith.constant dense<0.000000e+00> : vector<16x128xf32>
    %347 = tpu.matmul %344, %346, %cst_112 {dimension_numbers = #tpu.dot_dimension_numbers<[1], [0], [0], [1], [0, 0, 1, 1], [], []>} : vector<16x32xbf16>, vector<32x128xbf16>, vector<16x128xf32> -> vector<16x128xf32>
    %348 = arith.addf %343, %347 : vector<16x128xf32>
    %349 = vector.extract_strided_slice %348 {offsets = [0, 0], sizes = [16, 32], strides = [1, 1]} : vector<16x128xf32> to vector<16x32xf32>
    %350 = arith.negf %349 : vector<16x32xf32>
    %351 = math.exp %350 : vector<16x32xf32>
    %cst_113 = arith.constant 1.000000e+00 : f32
    %352 = vector.broadcast %cst_113 : f32 to vector<16x32xf32>
    %353 = arith.addf %352, %351 : vector<16x32xf32>
    %354 = arith.divf %352, %353 : vector<16x32xf32>
    %355 = vector.extract_strided_slice %348 {offsets = [0, 32], sizes = [16, 32], strides = [1, 1]} : vector<16x128xf32> to vector<16x32xf32>
    %356 = arith.negf %355 : vector<16x32xf32>
    %357 = math.exp %356 : vector<16x32xf32>
    %cst_114 = arith.constant 1.000000e+00 : f32
    %358 = vector.broadcast %cst_114 : f32 to vector<16x32xf32>
    %359 = arith.addf %358, %357 : vector<16x32xf32>
    %360 = arith.divf %358, %359 : vector<16x32xf32>
    %361 = vector.extract_strided_slice %348 {offsets = [0, 64], sizes = [16, 32], strides = [1, 1]} : vector<16x128xf32> to vector<16x32xf32>
    %362 = math.tanh %361 : vector<16x32xf32>
    %363 = vector.extract_strided_slice %348 {offsets = [0, 96], sizes = [16, 32], strides = [1, 1]} : vector<16x128xf32> to vector<16x32xf32>
    %364 = arith.negf %363 : vector<16x32xf32>
    %365 = math.exp %364 : vector<16x32xf32>
    %cst_115 = arith.constant 1.000000e+00 : f32
    %366 = vector.broadcast %cst_115 : f32 to vector<16x32xf32>
    %367 = arith.addf %366, %365 : vector<16x32xf32>
    %368 = arith.divf %366, %367 : vector<16x32xf32>
    %369 = arith.mulf %360, %340 : vector<16x32xf32>
    %370 = arith.mulf %354, %362 : vector<16x32xf32>
    %371 = arith.addf %369, %370 : vector<16x32xf32>
    %372 = math.tanh %371 : vector<16x32xf32>
    %373 = arith.mulf %368, %372 : vector<16x32xf32>
    %cst_116 = arith.constant dense<0.000000e+00> : vector<16x128xf32>
    %374 = tpu.matmul %20, %315, %cst_116 {dimension_numbers = #tpu.dot_dimension_numbers<[1], [0], [0], [1], [0, 0, 1, 1], [], []>} : vector<16x16xf32>, vector<16x128xf32>, vector<16x128xf32> -> vector<16x128xf32>
    %375 = arith.truncf %373 : vector<16x32xf32> to vector<16x32xbf16>
    %c2_117 = arith.constant 2 : index
    %c0_118 = arith.constant 0 : index
    %c0_119 = arith.constant 0 : index
    %376 = vector.load %arg3[%c2_117, %c0_118, %c0_119] : memref<3x32x128xbf16, #tpu.memory_space<vmem>>, vector<1x32x128xbf16>
    %377 = vector.shape_cast %376 : vector<1x32x128xbf16> to vector<32x128xbf16>
    %cst_120 = arith.constant dense<0.000000e+00> : vector<16x128xf32>
    %378 = tpu.matmul %375, %377, %cst_120 {dimension_numbers = #tpu.dot_dimension_numbers<[1], [0], [0], [1], [0, 0, 1, 1], [], []>} : vector<16x32xbf16>, vector<32x128xbf16>, vector<16x128xf32> -> vector<16x128xf32>
    %379 = arith.addf %374, %378 : vector<16x128xf32>
    %380 = vector.extract_strided_slice %379 {offsets = [0, 0], sizes = [16, 32], strides = [1, 1]} : vector<16x128xf32> to vector<16x32xf32>
    %381 = arith.negf %380 : vector<16x32xf32>
    %382 = math.exp %381 : vector<16x32xf32>
    %cst_121 = arith.constant 1.000000e+00 : f32
    %383 = vector.broadcast %cst_121 : f32 to vector<16x32xf32>
    %384 = arith.addf %383, %382 : vector<16x32xf32>
    %385 = arith.divf %383, %384 : vector<16x32xf32>
    %386 = vector.extract_strided_slice %379 {offsets = [0, 32], sizes = [16, 32], strides = [1, 1]} : vector<16x128xf32> to vector<16x32xf32>
    %387 = arith.negf %386 : vector<16x32xf32>
    %388 = math.exp %387 : vector<16x32xf32>
    %cst_122 = arith.constant 1.000000e+00 : f32
    %389 = vector.broadcast %cst_122 : f32 to vector<16x32xf32>
    %390 = arith.addf %389, %388 : vector<16x32xf32>
    %391 = arith.divf %389, %390 : vector<16x32xf32>
    %392 = vector.extract_strided_slice %379 {offsets = [0, 64], sizes = [16, 32], strides = [1, 1]} : vector<16x128xf32> to vector<16x32xf32>
    %393 = math.tanh %392 : vector<16x32xf32>
    %394 = vector.extract_strided_slice %379 {offsets = [0, 96], sizes = [16, 32], strides = [1, 1]} : vector<16x128xf32> to vector<16x32xf32>
    %395 = arith.negf %394 : vector<16x32xf32>
    %396 = math.exp %395 : vector<16x32xf32>
    %cst_123 = arith.constant 1.000000e+00 : f32
    %397 = vector.broadcast %cst_123 : f32 to vector<16x32xf32>
    %398 = arith.addf %397, %396 : vector<16x32xf32>
    %399 = arith.divf %397, %398 : vector<16x32xf32>
    %400 = arith.mulf %391, %371 : vector<16x32xf32>
    %401 = arith.mulf %385, %393 : vector<16x32xf32>
    %402 = arith.addf %400, %401 : vector<16x32xf32>
    %403 = math.tanh %402 : vector<16x32xf32>
    %404 = arith.mulf %399, %403 : vector<16x32xf32>
    %cst_124 = arith.constant dense<0.000000e+00> : vector<16x128xf32>
    %405 = tpu.matmul %25, %315, %cst_124 {dimension_numbers = #tpu.dot_dimension_numbers<[1], [0], [0], [1], [0, 0, 1, 1], [], []>} : vector<16x16xf32>, vector<16x128xf32>, vector<16x128xf32> -> vector<16x128xf32>
    %406 = arith.truncf %404 : vector<16x32xf32> to vector<16x32xbf16>
    %c2_125 = arith.constant 2 : index
    %c0_126 = arith.constant 0 : index
    %c0_127 = arith.constant 0 : index
    %407 = vector.load %arg3[%c2_125, %c0_126, %c0_127] : memref<3x32x128xbf16, #tpu.memory_space<vmem>>, vector<1x32x128xbf16>
    %408 = vector.shape_cast %407 : vector<1x32x128xbf16> to vector<32x128xbf16>
    %cst_128 = arith.constant dense<0.000000e+00> : vector<16x128xf32>
    %409 = tpu.matmul %406, %408, %cst_128 {dimension_numbers = #tpu.dot_dimension_numbers<[1], [0], [0], [1], [0, 0, 1, 1], [], []>} : vector<16x32xbf16>, vector<32x128xbf16>, vector<16x128xf32> -> vector<16x128xf32>
    %410 = arith.addf %405, %409 : vector<16x128xf32>
    %411 = vector.extract_strided_slice %410 {offsets = [0, 0], sizes = [16, 32], strides = [1, 1]} : vector<16x128xf32> to vector<16x32xf32>
    %412 = arith.negf %411 : vector<16x32xf32>
    %413 = math.exp %412 : vector<16x32xf32>
    %cst_129 = arith.constant 1.000000e+00 : f32
    %414 = vector.broadcast %cst_129 : f32 to vector<16x32xf32>
    %415 = arith.addf %414, %413 : vector<16x32xf32>
    %416 = arith.divf %414, %415 : vector<16x32xf32>
    %417 = vector.extract_strided_slice %410 {offsets = [0, 32], sizes = [16, 32], strides = [1, 1]} : vector<16x128xf32> to vector<16x32xf32>
    %418 = arith.negf %417 : vector<16x32xf32>
    %419 = math.exp %418 : vector<16x32xf32>
    %cst_130 = arith.constant 1.000000e+00 : f32
    %420 = vector.broadcast %cst_130 : f32 to vector<16x32xf32>
    %421 = arith.addf %420, %419 : vector<16x32xf32>
    %422 = arith.divf %420, %421 : vector<16x32xf32>
    %423 = vector.extract_strided_slice %410 {offsets = [0, 64], sizes = [16, 32], strides = [1, 1]} : vector<16x128xf32> to vector<16x32xf32>
    %424 = math.tanh %423 : vector<16x32xf32>
    %425 = vector.extract_strided_slice %410 {offsets = [0, 96], sizes = [16, 32], strides = [1, 1]} : vector<16x128xf32> to vector<16x32xf32>
    %426 = arith.negf %425 : vector<16x32xf32>
    %427 = math.exp %426 : vector<16x32xf32>
    %cst_131 = arith.constant 1.000000e+00 : f32
    %428 = vector.broadcast %cst_131 : f32 to vector<16x32xf32>
    %429 = arith.addf %428, %427 : vector<16x32xf32>
    %430 = arith.divf %428, %429 : vector<16x32xf32>
    %431 = arith.mulf %422, %402 : vector<16x32xf32>
    %432 = arith.mulf %416, %424 : vector<16x32xf32>
    %433 = arith.addf %431, %432 : vector<16x32xf32>
    %434 = math.tanh %433 : vector<16x32xf32>
    %435 = arith.mulf %430, %434 : vector<16x32xf32>
    %436 = arith.truncf %307 : vector<16x128xf32> to vector<16x128xbf16>
    %c2_132 = arith.constant 2 : index
    %c0_133 = arith.constant 0 : index
    %c0_134 = arith.constant 0 : index
    %437 = vector.load %arg5[%c2_132, %c0_133, %c0_134] : memref<3x128x128xbf16, #tpu.memory_space<vmem>>, vector<1x128x128xbf16>
    %438 = vector.shape_cast %437 : vector<1x128x128xbf16> to vector<128x128xbf16>
    %cst_135 = arith.constant dense<0.000000e+00> : vector<16x128xf32>
    %439 = tpu.matmul %436, %438, %cst_135 {dimension_numbers = #tpu.dot_dimension_numbers<[1], [0], [0], [1], [0, 0, 1, 1], [], []>} : vector<16x128xbf16>, vector<128x128xbf16>, vector<16x128xf32> -> vector<16x128xf32>
    %440 = arith.truncf %435 : vector<16x32xf32> to vector<16x32xbf16>
    %c2_136 = arith.constant 2 : index
    %c0_137 = arith.constant 0 : index
    %c0_138 = arith.constant 0 : index
    %441 = vector.load %arg6[%c2_136, %c0_137, %c0_138] : memref<3x32x128xbf16, #tpu.memory_space<vmem>>, vector<1x32x128xbf16>
    %442 = vector.shape_cast %441 : vector<1x32x128xbf16> to vector<32x128xbf16>
    %cst_139 = arith.constant dense<0.000000e+00> : vector<16x128xf32>
    %443 = tpu.matmul %440, %442, %cst_139 {dimension_numbers = #tpu.dot_dimension_numbers<[1], [0], [0], [1], [0, 0, 1, 1], [], []>} : vector<16x32xbf16>, vector<32x128xbf16>, vector<16x128xf32> -> vector<16x128xf32>
    %444 = arith.addf %439, %443 : vector<16x128xf32>
    %c2_140 = arith.constant 2 : index
    %c0_141 = arith.constant 0 : index
    %c0_142 = arith.constant 0 : index
    %445 = vector.load %arg7[%c2_140, %c0_141, %c0_142] : memref<3x1x128xf32, #tpu.memory_space<vmem>>, vector<1x1x128xf32>
    %446 = vector.shape_cast %445 : vector<1x1x128xf32> to vector<1x128xf32>
    %447 = vector.broadcast %446 : vector<1x128xf32> to vector<16x128xf32>
    %448 = arith.addf %444, %447 : vector<16x128xf32>
    %449 = arith.truncf %448 : vector<16x128xf32> to vector<16x128xbf16>
    %c0_143 = arith.constant 0 : index
    %c0_144 = arith.constant 0 : index
    %450 = vector.load %arg8[%c0_143, %c0_144] : memref<128x128xbf16, #tpu.memory_space<vmem>>, vector<128x128xbf16>
    %cst_145 = arith.constant dense<0.000000e+00> : vector<16x128xf32>
    %451 = tpu.matmul %449, %450, %cst_145 {dimension_numbers = #tpu.dot_dimension_numbers<[1], [0], [0], [1], [0, 0, 1, 1], [], []>} : vector<16x128xbf16>, vector<128x128xbf16>, vector<16x128xf32> -> vector<16x128xf32>
    %c0_146 = arith.constant 0 : index
    %c0_147 = arith.constant 0 : index
    %452 = vector.load %arg9[%c0_146, %c0_147] : memref<1x128xf32, #tpu.memory_space<vmem>>, vector<1x128xf32>
    %453 = vector.broadcast %452 : vector<1x128xf32> to vector<16x128xf32>
    %454 = arith.addf %451, %453 : vector<16x128xf32>
    %c0_148 = arith.constant 0 : index
    %c0_149 = arith.constant 0 : index
    %455 = vector.load %arg10[%c0_148, %c0_149] : memref<16x128xf32, #tpu.memory_space<vmem>>, vector<16x128xf32>
    tpu.vector_store %arg10[%c0_148, %c0_149], %454 {strides = array<i32>} : memref<16x128xf32, #tpu.memory_space<vmem>>, vector<16x128xf32>,
    return
  }
}

</mosaic_0001>

<llo_original>
// kernel: net_forward.1
$region0: #{net_forward.1}
  #allocation0 [shape = 'u32[]', space=smem, size = 0x4, offset = 0x4, fixed_abs, tag = 'smem constant byte address 0x4 - core index']
  #allocation1 [shape = 'u32[144,128]{1,0:T(1,128)}', space=vmem, size = 0x12000, scoped, tag = 'internal scratch']
  %s0 = inlined_call_operand.vmem [shape: f32[16,7], index: 0, kind: input, shape index: {}]
  %s1 = inlined_call_operand.vmem [shape: s32[16,4], index: 1, kind: input, shape index: {}]
  %s2 = inlined_call_operand.hbm [shape: bf16[3,128,128], index: 2, kind: input, shape index: {}]
  %s3 = inlined_call_operand.vmem [shape: bf16[3,32,128], index: 3, kind: input, shape index: {}]
  %s4 = inlined_call_operand.vmem [shape: f32[3,1,128], index: 4, kind: input, shape index: {}]
  %s5 = inlined_call_operand.hbm [shape: bf16[3,128,128], index: 5, kind: input, shape index: {}]
  %s6 = inlined_call_operand.hbm [shape: bf16[3,32,128], index: 6, kind: input, shape index: {}]
  %s7 = inlined_call_operand.hbm [shape: f32[3,1,128], index: 7, kind: input, shape index: {}]
  %s8 = inlined_call_operand.hbm [shape: bf16[128,128], index: 8, kind: input, shape index: {}]
  %s9 = inlined_call_operand.vmem [shape: f32[1,128], index: 9, kind: input, shape index: {}]
  %s10 = inlined_call_operand.vmem [shape: f32[16,128], index: 10, kind: output, shape index: {}]
  %s11 = sld [smem:[#allocation0]]
  $region70: #{net_forward.1} parent=0
    _
  %s13 = ssub.s32 1, %s11
  %s14 = scalar_select 0, %s13, %s11
  $region1: #{net_forward.1} parent=0
    #allocation2 [shape = 'u8[98304]{0}', space=vmem, size = 0x18000, scoped, tag = 'input window, operand 2, single buffered']
    #allocation3 [shape = 's32[1]{0}', space=sflag, size = 0x4, scoped, tag = 'scoped memory for net_forward.1']
    #allocation4 [shape = 'u8[98304]{0}', space=vmem, size = 0x18000, scoped, tag = 'input window, operand 5, single buffered']
    #allocation5 [shape = 's32[1]{0}', space=sflag, size = 0x4, scoped, tag = 'scoped memory for net_forward.1']
    #allocation6 [shape = 'u8[24576]{0}', space=vmem, size = 0x6000, scoped, tag = 'input window, operand 6, single buffered']
    #allocation7 [shape = 'u8[1536]{0}', space=vmem, size = 0x800, scoped, tag = 'input window, operand 7, single buffered']
    #allocation8 [shape = 's32[1]{0}', space=sflag, size = 0x4, scoped, tag = 'scoped memory for net_forward.1']
    #allocation9 [shape = 'u8[32768]{0}', space=vmem, size = 0x8000, scoped, tag = 'input window, operand 8, single buffered']
    %15 = vsyncpa [#allocation3], 0
    %16 = vsyncpa [#allocation5], 0
    %17 = vsyncpa [#allocation8], 0
    // Predicated region
    $region2: #{net_forward.1} parent=1 // pred_check
      _
    $region3: #{net_forward.1} parent=1 // pred_check_branch
      %19 = sbr.rel (0) target = $region5
    $region4: #{net_forward.1} parent=1 // pred_region
      _
    $region5: #{net_forward.1} parent=1 // pred_fallthru
      _
    // Predicated region
    $region6: #{net_forward.1} parent=1 // pred_check
      _
    $region7: #{net_forward.1} parent=1 // pred_check_branch
      %21 = sbr.rel (0) target = $region9
    $region8: #{net_forward.1} parent=1 // pred_region
      _
    $region9: #{net_forward.1} parent=1 // pred_fallthru
      _
    // Predicated region
    $region10: #{net_forward.1} parent=1 // pred_check
      _
    $region11: #{net_forward.1} parent=1 // pred_check_branch
      %23 = sbr.rel (0) target = $region13
    $region12: #{net_forward.1} parent=1 // pred_region
      %s25 = ssub.s32 3072, 3072
      %26 = vsyncadd [#allocation3], %s25
      %s27 = sshll.u32 [#allocation2], 4
      %s28 = int_to_ptr.vmem [resolvable:$true] %s27
      %33 = dma.hbm_to_vmem [thread:$0]  %s2, 3072, %s28, [#allocation3], 64, 64, 4
    $region13: #{net_forward.1} parent=1 // pred_fallthru
      _
    // Predicated region
    $region14: #{net_forward.1} parent=1 // pred_check
      _
    $region15: #{net_forward.1} parent=1 // pred_check_branch
      %35 = sbr.rel (0) target = $region17
    $region16: #{net_forward.1} parent=1 // pred_region
      _
    $region17: #{net_forward.1} parent=1 // pred_fallthru
      _
    // Predicated region
    $region18: #{net_forward.1} parent=1 // pred_check
      _
    $region19: #{net_forward.1} parent=1 // pred_check_branch
      %37 = sbr.rel (0) target = $region21
    $region20: #{net_forward.1} parent=1 // pred_region
      _
    $region21: #{net_forward.1} parent=1 // pred_fallthru
      _
    // Predicated region
    $region22: #{net_forward.1} parent=1 // pred_check
      _
    $region23: #{net_forward.1} parent=1 // pred_check_branch
      %39 = sbr.rel (0) target = $region25
    $region24: #{net_forward.1} parent=1 // pred_region
      %s41 = ssub.s32 3072, 3072
      %42 = vsyncadd [#allocation5], %s41
      %s43 = sshll.u32 [#allocation4], 4
      %s44 = int_to_ptr.vmem [resolvable:$true] %s43
      %49 = dma.hbm_to_vmem [thread:$0]  %s5, 3072, %s44, [#allocation5], 64, 64, 4
    $region25: #{net_forward.1} parent=1 // pred_fallthru
      _
    // Predicated region
    $region26: #{net_forward.1} parent=1 // pred_check
      _
    $region27: #{net_forward.1} parent=1 // pred_check_branch
      %51 = sbr.rel (0) target = $region29
    $region28: #{net_forward.1} parent=1 // pred_region
      %s53 = ssub.s32 768, 768
      %54 = vsyncadd [#allocation5], %s53
      %s55 = sshll.u32 [#allocation6], 4
      %s56 = int_to_ptr.vmem [resolvable:$true] %s55
      %61 = dma.hbm_to_vmem [thread:$0]  %s6, 768, %s56, [#allocation5], 64, 64, 4
    $region29: #{net_forward.1} parent=1 // pred_fallthru
      _
    // Predicated region
    $region30: #{net_forward.1} parent=1 // pred_check
      _
    $region31: #{net_forward.1} parent=1 // pred_check_branch
      %63 = sbr.rel (0) target = $region33
    $region32: #{net_forward.1} parent=1 // pred_region
      %s65 = ssub.s32 48, 48
      %66 = vsyncadd [#allocation8], %s65
      %s67 = sshll.u32 [#allocation7], 4
      %s68 = int_to_ptr.vmem [resolvable:$true] %s67
      %73 = dma.hbm_to_vmem [thread:$0]  %s7, 48, %s68, [#allocation8], 16, 16, 1
    $region33: #{net_forward.1} parent=1 // pred_fallthru
      _
    // Predicated region
    $region34: #{net_forward.1} parent=1 // pred_check
      _
    $region35: #{net_forward.1} parent=1 // pred_check_branch
      %75 = sbr.rel (0) target = $region37
    $region36: #{net_forward.1} parent=1 // pred_region
      %s77 = ssub.s32 1024, 1024
      %78 = vsyncadd [#allocation8], %s77
      %s79 = sshll.u32 [#allocation9], 4
      %s80 = int_to_ptr.vmem [resolvable:$true] %s79
      %85 = dma.hbm_to_vmem [thread:$0]  %s8, 1024, %s80, [#allocation8], 64, 64, 4
    $region37: #{net_forward.1} parent=1 // pred_fallthru
      _
    // Predicated region
    $region38: #{net_forward.1} parent=1 // pred_check
      _
    $region39: #{net_forward.1} parent=1 // pred_check_branch
      %87 = sbr.rel (0) target = $region41
    $region40: #{net_forward.1} parent=1 // pred_region
      _
    $region41: #{net_forward.1} parent=1 // pred_fallthru
      _
    // Predicated region
    $region42: #{net_forward.1} parent=1 // pred_check
      _
    $region43: #{net_forward.1} parent=1 // pred_check_branch
      %89 = sbr.rel (0) target = $region45
    $region44: #{net_forward.1} parent=1 // pred_region
      %90 = dma.done [#allocation3], 3072
    $region45: #{net_forward.1} parent=1 // pred_fallthru
      _
    // Predicated region
    $region46: #{net_forward.1} parent=1 // pred_check
      _
    $region47: #{net_forward.1} parent=1 // pred_check_branch
      %92 = sbr.rel (0) target = $region49
    $region48: #{net_forward.1} parent=1 // pred_region
      %93 = dma.done [#allocation5], 3072
    $region49: #{net_forward.1} parent=1 // pred_fallthru
      _
    // Predicated region
    $region50: #{net_forward.1} parent=1 // pred_check
      _
    $region51: #{net_forward.1} parent=1 // pred_check_branch
      %95 = sbr.rel (0) target = $region53
    $region52: #{net_forward.1} parent=1 // pred_region
      %96 = dma.done [#allocation5], 768
    $region53: #{net_forward.1} parent=1 // pred_fallthru
      _
    // Predicated region
    $region54: #{net_forward.1} parent=1 // pred_check
      _
    $region55: #{net_forward.1} parent=1 // pred_check_branch
      %98 = sbr.rel (0) target = $region57
    $region56: #{net_forward.1} parent=1 // pred_region
      %99 = dma.done [#allocation8], 48
    $region57: #{net_forward.1} parent=1 // pred_fallthru
      _
    // Predicated region
    $region58: #{net_forward.1} parent=1 // pred_check
      _
    $region59: #{net_forward.1} parent=1 // pred_check_branch
      %101 = sbr.rel (0) target = $region61
    $region60: #{net_forward.1} parent=1 // pred_region
      %102 = dma.done [#allocation8], 1024
    $region61: #{net_forward.1} parent=1 // pred_fallthru
      _
    %v104 = vld [vmem:[%s0] sm:$0xff]
    %v105 = vld [vmem:[%s0 + $0x8] sm:$0xff]
    %108 = vrot.lane.b32.xlu0 %v104, 1
    %v109 = vpop.permute.xlu0 %108
    %110 = vrot.lane.b32.xlu0 %v105, 1
    %v111 = vpop.permute.xlu0 %110
    %vm114 = vcmask 7168
    %v115 = vsel %vm114, 0.25, %v109
    %v116 = vsel %vm114, 0.25, %v111
    %vm117 = vcmask 64512
    %v118 = vsel %vm117, %v115, 0.0
    %v119 = vsel %vm117, %v116, 0.0
    %v120 = vlaneseq
    %v121 = vand.u32 %v120, 127
    %v122 = vld [vmem:[%s1] sm:$0xff]
    %v123 = vld [vmem:[%s1 + $0x8] sm:$0xff]
    %124 = vset.pattern.permute.xlu0 0
    %125 = vperm.xlu0 %124, %v122
    %v126 = vpop.permute.xlu0 %125
    %127 = vset.pattern.permute.xlu0 0
    %128 = vperm.xlu0 %127, %v123
    %v129 = vpop.permute.xlu0 %128
    %vm130 = vcmp.eq.s32.totalorder %v121, %v126
    %vm131 = vcmp.eq.s32.totalorder %v121, %v129
    %v132 = vsel %vm130, 1, 0
    %v133 = vsel %vm131, 1, 0
    %v134 = vcvt.s32.f32 %v132
    %v135 = vcvt.s32.f32 %v133
    %136 = vset.pattern.permute.xlu0 1
    %137 = vperm.xlu0 %136, %v122
    %v138 = vpop.permute.xlu0 %137
    %139 = vset.pattern.permute.xlu0 1
    %140 = vperm.xlu0 %139, %v123
    %v141 = vpop.permute.xlu0 %140
    %vm142 = vcmp.eq.s32.totalorder %v121, %v138
    %vm143 = vcmp.eq.s32.totalorder %v121, %v141
    %v144 = vsel %vm142, 1, 0
    %v145 = vsel %vm143, 1, 0
    %v146 = vcvt.s32.f32 %v144
    %v147 = vcvt.s32.f32 %v145
    %148 = vset.pattern.permute.xlu0 2
    %149 = vperm.xlu0 %148, %v122
    %v150 = vpop.permute.xlu0 %149
    %151 = vset.pattern.permute.xlu0 2
    %152 = vperm.xlu0 %151, %v123
    %v153 = vpop.permute.xlu0 %152
    %vm154 = vcmp.eq.s32.totalorder %v121, %v150
    %vm155 = vcmp.eq.s32.totalorder %v121, %v153
    %v156 = vsel %vm154, 1, 0
    %v157 = vsel %vm155, 1, 0
    %v158 = vcvt.s32.f32 %v156
    %v159 = vcvt.s32.f32 %v157
    %160 = vset.pattern.permute.xlu0 3
    %161 = vperm.xlu0 %160, %v122
    %v162 = vpop.permute.xlu0 %161
    %163 = vset.pattern.permute.xlu0 3
    %164 = vperm.xlu0 %163, %v123
    %v165 = vpop.permute.xlu0 %164
    %vm166 = vcmp.eq.s32.totalorder %v121, %v162
    %vm167 = vcmp.eq.s32.totalorder %v121, %v165
    %v168 = vsel %vm166, 1, 0
    %v169 = vsel %vm167, 1, 0
    %v170 = vcvt.s32.f32 %v168
    %v171 = vcvt.s32.f32 %v169
    %v172 = vpack.c.bf16 %v119, %v118
    %v173 = vld [vmem:[#allocation2] sm:$0xf]
    %v174 = vld [vmem:[#allocation2 + $0x4] sm:$0xf]
    %v175 = vld [vmem:[#allocation2 + $0x8] sm:$0xf]
    %v176 = vld [vmem:[#allocation2 + $0xc] sm:$0xf]
    %v177 = vld [vmem:[#allocation2 + $0x10] sm:$0xf]
    %v178 = vld [vmem:[#allocation2 + $0x14] sm:$0xf]
    %v179 = vld [vmem:[#allocation2 + $0x18] sm:$0xf]
    %v180 = vld [vmem:[#allocation2 + $0x1c] sm:$0xf]
    %v181 = vld [vmem:[#allocation2 + $0x20] sm:$0xf]
    %v182 = vld [vmem:[#allocation2 + $0x24] sm:$0xf]
    %v183 = vld [vmem:[#allocation2 + $0x28] sm:$0xf]
    %v184 = vld [vmem:[#allocation2 + $0x2c] sm:$0xf]
    %v185 = vld [vmem:[#allocation2 + $0x30] sm:$0xf]
    %v186 = vld [vmem:[#allocation2 + $0x34] sm:$0xf]
    %v187 = vld [vmem:[#allocation2 + $0x38] sm:$0xf]
    %v188 = vld [vmem:[#allocation2 + $0x3c] sm:$0xf]
    %v189 = vld [vmem:[%s4] sm:$0x1]
    %v191 = vlaneseq
    %v192 = vshrl.u32 %v191, 7
    %v193 = vsub.s32 0, %v192
    %v194 = vrot.slane %v189, %v193
    %v212 = vunpack.c.l.b16 %v173
    %v213 = vunpack.c.l.b16 %v174
    %v214 = vunpack.c.l.b16 %v175
    %v215 = vunpack.c.l.b16 %v176
    %v216 = vunpack.c.l.b16 %v177
    %v217 = vunpack.c.l.b16 %v178
    %v218 = vunpack.c.l.b16 %v179
    %v219 = vunpack.c.l.b16 %v180
    %v220 = vunpack.c.l.b16 %v181
    %v221 = vunpack.c.l.b16 %v182
    %v222 = vunpack.c.l.b16 %v183
    %v223 = vunpack.c.l.b16 %v184
    %v224 = vunpack.c.l.b16 %v185
    %v225 = vunpack.c.l.b16 %v186
    %v226 = vunpack.c.l.b16 %v187
    %v227 = vunpack.c.l.b16 %v188
    %v228 = vpack.c.b16 %v213, %v212
    %v229 = vpack.c.b16 %v215, %v214
    %v230 = vpack.c.b16 %v217, %v216
    %v231 = vpack.c.b16 %v219, %v218
    %v232 = vpack.c.b16 %v221, %v220
    %v233 = vpack.c.b16 %v223, %v222
    %v234 = vpack.c.b16 %v225, %v224
    %v235 = vpack.c.b16 %v227, %v226
    %244 = vmatprep.subr.bf16.mxu0 0
    %245 = vmatpush1.bf16.msra.mxu0 %v235
    %246 = vmatprep.subr.bf16.mxu0 0
    %247 = vmatpush1.bf16.msra.mxu0 %v234
    %248 = vmatprep.subr.bf16.mxu0 0
    %249 = vmatpush1.bf16.msra.mxu0 %v233
    %250 = vmatprep.subr.bf16.mxu0 0
    %251 = vmatpush1.bf16.msra.mxu0 %v232
    %252 = vmatprep.subr.bf16.mxu0 0
    %253 = vmatpush1.bf16.msra.mxu0 %v231
    %254 = vmatprep.subr.bf16.mxu0 0
    %255 = vmatpush1.bf16.msra.mxu0 %v230
    %256 = vmatprep.subr.bf16.mxu0 0
    %257 = vmatpush1.bf16.msra.mxu0 %v229
    %258 = vmatprep.subr.bf16.mxu0 0
    %259 = vmatpush1.bf16.msra.mxu0 %v228
    %260 = vmatprep.subr.bf16.mxu0 0
    %261 = vmatpush2.bf16.msra.mxu0 0
    %262 = vmatprep.subr.bf16.mxu0 0
    %263 = vmatpush2.bf16.msra.mxu0 0
    %264 = vmatprep.subr.bf16.mxu0 0
    %265 = vmatpush2.bf16.msra.mxu0 0
    %266 = vmatprep.subr.bf16.mxu0 0
    %267 = vmatpush2.bf16.msra.mxu0 0
    %268 = vmatprep.subr.bf16.mxu0 0
    %269 = vmatpush2.bf16.msra.mxu0 0
    %270 = vmatprep.subr.bf16.mxu0 0
    %271 = vmatpush2.bf16.msra.mxu0 0
    %272 = vmatprep.subr.bf16.mxu0 0
    %273 = vmatpush2.bf16.msra.mxu0 0
    %274 = vmatprep.subr.bf16.mxu0 0
    %275 = vmatpush2.bf16.msra.mxu0 0
    %276 = vmatprep.mubr.bf16.mxu0 0
    %277 = vmatmul.mubr.bf16.gmra.mxu0 %v172
    %v278 = vpop.f32.mrf.mxu0
    %v279 = vadd.f32 %v194, %v278
    %v280 = vpop.f32.mrf.mxu0
    %v281 = vpop.f32.mrf.mxu0
    %v282 = vadd.f32 %v194, %v281
    %v283 = vpop.f32.mrf.mxu0
    %284 = vdwg.mxu0
    %vm285 = vcmask 130048
    %v287 = vsel %vm285, %v134, 0
    %v290 = vsel %vm285, %v135, 0
    %292 = vmatprep.subr.mxu0 0.0
    %293 = vmatpush1.msra.mxu0 0.0
    %294 = vmatprep.subr.mxu0 0.0
    %295 = vmatpush1.msra.mxu0 0.0
    %296 = vmatprep.subr.mxu0 0.0
    %297 = vmatpush1.msra.mxu0 0.0
    %298 = vmatprep.subr.mxu0 0.0
    %299 = vmatpush1.msra.mxu0 0.0
    %300 = vmatprep.subr.mxu0 0.0
    %301 = vmatpush1.msra.mxu0 0.0
    %302 = vmatprep.subr.mxu0 0.0
    %303 = vmatpush1.msra.mxu0 0.0
    %304 = vmatprep.subr.mxu0 0.0
    %305 = vmatpush1.msra.mxu0 0.0
    %306 = vmatprep.subr.mxu0 0.0
    %307 = vmatpush1.msra.mxu0 0.0
    %308 = vmatprep.subr.mxu0 0.0
    %309 = vmatpush1.msra.mxu0 0.0
    %310 = vmatprep.subr.mxu0 0.0
    %311 = vmatpush1.msra.mxu0 0.0
    %312 = vmatprep.subr.mxu0 0.0
    %313 = vmatpush1.msra.mxu0 0.0
    %314 = vmatprep.subr.mxu0 0.0
    %315 = vmatpush1.msra.mxu0 0.0
    %316 = vmatprep.subr.mxu0 0.0
    %317 = vmatpush1.msra.mxu0 0.0
    %318 = vmatprep.subr.mxu0 0.0
    %319 = vmatpush1.msra.mxu0 0.0
    %320 = vmatprep.subr.mxu0 0.0
    %321 = vmatpush1.msra.mxu0 %v282
    %322 = vmatprep.subr.mxu0 0.0
    %323 = vmatpush1.msra.mxu0 %v279
    %324 = vmatprep.subr.mxu0 0.0
    %325 = vmatpush2.msra.mxu0 0.0
    %326 = vmatprep.subr.mxu0 0.0
    %327 = vmatpush2.msra.mxu0 0.0
    %328 = vmatprep.subr.mxu0 0.0
    %329 = vmatpush2.msra.mxu0 0.0
    %330 = vmatprep.subr.mxu0 0.0
    %331 = vmatpush2.msra.mxu0 0.0
    %332 = vmatprep.subr.mxu0 0.0
    %333 = vmatpush2.msra.mxu0 0.0
    %334 = vmatprep.subr.mxu0 0.0
    %335 = vmatpush2.msra.mxu0 0.0
    %336 = vmatprep.subr.mxu0 0.0
    %337 = vmatpush2.msra.mxu0 0.0
    %338 = vmatprep.subr.mxu0 0.0
    %339 = vmatpush2.msra.mxu0 0.0
    %340 = vmatprep.subr.mxu0 0.0
    %341 = vmatpush2.msra.mxu0 0.0
    %342 = vmatprep.subr.mxu0 0.0
    %343 = vmatpush2.msra.mxu0 0.0
    %344 = vmatprep.subr.mxu0 0.0
    %345 = vmatpush2.msra.mxu0 0.0
    %346 = vmatprep.subr.mxu0 0.0
    %347 = vmatpush2.msra.mxu0 0.0
    %348 = vmatprep.subr.mxu0 0.0
    %349 = vmatpush2.msra.mxu0 0.0
    %350 = vmatprep.subr.mxu0 0.0
    %351 = vmatpush2.msra.mxu0 0.0
    %352 = vmatprep.subr.mxu0 0.0
    %353 = vmatpush2.msra.mxu0 0.0
    %354 = vmatprep.subr.mxu0 0.0
    %355 = vmatpush2.msra.mxu0 0.0
    %356 = vmatprep.mubr.f32.mxu0 0.0
    %357 = vmatmul.mubr.f32.gmra.mxu0 %v287
    %v358 = vpop.f32.mrf.mxu0
    %v359 = vadd.f32 0.0, %v358
    %v360 = vpop.f32.mrf.mxu0
    %361 = vmatprep.mubr.f32.mxu0 0.0
    %362 = vmatmul.mubr.f32.gmra.mxu0 %v290
    %v363 = vpop.f32.mrf.mxu0
    %v364 = vadd.f32 0.0, %v363
    %v365 = vpop.f32.mrf.mxu0
    %366 = vdwg.mxu0
    %v367 = vxor.u32 %v359, 2147483648
    %v368 = vxor.u32 %v364, 2147483648
    %v369 = vmul.f32 %v367, 1.442695
    %v370 = vpow.pop %v369
    %v371 = vmul.f32 %v368, 1.442695
    %v372 = vpow.pop %v371
    %v373 = vadd.f32 %v370, 1.0
    %v374 = vadd.f32 %v372, 1.0
    %v375 = vrcp.pop %v373
    %v376 = vmul.f32 1.0, %v375
    %v377 = vrcp.pop %v374
    %v378 = vmul.f32 1.0, %v377
    %v379 = vtanh.pop %v359
    %v380 = vtanh.pop %v364
    %v381 = vmul.f32 %v376, 0.0
    %v382 = vmul.f32 %v378, 0.0
    %385 = vrot.lane.b32.xlu0 %v379, 64
    %v386 = vpop.permute.xlu0 %385
    %387 = vrot.lane.b32.xlu0 %v380, 64
    %v388 = vpop.permute.xlu0 %387
    %v391 = vmul.f32 %v376, %v386
    %v392 = vmul.f32 %v378, %v388
    %395 = vrot.lane.b32.xlu0 %v391, 32
    %v396 = vpop.permute.xlu0 %395
    %397 = vrot.lane.b32.xlu0 %v392, 32
    %v398 = vpop.permute.xlu0 %397
    %v401 = vadd.f32 %v381, %v396
    %v402 = vadd.f32 %v382, %v398
    %v403 = vtanh.pop %v401
    %v404 = vtanh.pop %v402
    %407 = vrot.lane.b32.xlu0 %v403, 64
    %v408 = vpop.permute.xlu0 %407
    %409 = vrot.lane.b32.xlu0 %v404, 64
    %v410 = vpop.permute.xlu0 %409
    %v413 = vmul.f32 %v376, %v408
    %v414 = vmul.f32 %v378, %v410
    %v415 = vpack.c.bf16 %v414, %v413
    %v416 = vld [vmem:[%s3] sm:$0xf]
    %v417 = vld [vmem:[%s3 + $0x4] sm:$0xf]
    %v418 = vld [vmem:[%s3 + $0x8] sm:$0xf]
    %v419 = vld [vmem:[%s3 + $0xc] sm:$0xf]
    %421 = vrot.lane.b32.xlu0 %v415, 32
    %v422 = vpop.permute.xlu0 %421
    %v427 = vunpack.c.l.b16 %v416
    %v428 = vunpack.c.l.b16 %v417
    %v429 = vunpack.c.l.b16 %v418
    %v430 = vunpack.c.l.b16 %v419
    %v431 = vpack.c.b16 %v428, %v427
    %v432 = vpack.c.b16 %v430, %v429
    %vm435 = vcmask 261120
    %v437 = vsel %vm435, %v422, 0
    %439 = vmatprep.subr.bf16.mxu0 0
    %440 = vmatpush1.bf16.msra.mxu0 0
    %441 = vmatprep.subr.bf16.mxu0 0
    %442 = vmatpush1.bf16.msra.mxu0 0
    %443 = vmatprep.subr.bf16.mxu0 0
    %444 = vmatpush1.bf16.msra.mxu0 0
    %445 = vmatprep.subr.bf16.mxu0 0
    %446 = vmatpush1.bf16.msra.mxu0 0
    %447 = vmatprep.subr.bf16.mxu0 0
    %448 = vmatpush1.bf16.msra.mxu0 0
    %449 = vmatprep.subr.bf16.mxu0 0
    %450 = vmatpush1.bf16.msra.mxu0 0
    %451 = vmatprep.subr.bf16.mxu0 0
    %452 = vmatpush1.bf16.msra.mxu0 %v432
    %453 = vmatprep.subr.bf16.mxu0 0
    %454 = vmatpush1.bf16.msra.mxu0 %v431
    %455 = vmatprep.subr.bf16.mxu0 0
    %456 = vmatpush2.bf16.msra.mxu0 0
    %457 = vmatprep.subr.bf16.mxu0 0
    %458 = vmatpush2.bf16.msra.mxu0 0
    %459 = vmatprep.subr.bf16.mxu0 0
    %460 = vmatpush2.bf16.msra.mxu0 0
    %461 = vmatprep.subr.bf16.mxu0 0
    %462 = vmatpush2.bf16.msra.mxu0 0
    %463 = vmatprep.subr.bf16.mxu0 0
    %464 = vmatpush2.bf16.msra.mxu0 0
    %465 = vmatprep.subr.bf16.mxu0 0
    %466 = vmatpush2.bf16.msra.mxu0 0
    %467 = vmatprep.subr.bf16.mxu0 0
    %468 = vmatpush2.bf16.msra.mxu0 0
    %469 = vmatprep.subr.bf16.mxu0 0
    %470 = vmatpush2.bf16.msra.mxu0 0
    %471 = vmatprep.mubr.bf16.mxu0 0
    %472 = vmatmul.mubr.bf16.gmra.mxu0 %v437
    %v473 = vpop.f32.mrf.mxu0
    %v474 = vadd.f32 0.0, %v473
    %v475 = vpop.f32.mrf.mxu0
    %v476 = vpop.f32.mrf.mxu0
    %v477 = vadd.f32 0.0, %v476
    %v478 = vpop.f32.mrf.mxu0
    %479 = vdwg.mxu0
    %v481 = vsel %vm285, %v146, 0
    %v484 = vsel %vm285, %v147, 0
    %486 = vmatprep.subr.mxu0 0.0
    %487 = vmatpush1.msra.mxu0 0.0
    %488 = vmatprep.subr.mxu0 0.0
    %489 = vmatpush1.msra.mxu0 0.0
    %490 = vmatprep.subr.mxu0 0.0
    %491 = vmatpush1.msra.mxu0 0.0
    %492 = vmatprep.subr.mxu0 0.0
    %493 = vmatpush1.msra.mxu0 0.0
    %494 = vmatprep.subr.mxu0 0.0
    %495 = vmatpush1.msra.mxu0 0.0
    %496 = vmatprep.subr.mxu0 0.0
    %497 = vmatpush1.msra.mxu0 0.0
    %498 = vmatprep.subr.mxu0 0.0
    %499 = vmatpush1.msra.mxu0 0.0
    %500 = vmatprep.subr.mxu0 0.0
    %501 = vmatpush1.msra.mxu0 0.0
    %502 = vmatprep.subr.mxu0 0.0
    %503 = vmatpush1.msra.mxu0 0.0
    %504 = vmatprep.subr.mxu0 0.0
    %505 = vmatpush1.msra.mxu0 0.0
    %506 = vmatprep.subr.mxu0 0.0
    %507 = vmatpush1.msra.mxu0 0.0
    %508 = vmatprep.subr.mxu0 0.0
    %509 = vmatpush1.msra.mxu0 0.0
    %510 = vmatprep.subr.mxu0 0.0
    %511 = vmatpush1.msra.mxu0 0.0
    %512 = vmatprep.subr.mxu0 0.0
    %513 = vmatpush1.msra.mxu0 0.0
    %514 = vmatprep.subr.mxu0 0.0
    %515 = vmatpush1.msra.mxu0 %v282
    %516 = vmatprep.subr.mxu0 0.0
    %517 = vmatpush1.msra.mxu0 %v279
    %518 = vmatprep.subr.mxu0 0.0
    %519 = vmatpush2.msra.mxu0 0.0
    %520 = vmatprep.subr.mxu0 0.0
    %521 = vmatpush2.msra.mxu0 0.0
    %522 = vmatprep.subr.mxu0 0.0
    %523 = vmatpush2.msra.mxu0 0.0
    %524 = vmatprep.subr.mxu0 0.0
    %525 = vmatpush2.msra.mxu0 0.0
    %526 = vmatprep.subr.mxu0 0.0
    %527 = vmatpush2.msra.mxu0 0.0
    %528 = vmatprep.subr.mxu0 0.0
    %529 = vmatpush2.msra.mxu0 0.0
    %530 = vmatprep.subr.mxu0 0.0
    %531 = vmatpush2.msra.mxu0 0.0
    %532 = vmatprep.subr.mxu0 0.0
    %533 = vmatpush2.msra.mxu0 0.0
    %534 = vmatprep.subr.mxu0 0.0
    %535 = vmatpush2.msra.mxu0 0.0
    %536 = vmatprep.subr.mxu0 0.0
    %537 = vmatpush2.msra.mxu0 0.0
    %538 = vmatprep.subr.mxu0 0.0
    %539 = vmatpush2.msra.mxu0 0.0
    %540 = vmatprep.subr.mxu0 0.0
    %541 = vmatpush2.msra.mxu0 0.0
    %542 = vmatprep.subr.mxu0 0.0
    %543 = vmatpush2.msra.mxu0 0.0
    %544 = vmatprep.subr.mxu0 0.0
    %545 = vmatpush2.msra.mxu0 0.0
    %546 = vmatprep.subr.mxu0 0.0
    %547 = vmatpush2.msra.mxu0 0.0
    %548 = vmatprep.subr.mxu0 0.0
    %549 = vmatpush2.msra.mxu0 0.0
    %550 = vmatprep.mubr.f32.mxu0 0.0
    %551 = vmatmul.mubr.f32.gmra.mxu0 %v481
    %v552 = vpop.f32.mrf.mxu0
    %v553 = vadd.f32 %v474, %v552
    %v554 = vpop.f32.mrf.mxu0
    %555 = vmatprep.mubr.f32.mxu0 0.0
    %556 = vmatmul.mubr.f32.gmra.mxu0 %v484
    %v557 = vpop.f32.mrf.mxu0
    %v558 = vadd.f32 %v477, %v557
    %v559 = vpop.f32.mrf.mxu0
    %560 = vdwg.mxu0
    %v561 = vxor.u32 %v553, 2147483648
    %v562 = vxor.u32 %v558, 2147483648
    %v563 = vmul.f32 %v561, 1.442695
    %v564 = vpow.pop %v563
    %v565 = vmul.f32 %v562, 1.442695
    %v566 = vpow.pop %v565
    %v567 = vadd.f32 %v564, 1.0
    %v568 = vadd.f32 %v566, 1.0
    %v569 = vrcp.pop %v567
    %v570 = vmul.f32 1.0, %v569
    %v571 = vrcp.pop %v568
    %v572 = vmul.f32 1.0, %v571
    %v573 = vtanh.pop %v553
    %v574 = vtanh.pop %v558
    %v575 = vmul.f32 %v570, %v401
    %v576 = vmul.f32 %v572, %v402
    %579 = vrot.lane.b32.xlu0 %v573, 64
    %v580 = vpop.permute.xlu0 %579
    %581 = vrot.lane.b32.xlu0 %v574, 64
    %v582 = vpop.permute.xlu0 %581
    %v585 = vmul.f32 %v570, %v580
    %v586 = vmul.f32 %v572, %v582
    %589 = vrot.lane.b32.xlu0 %v585, 32
    %v590 = vpop.permute.xlu0 %589
    %591 = vrot.lane.b32.xlu0 %v586, 32
    %v592 = vpop.permute.xlu0 %591
    %v595 = vadd.f32 %v575, %v590
    %v596 = vadd.f32 %v576, %v592
    %v597 = vtanh.pop %v595
    %v598 = vtanh.pop %v596
    %601 = vrot.lane.b32.xlu0 %v597, 64
    %v602 = vpop.permute.xlu0 %601
    %603 = vrot.lane.b32.xlu0 %v598, 64
    %v604 = vpop.permute.xlu0 %603
    %v607 = vmul.f32 %v570, %v602
    %v608 = vmul.f32 %v572, %v604
    %v609 = vpack.c.bf16 %v608, %v607
    %611 = vrot.lane.b32.xlu0 %v609, 32
    %v612 = vpop.permute.xlu0 %611
    %v614 = vsel %vm435, %v612, 0
    %616 = vmatprep.subr.bf16.mxu0 0
    %617 = vmatpush1.bf16.msra.mxu0 0
    %618 = vmatprep.subr.bf16.mxu0 0
    %619 = vmatpush1.bf16.msra.mxu0 0
    %620 = vmatprep.subr.bf16.mxu0 0
    %621 = vmatpush1.bf16.msra.mxu0 0
    %622 = vmatprep.subr.bf16.mxu0 0
    %623 = vmatpush1.bf16.msra.mxu0 0
    %624 = vmatprep.subr.bf16.mxu0 0
    %625 = vmatpush1.bf16.msra.mxu0 0
    %626 = vmatprep.subr.bf16.mxu0 0
    %627 = vmatpush1.bf16.msra.mxu0 0
    %628 = vmatprep.subr.bf16.mxu0 0
    %629 = vmatpush1.bf16.msra.mxu0 %v432
    %630 = vmatprep.subr.bf16.mxu0 0
    %631 = vmatpush1.bf16.msra.mxu0 %v431
    %632 = vmatprep.subr.bf16.mxu0 0
    %633 = vmatpush2.bf16.msra.mxu0 0
    %634 = vmatprep.subr.bf16.mxu0 0
    %635 = vmatpush2.bf16.msra.mxu0 0
    %636 = vmatprep.subr.bf16.mxu0 0
    %637 = vmatpush2.bf16.msra.mxu0 0
    %638 = vmatprep.subr.bf16.mxu0 0
    %639 = vmatpush2.bf16.msra.mxu0 0
    %640 = vmatprep.subr.bf16.mxu0 0
    %641 = vmatpush2.bf16.msra.mxu0 0
    %642 = vmatprep.subr.bf16.mxu0 0
    %643 = vmatpush2.bf16.msra.mxu0 0
    %644 = vmatprep.subr.bf16.mxu0 0
    %645 = vmatpush2.bf16.msra.mxu0 0
    %646 = vmatprep.subr.bf16.mxu0 0
    %647 = vmatpush2.bf16.msra.mxu0 0
    %648 = vmatprep.mubr.bf16.mxu0 0
    %649 = vmatmul.mubr.bf16.gmra.mxu0 %v614
    %v650 = vpop.f32.mrf.mxu0
    %v651 = vadd.f32 0.0, %v650
    %v652 = vpop.f32.mrf.mxu0
    %v653 = vpop.f32.mrf.mxu0
    %v654 = vadd.f32 0.0, %v653
    %v655 = vpop.f32.mrf.mxu0
    %656 = vdwg.mxu0
    %v658 = vsel %vm285, %v158, 0
    %v661 = vsel %vm285, %v159, 0
    %663 = vmatprep.subr.mxu0 0.0
    %664 = vmatpush1.msra.mxu0 0.0
    %665 = vmatprep.subr.mxu0 0.0
    %666 = vmatpush1.msra.mxu0 0.0
    %667 = vmatprep.subr.mxu0 0.0
    %668 = vmatpush1.msra.mxu0 0.0
    %669 = vmatprep.subr.mxu0 0.0
    %670 = vmatpush1.msra.mxu0 0.0
    %671 = vmatprep.subr.mxu0 0.0
    %672 = vmatpush1.msra.mxu0 0.0
    %673 = vmatprep.subr.mxu0 0.0
    %674 = vmatpush1.msra.mxu0 0.0
    %675 = vmatprep.subr.mxu0 0.0
    %676 = vmatpush1.msra.mxu0 0.0
    %677 = vmatprep.subr.mxu0 0.0
    %678 = vmatpush1.msra.mxu0 0.0
    %679 = vmatprep.subr.mxu0 0.0
    %680 = vmatpush1.msra.mxu0 0.0
    %681 = vmatprep.subr.mxu0 0.0
    %682 = vmatpush1.msra.mxu0 0.0
    %683 = vmatprep.subr.mxu0 0.0
    %684 = vmatpush1.msra.mxu0 0.0
    %685 = vmatprep.subr.mxu0 0.0
    %686 = vmatpush1.msra.mxu0 0.0
    %687 = vmatprep.subr.mxu0 0.0
    %688 = vmatpush1.msra.mxu0 0.0
    %689 = vmatprep.subr.mxu0 0.0
    %690 = vmatpush1.msra.mxu0 0.0
    %691 = vmatprep.subr.mxu0 0.0
    %692 = vmatpush1.msra.mxu0 %v282
    %693 = vmatprep.subr.mxu0 0.0
    %694 = vmatpush1.msra.mxu0 %v279
    %695 = vmatprep.subr.mxu0 0.0
    %696 = vmatpush2.msra.mxu0 0.0
    %697 = vmatprep.subr.mxu0 0.0
    %698 = vmatpush2.msra.mxu0 0.0
    %699 = vmatprep.subr.mxu0 0.0
    %700 = vmatpush2.msra.mxu0 0.0
    %701 = vmatprep.subr.mxu0 0.0
    %702 = vmatpush2.msra.mxu0 0.0
    %703 = vmatprep.subr.mxu0 0.0
    %704 = vmatpush2.msra.mxu0 0.0
    %705 = vmatprep.subr.mxu0 0.0
    %706 = vmatpush2.msra.mxu0 0.0
    %707 = vmatprep.subr.mxu0 0.0
    %708 = vmatpush2.msra.mxu0 0.0
    %709 = vmatprep.subr.mxu0 0.0
    %710 = vmatpush2.msra.mxu0 0.0
    %711 = vmatprep.subr.mxu0 0.0
    %712 = vmatpush2.msra.mxu0 0.0
    %713 = vmatprep.subr.mxu0 0.0
    %714 = vmatpush2.msra.mxu0 0.0
    %715 = vmatprep.subr.mxu0 0.0
    %716 = vmatpush2.msra.mxu0 0.0
    %717 = vmatprep.subr.mxu0 0.0
    %718 = vmatpush2.msra.mxu0 0.0
    %719 = vmatprep.subr.mxu0 0.0
    %720 = vmatpush2.msra.mxu0 0.0
    %721 = vmatprep.subr.mxu0 0.0
    %722 = vmatpush2.msra.mxu0 0.0
    %723 = vmatprep.subr.mxu0 0.0
    %724 = vmatpush2.msra.mxu0 0.0
    %725 = vmatprep.subr.mxu0 0.0
    %726 = vmatpush2.msra.mxu0 0.0
    %727 = vmatprep.mubr.f32.mxu0 0.0
    %728 = vmatmul.mubr.f32.gmra.mxu0 %v658
    %v729 = vpop.f32.mrf.mxu0
    %v730 = vadd.f32 %v651, %v729
    %v731 = vpop.f32.mrf.mxu0
    %732 = vmatprep.mubr.f32.mxu0 0.0
    %733 = vmatmul.mubr.f32.gmra.mxu0 %v661
    %v734 = vpop.f32.mrf.mxu0
    %v735 = vadd.f32 %v654, %v734
    %v736 = vpop.f32.mrf.mxu0
    %737 = vdwg.mxu0
    %v738 = vxor.u32 %v730, 2147483648
    %v739 = vxor.u32 %v735, 2147483648
    %v740 = vmul.f32 %v738, 1.442695
    %v741 = vpow.pop %v740
    %v742 = vmul.f32 %v739, 1.442695
    %v743 = vpow.pop %v742
    %v744 = vadd.f32 %v741, 1.0
    %v745 = vadd.f32 %v743, 1.0
    %v746 = vrcp.pop %v744
    %v747 = vmul.f32 1.0, %v746
    %v748 = vrcp.pop %v745
    %v749 = vmul.f32 1.0, %v748
    %v750 = vtanh.pop %v730
    %v751 = vtanh.pop %v735
    %v752 = vmul.f32 %v747, %v595
    %v753 = vmul.f32 %v749, %v596
    %756 = vrot.lane.b32.xlu0 %v750, 64
    %v757 = vpop.permute.xlu0 %756
    %758 = vrot.lane.b32.xlu0 %v751, 64
    %v759 = vpop.permute.xlu0 %758
    %v762 = vmul.f32 %v747, %v757
    %v763 = vmul.f32 %v749, %v759
    %766 = vrot.lane.b32.xlu0 %v762, 32
    %v767 = vpop.permute.xlu0 %766
    %768 = vrot.lane.b32.xlu0 %v763, 32
    %v769 = vpop.permute.xlu0 %768
    %v772 = vadd.f32 %v752, %v767
    %v773 = vadd.f32 %v753, %v769
    %v774 = vtanh.pop %v772
    %v775 = vtanh.pop %v773
    %778 = vrot.lane.b32.xlu0 %v774, 64
    %v779 = vpop.permute.xlu0 %778
    %780 = vrot.lane.b32.xlu0 %v775, 64
    %v781 = vpop.permute.xlu0 %780
    %v784 = vmul.f32 %v747, %v779
    %v785 = vmul.f32 %v749, %v781
    %v786 = vpack.c.bf16 %v785, %v784
    %788 = vrot.lane.b32.xlu0 %v786, 32
    %v789 = vpop.permute.xlu0 %788
    %v791 = vsel %vm435, %v789, 0
    %793 = vmatprep.subr.bf16.mxu0 0
    %794 = vmatpush1.bf16.msra.mxu0 0
    %795 = vmatprep.subr.bf16.mxu0 0
    %796 = vmatpush1.bf16.msra.mxu0 0
    %797 = vmatprep.subr.bf16.mxu0 0
    %798 = vmatpush1.bf16.msra.mxu0 0
    %799 = vmatprep.subr.bf16.mxu0 0
    %800 = vmatpush1.bf16.msra.mxu0 0
    %801 = vmatprep.subr.bf16.mxu0 0
    %802 = vmatpush1.bf16.msra.mxu0 0
    %803 = vmatprep.subr.bf16.mxu0 0
    %804 = vmatpush1.bf16.msra.mxu0 0
    %805 = vmatprep.subr.bf16.mxu0 0
    %806 = vmatpush1.bf16.msra.mxu0 %v432
    %807 = vmatprep.subr.bf16.mxu0 0
    %808 = vmatpush1.bf16.msra.mxu0 %v431
    %809 = vmatprep.subr.bf16.mxu0 0
    %810 = vmatpush2.bf16.msra.mxu0 0
    %811 = vmatprep.subr.bf16.mxu0 0
    %812 = vmatpush2.bf16.msra.mxu0 0
    %813 = vmatprep.subr.bf16.mxu0 0
    %814 = vmatpush2.bf16.msra.mxu0 0
    %815 = vmatprep.subr.bf16.mxu0 0
    %816 = vmatpush2.bf16.msra.mxu0 0
    %817 = vmatprep.subr.bf16.mxu0 0
    %818 = vmatpush2.bf16.msra.mxu0 0
    %819 = vmatprep.subr.bf16.mxu0 0
    %820 = vmatpush2.bf16.msra.mxu0 0
    %821 = vmatprep.subr.bf16.mxu0 0
    %822 = vmatpush2.bf16.msra.mxu0 0
    %823 = vmatprep.subr.bf16.mxu0 0
    %824 = vmatpush2.bf16.msra.mxu0 0
    %825 = vmatprep.mubr.bf16.mxu0 0
    %826 = vmatmul.mubr.bf16.gmra.mxu0 %v791
    %v827 = vpop.f32.mrf.mxu0
    %v828 = vadd.f32 0.0, %v827
    %v829 = vpop.f32.mrf.mxu0
    %v830 = vpop.f32.mrf.mxu0
    %v831 = vadd.f32 0.0, %v830
    %v832 = vpop.f32.mrf.mxu0
    %833 = vdwg.mxu0
    %v835 = vsel %vm285, %v170, 0
    %v838 = vsel %vm285, %v171, 0
    %840 = vmatprep.subr.mxu0 0.0
    %841 = vmatpush1.msra.mxu0 0.0
    %842 = vmatprep.subr.mxu0 0.0
    %843 = vmatpush1.msra.mxu0 0.0
    %844 = vmatprep.subr.mxu0 0.0
    %845 = vmatpush1.msra.mxu0 0.0
    %846 = vmatprep.subr.mxu0 0.0
    %847 = vmatpush1.msra.mxu0 0.0
    %848 = vmatprep.subr.mxu0 0.0
    %849 = vmatpush1.msra.mxu0 0.0
    %850 = vmatprep.subr.mxu0 0.0
    %851 = vmatpush1.msra.mxu0 0.0
    %852 = vmatprep.subr.mxu0 0.0
    %853 = vmatpush1.msra.mxu0 0.0
    %854 = vmatprep.subr.mxu0 0.0
    %855 = vmatpush1.msra.mxu0 0.0
    %856 = vmatprep.subr.mxu0 0.0
    %857 = vmatpush1.msra.mxu0 0.0
    %858 = vmatprep.subr.mxu0 0.0
    %859 = vmatpush1.msra.mxu0 0.0
    %860 = vmatprep.subr.mxu0 0.0
    %861 = vmatpush1.msra.mxu0 0.0
    %862 = vmatprep.subr.mxu0 0.0
    %863 = vmatpush1.msra.mxu0 0.0
    %864 = vmatprep.subr.mxu0 0.0
    %865 = vmatpush1.msra.mxu0 0.0
    %866 = vmatprep.subr.mxu0 0.0
    %867 = vmatpush1.msra.mxu0 0.0
    %868 = vmatprep.subr.mxu0 0.0
    %869 = vmatpush1.msra.mxu0 %v282
    %870 = vmatprep.subr.mxu0 0.0
    %871 = vmatpush1.msra.mxu0 %v279
    %872 = vmatprep.subr.mxu0 0.0
    %873 = vmatpush2.msra.mxu0 0.0
    %874 = vmatprep.subr.mxu0 0.0
    %875 = vmatpush2.msra.mxu0 0.0
    %876 = vmatprep.subr.mxu0 0.0
    %877 = vmatpush2.msra.mxu0 0.0
    %878 = vmatprep.subr.mxu0 0.0
    %879 = vmatpush2.msra.mxu0 0.0
    %880 = vmatprep.subr.mxu0 0.0
    %881 = vmatpush2.msra.mxu0 0.0
    %882 = vmatprep.subr.mxu0 0.0
    %883 = vmatpush2.msra.mxu0 0.0
    %884 = vmatprep.subr.mxu0 0.0
    %885 = vmatpush2.msra.mxu0 0.0
    %886 = vmatprep.subr.mxu0 0.0
    %887 = vmatpush2.msra.mxu0 0.0
    %888 = vmatprep.subr.mxu0 0.0
    %889 = vmatpush2.msra.mxu0 0.0
    %890 = vmatprep.subr.mxu0 0.0
    %891 = vmatpush2.msra.mxu0 0.0
    %892 = vmatprep.subr.mxu0 0.0
    %893 = vmatpush2.msra.mxu0 0.0
    %894 = vmatprep.subr.mxu0 0.0
    %895 = vmatpush2.msra.mxu0 0.0
    %896 = vmatprep.subr.mxu0 0.0
    %897 = vmatpush2.msra.mxu0 0.0
    %898 = vmatprep.subr.mxu0 0.0
    %899 = vmatpush2.msra.mxu0 0.0
    %900 = vmatprep.subr.mxu0 0.0
    %901 = vmatpush2.msra.mxu0 0.0
    %902 = vmatprep.subr.mxu0 0.0
    %903 = vmatpush2.msra.mxu0 0.0
    %904 = vmatprep.mubr.f32.mxu0 0.0
    %905 = vmatmul.mubr.f32.gmra.mxu0 %v835
    %v906 = vpop.f32.mrf.mxu0
    %v907 = vadd.f32 %v828, %v906
    %v908 = vpop.f32.mrf.mxu0
    %909 = vmatprep.mubr.f32.mxu0 0.0
    %910 = vmatmul.mubr.f32.gmra.mxu0 %v838
    %v911 = vpop.f32.mrf.mxu0
    %v912 = vadd.f32 %v831, %v911
    %v913 = vpop.f32.mrf.mxu0
    %914 = vdwg.mxu0
    %v915 = vxor.u32 %v907, 2147483648
    %v916 = vxor.u32 %v912, 2147483648
    %v917 = vmul.f32 %v915, 1.442695
    %v918 = vpow.pop %v917
    %v919 = vmul.f32 %v916, 1.442695
    %v920 = vpow.pop %v919
    %v921 = vadd.f32 %v918, 1.0
    %v922 = vadd.f32 %v920, 1.0
    %v923 = vrcp.pop %v921
    %v924 = vmul.f32 1.0, %v923
    %v925 = vrcp.pop %v922
    %v926 = vmul.f32 1.0, %v925
    %v927 = vtanh.pop %v907
    %v928 = vtanh.pop %v912
    %v929 = vmul.f32 %v924, %v772
    %v930 = vmul.f32 %v926, %v773
    %933 = vrot.lane.b32.xlu0 %v927, 64
    %v934 = vpop.permute.xlu0 %933
    %935 = vrot.lane.b32.xlu0 %v928, 64
    %v936 = vpop.permute.xlu0 %935
    %v939 = vmul.f32 %v924, %v934
    %v940 = vmul.f32 %v926, %v936
    %943 = vrot.lane.b32.xlu0 %v939, 32
    %v944 = vpop.permute.xlu0 %943
    %945 = vrot.lane.b32.xlu0 %v940, 32
    %v946 = vpop.permute.xlu0 %945
    %v949 = vadd.f32 %v929, %v944
    %v950 = vadd.f32 %v930, %v946
    %v951 = vtanh.pop %v949
    %v952 = vtanh.pop %v950
    %955 = vrot.lane.b32.xlu0 %v951, 64
    %v956 = vpop.permute.xlu0 %955
    %957 = vrot.lane.b32.xlu0 %v952, 64
    %v958 = vpop.permute.xlu0 %957
    %v961 = vmul.f32 %v924, %v956
    %v962 = vmul.f32 %v926, %v958
    %v963 = vld [vmem:[#allocation4] sm:$0xf]
    %v964 = vld [vmem:[#allocation4 + $0x4] sm:$0xf]
    %v965 = vld [vmem:[#allocation4 + $0x8] sm:$0xf]
    %v966 = vld [vmem:[#allocation4 + $0xc] sm:$0xf]
    %v967 = vld [vmem:[#allocation4 + $0x10] sm:$0xf]
    %v968 = vld [vmem:[#allocation4 + $0x14] sm:$0xf]
    %v969 = vld [vmem:[#allocation4 + $0x18] sm:$0xf]
    %v970 = vld [vmem:[#allocation4 + $0x1c] sm:$0xf]
    %v971 = vld [vmem:[#allocation4 + $0x20] sm:$0xf]
    %v972 = vld [vmem:[#allocation4 + $0x24] sm:$0xf]
    %v973 = vld [vmem:[#allocation4 + $0x28] sm:$0xf]
    %v974 = vld [vmem:[#allocation4 + $0x2c] sm:$0xf]
    %v975 = vld [vmem:[#allocation4 + $0x30] sm:$0xf]
    %v976 = vld [vmem:[#allocation4 + $0x34] sm:$0xf]
    %v977 = vld [vmem:[#allocation4 + $0x38] sm:$0xf]
    %v978 = vld [vmem:[#allocation4 + $0x3c] sm:$0xf]
    %v979 = vpack.c.bf16 %v962, %v961
    %v980 = vld [vmem:[#allocation6] sm:$0xf]
    %v981 = vld [vmem:[#allocation6 + $0x4] sm:$0xf]
    %v982 = vld [vmem:[#allocation6 + $0x8] sm:$0xf]
    %v983 = vld [vmem:[#allocation6 + $0xc] sm:$0xf]
    %985 = vrot.lane.b32.xlu0 %v979, 32
    %v986 = vpop.permute.xlu0 %985
    %v991 = vunpack.c.l.b16 %v980
    %v992 = vunpack.c.l.b16 %v981
    %v993 = vunpack.c.l.b16 %v982
    %v994 = vunpack.c.l.b16 %v983
    %v995 = vpack.c.b16 %v992, %v991
    %v996 = vpack.c.b16 %v994, %v993
    %v1000 = vsel %vm435, %v986, 0
    %1002 = vmatprep.subr.bf16.mxu0 0
    %1003 = vmatpush1.bf16.msra.mxu0 0
    %1004 = vmatprep.subr.bf16.mxu0 0
    %1005 = vmatpush1.bf16.msra.mxu0 0
    %1006 = vmatprep.subr.bf16.mxu0 0
    %1007 = vmatpush1.bf16.msra.mxu0 0
    %1008 = vmatprep.subr.bf16.mxu0 0
    %1009 = vmatpush1.bf16.msra.mxu0 0
    %1010 = vmatprep.subr.bf16.mxu0 0
    %1011 = vmatpush1.bf16.msra.mxu0 0
    %1012 = vmatprep.subr.bf16.mxu0 0
    %1013 = vmatpush1.bf16.msra.mxu0 0
    %1014 = vmatprep.subr.bf16.mxu0 0
    %1015 = vmatpush1.bf16.msra.mxu0 %v996
    %1016 = vmatprep.subr.bf16.mxu0 0
    %1017 = vmatpush1.bf16.msra.mxu0 %v995
    %1018 = vmatprep.subr.bf16.mxu0 0
    %1019 = vmatpush2.bf16.msra.mxu0 0
    %1020 = vmatprep.subr.bf16.mxu0 0
    %1021 = vmatpush2.bf16.msra.mxu0 0
    %1022 = vmatprep.subr.bf16.mxu0 0
    %1023 = vmatpush2.bf16.msra.mxu0 0
    %1024 = vmatprep.subr.bf16.mxu0 0
    %1025 = vmatpush2.bf16.msra.mxu0 0
    %1026 = vmatprep.subr.bf16.mxu0 0
    %1027 = vmatpush2.bf16.msra.mxu0 0
    %1028 = vmatprep.subr.bf16.mxu0 0
    %1029 = vmatpush2.bf16.msra.mxu0 0
    %1030 = vmatprep.subr.bf16.mxu0 0
    %1031 = vmatpush2.bf16.msra.mxu0 0
    %1032 = vmatprep.subr.bf16.mxu0 0
    %1033 = vmatpush2.bf16.msra.mxu0 0
    %1034 = vmatprep.mubr.bf16.mxu0 0
    %1035 = vmatmul.mubr.bf16.gmra.mxu0 %v1000
    %v1036 = vpop.f32.mrf.mxu0
    %v1037 = vadd.f32 0.0, %v1036
    %v1038 = vpop.f32.mrf.mxu0
    %v1039 = vpop.f32.mrf.mxu0
    %v1040 = vadd.f32 0.0, %v1039
    %v1041 = vpop.f32.mrf.mxu0
    %1042 = vdwg.mxu0
    %v1059 = vunpack.c.l.b16 %v963
    %v1060 = vunpack.c.l.b16 %v964
    %v1061 = vunpack.c.l.b16 %v965
    %v1062 = vunpack.c.l.b16 %v966
    %v1063 = vunpack.c.l.b16 %v967
    %v1064 = vunpack.c.l.b16 %v968
    %v1065 = vunpack.c.l.b16 %v969
    %v1066 = vunpack.c.l.b16 %v970
    %v1067 = vunpack.c.l.b16 %v971
    %v1068 = vunpack.c.l.b16 %v972
    %v1069 = vunpack.c.l.b16 %v973
    %v1070 = vunpack.c.l.b16 %v974
    %v1071 = vunpack.c.l.b16 %v975
    %v1072 = vunpack.c.l.b16 %v976
    %v1073 = vunpack.c.l.b16 %v977
    %v1074 = vunpack.c.l.b16 %v978
    %v1075 = vpack.c.b16 %v1060, %v1059
    %v1076 = vpack.c.b16 %v1062, %v1061
    %v1077 = vpack.c.b16 %v1064, %v1063
    %v1078 = vpack.c.b16 %v1066, %v1065
    %v1079 = vpack.c.b16 %v1068, %v1067
    %v1080 = vpack.c.b16 %v1070, %v1069
    %v1081 = vpack.c.b16 %v1072, %v1071
    %v1082 = vpack.c.b16 %v1074, %v1073
    %1091 = vmatprep.subr.bf16.mxu0 0
    %1092 = vmatpush1.bf16.msra.mxu0 %v1082
    %1093 = vmatprep.subr.bf16.mxu0 0
    %1094 = vmatpush1.bf16.msra.mxu0 %v1081
    %1095 = vmatprep.subr.bf16.mxu0 0
    %1096 = vmatpush1.bf16.msra.mxu0 %v1080
    %1097 = vmatprep.subr.bf16.mxu0 0
    %1098 = vmatpush1.bf16.msra.mxu0 %v1079
    %1099 = vmatprep.subr.bf16.mxu0 0
    %1100 = vmatpush1.bf16.msra.mxu0 %v1078
    %1101 = vmatprep.subr.bf16.mxu0 0
    %1102 = vmatpush1.bf16.msra.mxu0 %v1077
    %1103 = vmatprep.subr.bf16.mxu0 0
    %1104 = vmatpush1.bf16.msra.mxu0 %v1076
    %1105 = vmatprep.subr.bf16.mxu0 0
    %1106 = vmatpush1.bf16.msra.mxu0 %v1075
    %1107 = vmatprep.subr.bf16.mxu0 0
    %1108 = vmatpush2.bf16.msra.mxu0 0
    %1109 = vmatprep.subr.bf16.mxu0 0
    %1110 = vmatpush2.bf16.msra.mxu0 0
    %1111 = vmatprep.subr.bf16.mxu0 0
    %1112 = vmatpush2.bf16.msra.mxu0 0
    %1113 = vmatprep.subr.bf16.mxu0 0
    %1114 = vmatpush2.bf16.msra.mxu0 0
    %1115 = vmatprep.subr.bf16.mxu0 0
    %1116 = vmatpush2.bf16.msra.mxu0 0
    %1117 = vmatprep.subr.bf16.mxu0 0
    %1118 = vmatpush2.bf16.msra.mxu0 0
    %1119 = vmatprep.subr.bf16.mxu0 0
    %1120 = vmatpush2.bf16.msra.mxu0 0
    %1121 = vmatprep.subr.bf16.mxu0 0
    %1122 = vmatpush2.bf16.msra.mxu0 0
    %1123 = vmatprep.mubr.bf16.mxu0 0
    %1124 = vmatmul.mubr.bf16.gmra.mxu0 %v172
    %v1125 = vpop.f32.mrf.mxu0
    %v1126 = vadd.f32 %v1037, %v1125
    %v1127 = vpop.f32.mrf.mxu0
    %v1128 = vpop.f32.mrf.mxu0
    %v1129 = vadd.f32 %v1040, %v1128
    %v1130 = vpop.f32.mrf.mxu0
    %1131 = vdwg.mxu0
    %v1132 = vld [vmem:[#allocation7] sm:$0x1]
    %v1134 = vlaneseq
    %v1135 = vshrl.u32 %v1134, 7
    %v1136 = vsub.s32 0, %v1135
    %v1137 = vrot.slane %v1132, %v1136
    %v1139 = vadd.f32 %v1126, %v1137
    %v1140 = vadd.f32 %v1129, %v1137
    %v1141 = vpack.c.bf16 %v1140, %v1139
    %s1142 = scalar_lea.vmem [#allocation2], 64
    %v1143 = vld [vmem:[%s1142] sm:$0xf]
    %v1144 = vld [vmem:[%s1142 + $0x4] sm:$0xf]
    %v1145 = vld [vmem:[%s1142 + $0x8] sm:$0xf]
    %v1146 = vld [vmem:[%s1142 + $0xc] sm:$0xf]
    %v1147 = vld [vmem:[%s1142 + $0x10] sm:$0xf]
    %v1148 = vld [vmem:[%s1142 + $0x14] sm:$0xf]
    %v1149 = vld [vmem:[%s1142 + $0x18] sm:$0xf]
    %v1150 = vld [vmem:[%s1142 + $0x1c] sm:$0xf]
    %v1151 = vld [vmem:[%s1142 + $0x20] sm:$0xf]
    %v1152 = vld [vmem:[%s1142 + $0x24] sm:$0xf]
    %v1153 = vld [vmem:[%s1142 + $0x28] sm:$0xf]
    %v1154 = vld [vmem:[%s1142 + $0x2c] sm:$0xf]
    %v1155 = vld [vmem:[%s1142 + $0x30] sm:$0xf]
    %v1156 = vld [vmem:[%s1142 + $0x34] sm:$0xf]
    %v1157 = vld [vmem:[%s1142 + $0x38] sm:$0xf]
    %v1158 = vld [vmem:[%s1142 + $0x3c] sm:$0xf]
    %s1159 = scalar_lea.vmem %s4, 1
    %v1160 = vld [vmem:[%s1159] sm:$0x1]
    %v1162 = vlaneseq
    %v1163 = vshrl.u32 %v1162, 7
    %v1164 = vsub.s32 0, %v1163
    %v1165 = vrot.slane %v1160, %v1164
    %v1183 = vunpack.c.l.b16 %v1143
    %v1184 = vunpack.c.l.b16 %v1144
    %v1185 = vunpack.c.l.b16 %v1145
    %v1186 = vunpack.c.l.b16 %v1146
    %v1187 = vunpack.c.l.b16 %v1147
    %v1188 = vunpack.c.l.b16 %v1148
    %v1189 = vunpack.c.l.b16 %v1149
    %v1190 = vunpack.c.l.b16 %v1150
    %v1191 = vunpack.c.l.b16 %v1151
    %v1192 = vunpack.c.l.b16 %v1152
    %v1193 = vunpack.c.l.b16 %v1153
    %v1194 = vunpack.c.l.b16 %v1154
    %v1195 = vunpack.c.l.b16 %v1155
    %v1196 = vunpack.c.l.b16 %v1156
    %v1197 = vunpack.c.l.b16 %v1157
    %v1198 = vunpack.c.l.b16 %v1158
    %v1199 = vpack.c.b16 %v1184, %v1183
    %v1200 = vpack.c.b16 %v1186, %v1185
    %v1201 = vpack.c.b16 %v1188, %v1187
    %v1202 = vpack.c.b16 %v1190, %v1189
    %v1203 = vpack.c.b16 %v1192, %v1191
    %v1204 = vpack.c.b16 %v1194, %v1193
    %v1205 = vpack.c.b16 %v1196, %v1195
    %v1206 = vpack.c.b16 %v1198, %v1197
    %1215 = vmatprep.subr.bf16.mxu0 0
    %1216 = vmatpush1.bf16.msra.mxu0 %v1206
    %1217 = vmatprep.subr.bf16.mxu0 0
    %1218 = vmatpush1.bf16.msra.mxu0 %v1205
    %1219 = vmatprep.subr.bf16.mxu0 0
    %1220 = vmatpush1.bf16.msra.mxu0 %v1204
    %1221 = vmatprep.subr.bf16.mxu0 0
    %1222 = vmatpush1.bf16.msra.mxu0 %v1203
    %1223 = vmatprep.subr.bf16.mxu0 0
    %1224 = vmatpush1.bf16.msra.mxu0 %v1202
    %1225 = vmatprep.subr.bf16.mxu0 0
    %1226 = vmatpush1.bf16.msra.mxu0 %v1201
    %1227 = vmatprep.subr.bf16.mxu0 0
    %1228 = vmatpush1.bf16.msra.mxu0 %v1200
    %1229 = vmatprep.subr.bf16.mxu0 0
    %1230 = vmatpush1.bf16.msra.mxu0 %v1199
    %1231 = vmatprep.subr.bf16.mxu0 0
    %1232 = vmatpush2.bf16.msra.mxu0 0
    %1233 = vmatprep.subr.bf16.mxu0 0
    %1234 = vmatpush2.bf16.msra.mxu0 0
    %1235 = vmatprep.subr.bf16.mxu0 0
    %1236 = vmatpush2.bf16.msra.mxu0 0
    %1237 = vmatprep.subr.bf16.mxu0 0
    %1238 = vmatpush2.bf16.msra.mxu0 0
    %1239 = vmatprep.subr.bf16.mxu0 0
    %1240 = vmatpush2.bf16.msra.mxu0 0
    %1241 = vmatprep.subr.bf16.mxu0 0
    %1242 = vmatpush2.bf16.msra.mxu0 0
    %1243 = vmatprep.subr.bf16.mxu0 0
    %1244 = vmatpush2.bf16.msra.mxu0 0
    %1245 = vmatprep.subr.bf16.mxu0 0
    %1246 = vmatpush2.bf16.msra.mxu0 0
    %1247 = vmatprep.mubr.bf16.mxu0 0
    %1248 = vmatmul.mubr.bf16.gmra.mxu0 %v1141
    %v1249 = vpop.f32.mrf.mxu0
    %v1250 = vadd.f32 %v1165, %v1249
    %v1251 = vpop.f32.mrf.mxu0
    %v1252 = vpop.f32.mrf.mxu0
    %v1253 = vadd.f32 %v1165, %v1252
    %v1254 = vpop.f32.mrf.mxu0
    %1255 = vdwg.mxu0
    %1256 = vmatprep.subr.mxu0 0.0
    %1257 = vmatpush1.msra.mxu0 0.0
    %1258 = vmatprep.subr.mxu0 0.0
    %1259 = vmatpush1.msra.mxu0 0.0
    %1260 = vmatprep.subr.mxu0 0.0
    %1261 = vmatpush1.msra.mxu0 0.0
    %1262 = vmatprep.subr.mxu0 0.0
    %1263 = vmatpush1.msra.mxu0 0.0
    %1264 = vmatprep.subr.mxu0 0.0
    %1265 = vmatpush1.msra.mxu0 0.0
    %1266 = vmatprep.subr.mxu0 0.0
    %1267 = vmatpush1.msra.mxu0 0.0
    %1268 = vmatprep.subr.mxu0 0.0
    %1269 = vmatpush1.msra.mxu0 0.0
    %1270 = vmatprep.subr.mxu0 0.0
    %1271 = vmatpush1.msra.mxu0 0.0
    %1272 = vmatprep.subr.mxu0 0.0
    %1273 = vmatpush1.msra.mxu0 0.0
    %1274 = vmatprep.subr.mxu0 0.0
    %1275 = vmatpush1.msra.mxu0 0.0
    %1276 = vmatprep.subr.mxu0 0.0
    %1277 = vmatpush1.msra.mxu0 0.0
    %1278 = vmatprep.subr.mxu0 0.0
    %1279 = vmatpush1.msra.mxu0 0.0
    %1280 = vmatprep.subr.mxu0 0.0
    %1281 = vmatpush1.msra.mxu0 0.0
    %1282 = vmatprep.subr.mxu0 0.0
    %1283 = vmatpush1.msra.mxu0 0.0
    %1284 = vmatprep.subr.mxu0 0.0
    %1285 = vmatpush1.msra.mxu0 %v1253
    %1286 = vmatprep.subr.mxu0 0.0
    %1287 = vmatpush1.msra.mxu0 %v1250
    %1288 = vmatprep.subr.mxu0 0.0
    %1289 = vmatpush2.msra.mxu0 0.0
    %1290 = vmatprep.subr.mxu0 0.0
    %1291 = vmatpush2.msra.mxu0 0.0
    %1292 = vmatprep.subr.mxu0 0.0
    %1293 = vmatpush2.msra.mxu0 0.0
    %1294 = vmatprep.subr.mxu0 0.0
    %1295 = vmatpush2.msra.mxu0 0.0
    %1296 = vmatprep.subr.mxu0 0.0
    %1297 = vmatpush2.msra.mxu0 0.0
    %1298 = vmatprep.subr.mxu0 0.0
    %1299 = vmatpush2.msra.mxu0 0.0
    %1300 = vmatprep.subr.mxu0 0.0
    %1301 = vmatpush2.msra.mxu0 0.0
    %1302 = vmatprep.subr.mxu0 0.0
    %1303 = vmatpush2.msra.mxu0 0.0
    %1304 = vmatprep.subr.mxu0 0.0
    %1305 = vmatpush2.msra.mxu0 0.0
    %1306 = vmatprep.subr.mxu0 0.0
    %1307 = vmatpush2.msra.mxu0 0.0
    %1308 = vmatprep.subr.mxu0 0.0
    %1309 = vmatpush2.msra.mxu0 0.0
    %1310 = vmatprep.subr.mxu0 0.0
    %1311 = vmatpush2.msra.mxu0 0.0
    %1312 = vmatprep.subr.mxu0 0.0
    %1313 = vmatpush2.msra.mxu0 0.0
    %1314 = vmatprep.subr.mxu0 0.0
    %1315 = vmatpush2.msra.mxu0 0.0
    %1316 = vmatprep.subr.mxu0 0.0
    %1317 = vmatpush2.msra.mxu0 0.0
    %1318 = vmatprep.subr.mxu0 0.0
    %1319 = vmatpush2.msra.mxu0 0.0
    %1320 = vmatprep.mubr.f32.mxu0 0.0
    %1321 = vmatmul.mubr.f32.gmra.mxu0 %v287
    %v1322 = vpop.f32.mrf.mxu0
    %v1323 = vadd.f32 0.0, %v1322
    %v1324 = vpop.f32.mrf.mxu0
    %1325 = vmatprep.mubr.f32.mxu0 0.0
    %1326 = vmatmul.mubr.f32.gmra.mxu0 %v290
    %v1327 = vpop.f32.mrf.mxu0
    %v1328 = vadd.f32 0.0, %v1327
    %v1329 = vpop.f32.mrf.mxu0
    %1330 = vdwg.mxu0
    %v1331 = vxor.u32 %v1323, 2147483648
    %v1332 = vxor.u32 %v1328, 2147483648
    %v1333 = vmul.f32 %v1331, 1.442695
    %v1334 = vpow.pop %v1333
    %v1335 = vmul.f32 %v1332, 1.442695
    %v1336 = vpow.pop %v1335
    %v1337 = vadd.f32 %v1334, 1.0
    %v1338 = vadd.f32 %v1336, 1.0
    %v1339 = vrcp.pop %v1337
    %v1340 = vmul.f32 1.0, %v1339
    %v1341 = vrcp.pop %v1338
    %v1342 = vmul.f32 1.0, %v1341
    %v1343 = vtanh.pop %v1323
    %v1344 = vtanh.pop %v1328
    %v1345 = vmul.f32 %v1340, 0.0
    %v1346 = vmul.f32 %v1342, 0.0
    %1349 = vrot.lane.b32.xlu0 %v1343, 64
    %v1350 = vpop.permute.xlu0 %1349
    %1351 = vrot.lane.b32.xlu0 %v1344, 64
    %v1352 = vpop.permute.xlu0 %1351
    %v1355 = vmul.f32 %v1340, %v1350
    %v1356 = vmul.f32 %v1342, %v1352
    %1359 = vrot.lane.b32.xlu0 %v1355, 32
    %v1360 = vpop.permute.xlu0 %1359
    %1361 = vrot.lane.b32.xlu0 %v1356, 32
    %v1362 = vpop.permute.xlu0 %1361
    %v1365 = vadd.f32 %v1345, %v1360
    %v1366 = vadd.f32 %v1346, %v1362
    %v1367 = vtanh.pop %v1365
    %v1368 = vtanh.pop %v1366
    %1371 = vrot.lane.b32.xlu0 %v1367, 64
    %v1372 = vpop.permute.xlu0 %1371
    %1373 = vrot.lane.b32.xlu0 %v1368, 64
    %v1374 = vpop.permute.xlu0 %1373
    %v1377 = vmul.f32 %v1340, %v1372
    %v1378 = vmul.f32 %v1342, %v1374
    %v1379 = vpack.c.bf16 %v1378, %v1377
    %s1380 = scalar_lea.vmem %s3, 16
    %v1381 = vld [vmem:[%s1380] sm:$0xf]
    %v1382 = vld [vmem:[%s1380 + $0x4] sm:$0xf]
    %v1383 = vld [vmem:[%s1380 + $0x8] sm:$0xf]
    %v1384 = vld [vmem:[%s1380 + $0xc] sm:$0xf]
    %1386 = vrot.lane.b32.xlu0 %v1379, 32
    %v1387 = vpop.permute.xlu0 %1386
    %v1392 = vunpack.c.l.b16 %v1381
    %v1393 = vunpack.c.l.b16 %v1382
    %v1394 = vunpack.c.l.b16 %v1383
    %v1395 = vunpack.c.l.b16 %v1384
    %v1396 = vpack.c.b16 %v1393, %v1392
    %v1397 = vpack.c.b16 %v1395, %v1394
    %v1401 = vsel %vm435, %v1387, 0
    %1403 = vmatprep.subr.bf16.mxu0 0
    %1404 = vmatpush1.bf16.msra.mxu0 0
    %1405 = vmatprep.subr.bf16.mxu0 0
    %1406 = vmatpush1.bf16.msra.mxu0 0
    %1407 = vmatprep.subr.bf16.mxu0 0
    %1408 = vmatpush1.bf16.msra.mxu0 0
    %1409 = vmatprep.subr.bf16.mxu0 0
    %1410 = vmatpush1.bf16.msra.mxu0 0
    %1411 = vmatprep.subr.bf16.mxu0 0
    %1412 = vmatpush1.bf16.msra.mxu0 0
    %1413 = vmatprep.subr.bf16.mxu0 0
    %1414 = vmatpush1.bf16.msra.mxu0 0
    %1415 = vmatprep.subr.bf16.mxu0 0
    %1416 = vmatpush1.bf16.msra.mxu0 %v1397
    %1417 = vmatprep.subr.bf16.mxu0 0
    %1418 = vmatpush1.bf16.msra.mxu0 %v1396
    %1419 = vmatprep.subr.bf16.mxu0 0
    %1420 = vmatpush2.bf16.msra.mxu0 0
    %1421 = vmatprep.subr.bf16.mxu0 0
    %1422 = vmatpush2.bf16.msra.mxu0 0
    %1423 = vmatprep.subr.bf16.mxu0 0
    %1424 = vmatpush2.bf16.msra.mxu0 0
    %1425 = vmatprep.subr.bf16.mxu0 0
    %1426 = vmatpush2.bf16.msra.mxu0 0
    %1427 = vmatprep.subr.bf16.mxu0 0
    %1428 = vmatpush2.bf16.msra.mxu0 0
    %1429 = vmatprep.subr.bf16.mxu0 0
    %1430 = vmatpush2.bf16.msra.mxu0 0
    %1431 = vmatprep.subr.bf16.mxu0 0
    %1432 = vmatpush2.bf16.msra.mxu0 0
    %1433 = vmatprep.subr.bf16.mxu0 0
    %1434 = vmatpush2.bf16.msra.mxu0 0
    %1435 = vmatprep.mubr.bf16.mxu0 0
    %1436 = vmatmul.mubr.bf16.gmra.mxu0 %v1401
    %v1437 = vpop.f32.mrf.mxu0
    %v1438 = vadd.f32 0.0, %v1437
    %v1439 = vpop.f32.mrf.mxu0
    %v1440 = vpop.f32.mrf.mxu0
    %v1441 = vadd.f32 0.0, %v1440
    %v1442 = vpop.f32.mrf.mxu0
    %1443 = vdwg.mxu0
    %1444 = vmatprep.subr.mxu0 0.0
    %1445 = vmatpush1.msra.mxu0 0.0
    %1446 = vmatprep.subr.mxu0 0.0
    %1447 = vmatpush1.msra.mxu0 0.0
    %1448 = vmatprep.subr.mxu0 0.0
    %1449 = vmatpush1.msra.mxu0 0.0
    %1450 = vmatprep.subr.mxu0 0.0
    %1451 = vmatpush1.msra.mxu0 0.0
    %1452 = vmatprep.subr.mxu0 0.0
    %1453 = vmatpush1.msra.mxu0 0.0
    %1454 = vmatprep.subr.mxu0 0.0
    %1455 = vmatpush1.msra.mxu0 0.0
    %1456 = vmatprep.subr.mxu0 0.0
    %1457 = vmatpush1.msra.mxu0 0.0
    %1458 = vmatprep.subr.mxu0 0.0
    %1459 = vmatpush1.msra.mxu0 0.0
    %1460 = vmatprep.subr.mxu0 0.0
    %1461 = vmatpush1.msra.mxu0 0.0
    %1462 = vmatprep.subr.mxu0 0.0
    %1463 = vmatpush1.msra.mxu0 0.0
    %1464 = vmatprep.subr.mxu0 0.0
    %1465 = vmatpush1.msra.mxu0 0.0
    %1466 = vmatprep.subr.mxu0 0.0
    %1467 = vmatpush1.msra.mxu0 0.0
    %1468 = vmatprep.subr.mxu0 0.0
    %1469 = vmatpush1.msra.mxu0 0.0
    %1470 = vmatprep.subr.mxu0 0.0
    %1471 = vmatpush1.msra.mxu0 0.0
    %1472 = vmatprep.subr.mxu0 0.0
    %1473 = vmatpush1.msra.mxu0 %v1253
    %1474 = vmatprep.subr.mxu0 0.0
    %1475 = vmatpush1.msra.mxu0 %v1250
    %1476 = vmatprep.subr.mxu0 0.0
    %1477 = vmatpush2.msra.mxu0 0.0
    %1478 = vmatprep.subr.mxu0 0.0
    %1479 = vmatpush2.msra.mxu0 0.0
    %1480 = vmatprep.subr.mxu0 0.0
    %1481 = vmatpush2.msra.mxu0 0.0
    %1482 = vmatprep.subr.mxu0 0.0
    %1483 = vmatpush2.msra.mxu0 0.0
    %1484 = vmatprep.subr.mxu0 0.0
    %1485 = vmatpush2.msra.mxu0 0.0
    %1486 = vmatprep.subr.mxu0 0.0
    %1487 = vmatpush2.msra.mxu0 0.0
    %1488 = vmatprep.subr.mxu0 0.0
    %1489 = vmatpush2.msra.mxu0 0.0
    %1490 = vmatprep.subr.mxu0 0.0
    %1491 = vmatpush2.msra.mxu0 0.0
    %1492 = vmatprep.subr.mxu0 0.0
    %1493 = vmatpush2.msra.mxu0 0.0
    %1494 = vmatprep.subr.mxu0 0.0
    %1495 = vmatpush2.msra.mxu0 0.0
    %1496 = vmatprep.subr.mxu0 0.0
    %1497 = vmatpush2.msra.mxu0 0.0
    %1498 = vmatprep.subr.mxu0 0.0
    %1499 = vmatpush2.msra.mxu0 0.0
    %1500 = vmatprep.subr.mxu0 0.0
    %1501 = vmatpush2.msra.mxu0 0.0
    %1502 = vmatprep.subr.mxu0 0.0
    %1503 = vmatpush2.msra.mxu0 0.0
    %1504 = vmatprep.subr.mxu0 0.0
    %1505 = vmatpush2.msra.mxu0 0.0
    %1506 = vmatprep.subr.mxu0 0.0
    %1507 = vmatpush2.msra.mxu0 0.0
    %1508 = vmatprep.mubr.f32.mxu0 0.0
    %1509 = vmatmul.mubr.f32.gmra.mxu0 %v481
    %v1510 = vpop.f32.mrf.mxu0
    %v1511 = vadd.f32 %v1438, %v1510
    %v1512 = vpop.f32.mrf.mxu0
    %1513 = vmatprep.mubr.f32.mxu0 0.0
    %1514 = vmatmul.mubr.f32.gmra.mxu0 %v484
    %v1515 = vpop.f32.mrf.mxu0
    %v1516 = vadd.f32 %v1441, %v1515
    %v1517 = vpop.f32.mrf.mxu0
    %1518 = vdwg.mxu0
    %v1519 = vxor.u32 %v1511, 2147483648
    %v1520 = vxor.u32 %v1516, 2147483648
    %v1521 = vmul.f32 %v1519, 1.442695
    %v1522 = vpow.pop %v1521
    %v1523 = vmul.f32 %v1520, 1.442695
    %v1524 = vpow.pop %v1523
    %v1525 = vadd.f32 %v1522, 1.0
    %v1526 = vadd.f32 %v1524, 1.0
    %v1527 = vrcp.pop %v1525
    %v1528 = vmul.f32 1.0, %v1527
    %v1529 = vrcp.pop %v1526
    %v1530 = vmul.f32 1.0, %v1529
    %v1531 = vtanh.pop %v1511
    %v1532 = vtanh.pop %v1516
    %v1533 = vmul.f32 %v1528, %v1365
    %v1534 = vmul.f32 %v1530, %v1366
    %1537 = vrot.lane.b32.xlu0 %v1531, 64
    %v1538 = vpop.permute.xlu0 %1537
    %1539 = vrot.lane.b32.xlu0 %v1532, 64
    %v1540 = vpop.permute.xlu0 %1539
    %v1543 = vmul.f32 %v1528, %v1538
    %v1544 = vmul.f32 %v1530, %v1540
    %1547 = vrot.lane.b32.xlu0 %v1543, 32
    %v1548 = vpop.permute.xlu0 %1547
    %1549 = vrot.lane.b32.xlu0 %v1544, 32
    %v1550 = vpop.permute.xlu0 %1549
    %v1553 = vadd.f32 %v1533, %v1548
    %v1554 = vadd.f32 %v1534, %v1550
    %v1555 = vtanh.pop %v1553
    %v1556 = vtanh.pop %v1554
    %1559 = vrot.lane.b32.xlu0 %v1555, 64
    %v1560 = vpop.permute.xlu0 %1559
    %1561 = vrot.lane.b32.xlu0 %v1556, 64
    %v1562 = vpop.permute.xlu0 %1561
    %v1565 = vmul.f32 %v1528, %v1560
    %v1566 = vmul.f32 %v1530, %v1562
    %v1567 = vpack.c.bf16 %v1566, %v1565
    %1569 = vrot.lane.b32.xlu0 %v1567, 32
    %v1570 = vpop.permute.xlu0 %1569
    %v1572 = vsel %vm435, %v1570, 0
    %1574 = vmatprep.subr.bf16.mxu0 0
    %1575 = vmatpush1.bf16.msra.mxu0 0
    %1576 = vmatprep.subr.bf16.mxu0 0
    %1577 = vmatpush1.bf16.msra.mxu0 0
    %1578 = vmatprep.subr.bf16.mxu0 0
    %1579 = vmatpush1.bf16.msra.mxu0 0
    %1580 = vmatprep.subr.bf16.mxu0 0
    %1581 = vmatpush1.bf16.msra.mxu0 0
    %1582 = vmatprep.subr.bf16.mxu0 0
    %1583 = vmatpush1.bf16.msra.mxu0 0
    %1584 = vmatprep.subr.bf16.mxu0 0
    %1585 = vmatpush1.bf16.msra.mxu0 0
    %1586 = vmatprep.subr.bf16.mxu0 0
    %1587 = vmatpush1.bf16.msra.mxu0 %v1397
    %1588 = vmatprep.subr.bf16.mxu0 0
    %1589 = vmatpush1.bf16.msra.mxu0 %v1396
    %1590 = vmatprep.subr.bf16.mxu0 0
    %1591 = vmatpush2.bf16.msra.mxu0 0
    %1592 = vmatprep.subr.bf16.mxu0 0
    %1593 = vmatpush2.bf16.msra.mxu0 0
    %1594 = vmatprep.subr.bf16.mxu0 0
    %1595 = vmatpush2.bf16.msra.mxu0 0
    %1596 = vmatprep.subr.bf16.mxu0 0
    %1597 = vmatpush2.bf16.msra.mxu0 0
    %1598 = vmatprep.subr.bf16.mxu0 0
    %1599 = vmatpush2.bf16.msra.mxu0 0
    %1600 = vmatprep.subr.bf16.mxu0 0
    %1601 = vmatpush2.bf16.msra.mxu0 0
    %1602 = vmatprep.subr.bf16.mxu0 0
    %1603 = vmatpush2.bf16.msra.mxu0 0
    %1604 = vmatprep.subr.bf16.mxu0 0
    %1605 = vmatpush2.bf16.msra.mxu0 0
    %1606 = vmatprep.mubr.bf16.mxu0 0
    %1607 = vmatmul.mubr.bf16.gmra.mxu0 %v1572
    %v1608 = vpop.f32.mrf.mxu0
    %v1609 = vadd.f32 0.0, %v1608
    %v1610 = vpop.f32.mrf.mxu0
    %v1611 = vpop.f32.mrf.mxu0
    %v1612 = vadd.f32 0.0, %v1611
    %v1613 = vpop.f32.mrf.mxu0
    %1614 = vdwg.mxu0
    %1615 = vmatprep.subr.mxu0 0.0
    %1616 = vmatpush1.msra.mxu0 0.0
    %1617 = vmatprep.subr.mxu0 0.0
    %1618 = vmatpush1.msra.mxu0 0.0
    %1619 = vmatprep.subr.mxu0 0.0
    %1620 = vmatpush1.msra.mxu0 0.0
    %1621 = vmatprep.subr.mxu0 0.0
    %1622 = vmatpush1.msra.mxu0 0.0
    %1623 = vmatprep.subr.mxu0 0.0
    %1624 = vmatpush1.msra.mxu0 0.0
    %1625 = vmatprep.subr.mxu0 0.0
    %1626 = vmatpush1.msra.mxu0 0.0
    %1627 = vmatprep.subr.mxu0 0.0
    %1628 = vmatpush1.msra.mxu0 0.0
    %1629 = vmatprep.subr.mxu0 0.0
    %1630 = vmatpush1.msra.mxu0 0.0
    %1631 = vmatprep.subr.mxu0 0.0
    %1632 = vmatpush1.msra.mxu0 0.0
    %1633 = vmatprep.subr.mxu0 0.0
    %1634 = vmatpush1.msra.mxu0 0.0
    %1635 = vmatprep.subr.mxu0 0.0
    %1636 = vmatpush1.msra.mxu0 0.0
    %1637 = vmatprep.subr.mxu0 0.0
    %1638 = vmatpush1.msra.mxu0 0.0
    %1639 = vmatprep.subr.mxu0 0.0
    %1640 = vmatpush1.msra.mxu0 0.0
    %1641 = vmatprep.subr.mxu0 0.0
    %1642 = vmatpush1.msra.mxu0 0.0
    %1643 = vmatprep.subr.mxu0 0.0
    %1644 = vmatpush1.msra.mxu0 %v1253
    %1645 = vmatprep.subr.mxu0 0.0
    %1646 = vmatpush1.msra.mxu0 %v1250
    %1647 = vmatprep.subr.mxu0 0.0
    %1648 = vmatpush2.msra.mxu0 0.0
    %1649 = vmatprep.subr.mxu0 0.0
    %1650 = vmatpush2.msra.mxu0 0.0
    %1651 = vmatprep.subr.mxu0 0.0
    %1652 = vmatpush2.msra.mxu0 0.0
    %1653 = vmatprep.subr.mxu0 0.0
    %1654 = vmatpush2.msra.mxu0 0.0
    %1655 = vmatprep.subr.mxu0 0.0
    %1656 = vmatpush2.msra.mxu0 0.0
    %1657 = vmatprep.subr.mxu0 0.0
    %1658 = vmatpush2.msra.mxu0 0.0
    %1659 = vmatprep.subr.mxu0 0.0
    %1660 = vmatpush2.msra.mxu0 0.0
    %1661 = vmatprep.subr.mxu0 0.0
    %1662 = vmatpush2.msra.mxu0 0.0
    %1663 = vmatprep.subr.mxu0 0.0
    %1664 = vmatpush2.msra.mxu0 0.0
    %1665 = vmatprep.subr.mxu0 0.0
    %1666 = vmatpush2.msra.mxu0 0.0
    %1667 = vmatprep.subr.mxu0 0.0
    %1668 = vmatpush2.msra.mxu0 0.0
    %1669 = vmatprep.subr.mxu0 0.0
    %1670 = vmatpush2.msra.mxu0 0.0
    %1671 = vmatprep.subr.mxu0 0.0
    %1672 = vmatpush2.msra.mxu0 0.0
    %1673 = vmatprep.subr.mxu0 0.0
    %1674 = vmatpush2.msra.mxu0 0.0
    %1675 = vmatprep.subr.mxu0 0.0
    %1676 = vmatpush2.msra.mxu0 0.0
    %1677 = vmatprep.subr.mxu0 0.0
    %1678 = vmatpush2.msra.mxu0 0.0
    %1679 = vmatprep.mubr.f32.mxu0 0.0
    %1680 = vmatmul.mubr.f32.gmra.mxu0 %v658
    %v1681 = vpop.f32.mrf.mxu0
    %v1682 = vadd.f32 %v1609, %v1681
    %v1683 = vpop.f32.mrf.mxu0
    %1684 = vmatprep.mubr.f32.mxu0 0.0
    %1685 = vmatmul.mubr.f32.gmra.mxu0 %v661
    %v1686 = vpop.f32.mrf.mxu0
    %v1687 = vadd.f32 %v1612, %v1686
    %v1688 = vpop.f32.mrf.mxu0
    %1689 = vdwg.mxu0
    %v1690 = vxor.u32 %v1682, 2147483648
    %v1691 = vxor.u32 %v1687, 2147483648
    %v1692 = vmul.f32 %v1690, 1.442695
    %v1693 = vpow.pop %v1692
    %v1694 = vmul.f32 %v1691, 1.442695
    %v1695 = vpow.pop %v1694
    %v1696 = vadd.f32 %v1693, 1.0
    %v1697 = vadd.f32 %v1695, 1.0
    %v1698 = vrcp.pop %v1696
    %v1699 = vmul.f32 1.0, %v1698
    %v1700 = vrcp.pop %v1697
    %v1701 = vmul.f32 1.0, %v1700
    %v1702 = vtanh.pop %v1682
    %v1703 = vtanh.pop %v1687
    %v1704 = vmul.f32 %v1699, %v1553
    %v1705 = vmul.f32 %v1701, %v1554
    %1708 = vrot.lane.b32.xlu0 %v1702, 64
    %v1709 = vpop.permute.xlu0 %1708
    %1710 = vrot.lane.b32.xlu0 %v1703, 64
    %v1711 = vpop.permute.xlu0 %1710
    %v1714 = vmul.f32 %v1699, %v1709
    %v1715 = vmul.f32 %v1701, %v1711
    %1718 = vrot.lane.b32.xlu0 %v1714, 32
    %v1719 = vpop.permute.xlu0 %1718
    %1720 = vrot.lane.b32.xlu0 %v1715, 32
    %v1721 = vpop.permute.xlu0 %1720
    %v1724 = vadd.f32 %v1704, %v1719
    %v1725 = vadd.f32 %v1705, %v1721
    %v1726 = vtanh.pop %v1724
    %v1727 = vtanh.pop %v1725
    %1730 = vrot.lane.b32.xlu0 %v1726, 64
    %v1731 = vpop.permute.xlu0 %1730
    %1732 = vrot.lane.b32.xlu0 %v1727, 64
    %v1733 = vpop.permute.xlu0 %1732
    %v1736 = vmul.f32 %v1699, %v1731
    %v1737 = vmul.f32 %v1701, %v1733
    %v1738 = vpack.c.bf16 %v1737, %v1736
    %1740 = vrot.lane.b32.xlu0 %v1738, 32
    %v1741 = vpop.permute.xlu0 %1740
    %v1743 = vsel %vm435, %v1741, 0
    %1745 = vmatprep.subr.bf16.mxu0 0
    %1746 = vmatpush1.bf16.msra.mxu0 0
    %1747 = vmatprep.subr.bf16.mxu0 0
    %1748 = vmatpush1.bf16.msra.mxu0 0
    %1749 = vmatprep.subr.bf16.mxu0 0
    %1750 = vmatpush1.bf16.msra.mxu0 0
    %1751 = vmatprep.subr.bf16.mxu0 0
    %1752 = vmatpush1.bf16.msra.mxu0 0
    %1753 = vmatprep.subr.bf16.mxu0 0
    %1754 = vmatpush1.bf16.msra.mxu0 0
    %1755 = vmatprep.subr.bf16.mxu0 0
    %1756 = vmatpush1.bf16.msra.mxu0 0
    %1757 = vmatprep.subr.bf16.mxu0 0
    %1758 = vmatpush1.bf16.msra.mxu0 %v1397
    %1759 = vmatprep.subr.bf16.mxu0 0
    %1760 = vmatpush1.bf16.msra.mxu0 %v1396
    %1761 = vmatprep.subr.bf16.mxu0 0
    %1762 = vmatpush2.bf16.msra.mxu0 0
    %1763 = vmatprep.subr.bf16.mxu0 0
    %1764 = vmatpush2.bf16.msra.mxu0 0
    %1765 = vmatprep.subr.bf16.mxu0 0
    %1766 = vmatpush2.bf16.msra.mxu0 0
    %1767 = vmatprep.subr.bf16.mxu0 0
    %1768 = vmatpush2.bf16.msra.mxu0 0
    %1769 = vmatprep.subr.bf16.mxu0 0
    %1770 = vmatpush2.bf16.msra.mxu0 0
    %1771 = vmatprep.subr.bf16.mxu0 0
    %1772 = vmatpush2.bf16.msra.mxu0 0
    %1773 = vmatprep.subr.bf16.mxu0 0
    %1774 = vmatpush2.bf16.msra.mxu0 0
    %1775 = vmatprep.subr.bf16.mxu0 0
    %1776 = vmatpush2.bf16.msra.mxu0 0
    %1777 = vmatprep.mubr.bf16.mxu0 0
    %1778 = vmatmul.mubr.bf16.gmra.mxu0 %v1743
    %v1779 = vpop.f32.mrf.mxu0
    %v1780 = vadd.f32 0.0, %v1779
    %v1781 = vpop.f32.mrf.mxu0
    %v1782 = vpop.f32.mrf.mxu0
    %v1783 = vadd.f32 0.0, %v1782
    %v1784 = vpop.f32.mrf.mxu0
    %1785 = vdwg.mxu0
    %1786 = vmatprep.subr.mxu0 0.0
    %1787 = vmatpush1.msra.mxu0 0.0
    %1788 = vmatprep.subr.mxu0 0.0
    %1789 = vmatpush1.msra.mxu0 0.0
    %1790 = vmatprep.subr.mxu0 0.0
    %1791 = vmatpush1.msra.mxu0 0.0
    %1792 = vmatprep.subr.mxu0 0.0
    %1793 = vmatpush1.msra.mxu0 0.0
    %1794 = vmatprep.subr.mxu0 0.0
    %1795 = vmatpush1.msra.mxu0 0.0
    %1796 = vmatprep.subr.mxu0 0.0
    %1797 = vmatpush1.msra.mxu0 0.0
    %1798 = vmatprep.subr.mxu0 0.0
    %1799 = vmatpush1.msra.mxu0 0.0
    %1800 = vmatprep.subr.mxu0 0.0
    %1801 = vmatpush1.msra.mxu0 0.0
    %1802 = vmatprep.subr.mxu0 0.0
    %1803 = vmatpush1.msra.mxu0 0.0
    %1804 = vmatprep.subr.mxu0 0.0
    %1805 = vmatpush1.msra.mxu0 0.0
    %1806 = vmatprep.subr.mxu0 0.0
    %1807 = vmatpush1.msra.mxu0 0.0
    %1808 = vmatprep.subr.mxu0 0.0
    %1809 = vmatpush1.msra.mxu0 0.0
    %1810 = vmatprep.subr.mxu0 0.0
    %1811 = vmatpush1.msra.mxu0 0.0
    %1812 = vmatprep.subr.mxu0 0.0
    %1813 = vmatpush1.msra.mxu0 0.0
    %1814 = vmatprep.subr.mxu0 0.0
    %1815 = vmatpush1.msra.mxu0 %v1253
    %1816 = vmatprep.subr.mxu0 0.0
    %1817 = vmatpush1.msra.mxu0 %v1250
    %1818 = vmatprep.subr.mxu0 0.0
    %1819 = vmatpush2.msra.mxu0 0.0
    %1820 = vmatprep.subr.mxu0 0.0
    %1821 = vmatpush2.msra.mxu0 0.0
    %1822 = vmatprep.subr.mxu0 0.0
    %1823 = vmatpush2.msra.mxu0 0.0
    %1824 = vmatprep.subr.mxu0 0.0
    %1825 = vmatpush2.msra.mxu0 0.0
    %1826 = vmatprep.subr.mxu0 0.0
    %1827 = vmatpush2.msra.mxu0 0.0
    %1828 = vmatprep.subr.mxu0 0.0
    %1829 = vmatpush2.msra.mxu0 0.0
    %1830 = vmatprep.subr.mxu0 0.0
    %1831 = vmatpush2.msra.mxu0 0.0
    %1832 = vmatprep.subr.mxu0 0.0
    %1833 = vmatpush2.msra.mxu0 0.0
    %1834 = vmatprep.subr.mxu0 0.0
    %1835 = vmatpush2.msra.mxu0 0.0
    %1836 = vmatprep.subr.mxu0 0.0
    %1837 = vmatpush2.msra.mxu0 0.0
    %1838 = vmatprep.subr.mxu0 0.0
    %1839 = vmatpush2.msra.mxu0 0.0
    %1840 = vmatprep.subr.mxu0 0.0
    %1841 = vmatpush2.msra.mxu0 0.0
    %1842 = vmatprep.subr.mxu0 0.0
    %1843 = vmatpush2.msra.mxu0 0.0
    %1844 = vmatprep.subr.mxu0 0.0
    %1845 = vmatpush2.msra.mxu0 0.0
    %1846 = vmatprep.subr.mxu0 0.0
    %1847 = vmatpush2.msra.mxu0 0.0
    %1848 = vmatprep.subr.mxu0 0.0
    %1849 = vmatpush2.msra.mxu0 0.0
    %1850 = vmatprep.mubr.f32.mxu0 0.0
    %1851 = vmatmul.mubr.f32.gmra.mxu0 %v835
    %v1852 = vpop.f32.mrf.mxu0
    %v1853 = vadd.f32 %v1780, %v1852
    %v1854 = vpop.f32.mrf.mxu0
    %1855 = vmatprep.mubr.f32.mxu0 0.0
    %1856 = vmatmul.mubr.f32.gmra.mxu0 %v838
    %v1857 = vpop.f32.mrf.mxu0
    %v1858 = vadd.f32 %v1783, %v1857
    %v1859 = vpop.f32.mrf.mxu0
    %1860 = vdwg.mxu0
    %v1861 = vxor.u32 %v1853, 2147483648
    %v1862 = vxor.u32 %v1858, 2147483648
    %v1863 = vmul.f32 %v1861, 1.442695
    %v1864 = vpow.pop %v1863
    %v1865 = vmul.f32 %v1862, 1.442695
    %v1866 = vpow.pop %v1865
    %v1867 = vadd.f32 %v1864, 1.0
    %v1868 = vadd.f32 %v1866, 1.0
    %v1869 = vrcp.pop %v1867
    %v1870 = vmul.f32 1.0, %v1869
    %v1871 = vrcp.pop %v1868
    %v1872 = vmul.f32 1.0, %v1871
    %v1873 = vtanh.pop %v1853
    %v1874 = vtanh.pop %v1858
    %v1875 = vmul.f32 %v1870, %v1724
    %v1876 = vmul.f32 %v1872, %v1725
    %1879 = vrot.lane.b32.xlu0 %v1873, 64
    %v1880 = vpop.permute.xlu0 %1879
    %1881 = vrot.lane.b32.xlu0 %v1874, 64
    %v1882 = vpop.permute.xlu0 %1881
    %v1885 = vmul.f32 %v1870, %v1880
    %v1886 = vmul.f32 %v1872, %v1882
    %1889 = vrot.lane.b32.xlu0 %v1885, 32
    %v1890 = vpop.permute.xlu0 %1889
    %1891 = vrot.lane.b32.xlu0 %v1886, 32
    %v1892 = vpop.permute.xlu0 %1891
    %v1895 = vadd.f32 %v1875, %v1890
    %v1896 = vadd.f32 %v1876, %v1892
    %v1897 = vtanh.pop %v1895
    %v1898 = vtanh.pop %v1896
    %1901 = vrot.lane.b32.xlu0 %v1897, 64
    %v1902 = vpop.permute.xlu0 %1901
    %1903 = vrot.lane.b32.xlu0 %v1898, 64
    %v1904 = vpop.permute.xlu0 %1903
    %v1907 = vmul.f32 %v1870, %v1902
    %v1908 = vmul.f32 %v1872, %v1904
    %s1909 = scalar_lea.vmem [#allocation4], 64
    %v1910 = vld [vmem:[%s1909] sm:$0xf]
    %v1911 = vld [vmem:[%s1909 + $0x4] sm:$0xf]
    %v1912 = vld [vmem:[%s1909 + $0x8] sm:$0xf]
    %v1913 = vld [vmem:[%s1909 + $0xc] sm:$0xf]
    %v1914 = vld [vmem:[%s1909 + $0x10] sm:$0xf]
    %v1915 = vld [vmem:[%s1909 + $0x14] sm:$0xf]
    %v1916 = vld [vmem:[%s1909 + $0x18] sm:$0xf]
    %v1917 = vld [vmem:[%s1909 + $0x1c] sm:$0xf]
    %v1918 = vld [vmem:[%s1909 + $0x20] sm:$0xf]
    %v1919 = vld [vmem:[%s1909 + $0x24] sm:$0xf]
    %v1920 = vld [vmem:[%s1909 + $0x28] sm:$0xf]
    %v1921 = vld [vmem:[%s1909 + $0x2c] sm:$0xf]
    %v1922 = vld [vmem:[%s1909 + $0x30] sm:$0xf]
    %v1923 = vld [vmem:[%s1909 + $0x34] sm:$0xf]
    %v1924 = vld [vmem:[%s1909 + $0x38] sm:$0xf]
    %v1925 = vld [vmem:[%s1909 + $0x3c] sm:$0xf]
    %v1926 = vpack.c.bf16 %v1908, %v1907
    %s1927 = scalar_lea.vmem [#allocation6], 16
    %v1928 = vld [vmem:[%s1927] sm:$0xf]
    %v1929 = vld [vmem:[%s1927 + $0x4] sm:$0xf]
    %v1930 = vld [vmem:[%s1927 + $0x8] sm:$0xf]
    %v1931 = vld [vmem:[%s1927 + $0xc] sm:$0xf]
    %1933 = vrot.lane.b32.xlu0 %v1926, 32
    %v1934 = vpop.permute.xlu0 %1933
    %v1939 = vunpack.c.l.b16 %v1928
    %v1940 = vunpack.c.l.b16 %v1929
    %v1941 = vunpack.c.l.b16 %v1930
    %v1942 = vunpack.c.l.b16 %v1931
    %v1943 = vpack.c.b16 %v1940, %v1939
    %v1944 = vpack.c.b16 %v1942, %v1941
    %v1948 = vsel %vm435, %v1934, 0
    %1950 = vmatprep.subr.bf16.mxu0 0
    %1951 = vmatpush1.bf16.msra.mxu0 0
    %1952 = vmatprep.subr.bf16.mxu0 0
    %1953 = vmatpush1.bf16.msra.mxu0 0
    %1954 = vmatprep.subr.bf16.mxu0 0
    %1955 = vmatpush1.bf16.msra.mxu0 0
    %1956 = vmatprep.subr.bf16.mxu0 0
    %1957 = vmatpush1.bf16.msra.mxu0 0
    %1958 = vmatprep.subr.bf16.mxu0 0
    %1959 = vmatpush1.bf16.msra.mxu0 0
    %1960 = vmatprep.subr.bf16.mxu0 0
    %1961 = vmatpush1.bf16.msra.mxu0 0
    %1962 = vmatprep.subr.bf16.mxu0 0
    %1963 = vmatpush1.bf16.msra.mxu0 %v1944
    %1964 = vmatprep.subr.bf16.mxu0 0
    %1965 = vmatpush1.bf16.msra.mxu0 %v1943
    %1966 = vmatprep.subr.bf16.mxu0 0
    %1967 = vmatpush2.bf16.msra.mxu0 0
    %1968 = vmatprep.subr.bf16.mxu0 0
    %1969 = vmatpush2.bf16.msra.mxu0 0
    %1970 = vmatprep.subr.bf16.mxu0 0
    %1971 = vmatpush2.bf16.msra.mxu0 0
    %1972 = vmatprep.subr.bf16.mxu0 0
    %1973 = vmatpush2.bf16.msra.mxu0 0
    %1974 = vmatprep.subr.bf16.mxu0 0
    %1975 = vmatpush2.bf16.msra.mxu0 0
    %1976 = vmatprep.subr.bf16.mxu0 0
    %1977 = vmatpush2.bf16.msra.mxu0 0
    %1978 = vmatprep.subr.bf16.mxu0 0
    %1979 = vmatpush2.bf16.msra.mxu0 0
    %1980 = vmatprep.subr.bf16.mxu0 0
    %1981 = vmatpush2.bf16.msra.mxu0 0
    %1982 = vmatprep.mubr.bf16.mxu0 0
    %1983 = vmatmul.mubr.bf16.gmra.mxu0 %v1948
    %v1984 = vpop.f32.mrf.mxu0
    %v1985 = vadd.f32 0.0, %v1984
    %v1986 = vpop.f32.mrf.mxu0
    %v1987 = vpop.f32.mrf.mxu0
    %v1988 = vadd.f32 0.0, %v1987
    %v1989 = vpop.f32.mrf.mxu0
    %1990 = vdwg.mxu0
    %v2007 = vunpack.c.l.b16 %v1910
    %v2008 = vunpack.c.l.b16 %v1911
    %v2009 = vunpack.c.l.b16 %v1912
    %v2010 = vunpack.c.l.b16 %v1913
    %v2011 = vunpack.c.l.b16 %v1914
    %v2012 = vunpack.c.l.b16 %v1915
    %v2013 = vunpack.c.l.b16 %v1916
    %v2014 = vunpack.c.l.b16 %v1917
    %v2015 = vunpack.c.l.b16 %v1918
    %v2016 = vunpack.c.l.b16 %v1919
    %v2017 = vunpack.c.l.b16 %v1920
    %v2018 = vunpack.c.l.b16 %v1921
    %v2019 = vunpack.c.l.b16 %v1922
    %v2020 = vunpack.c.l.b16 %v1923
    %v2021 = vunpack.c.l.b16 %v1924
    %v2022 = vunpack.c.l.b16 %v1925
    %v2023 = vpack.c.b16 %v2008, %v2007
    %v2024 = vpack.c.b16 %v2010, %v2009
    %v2025 = vpack.c.b16 %v2012, %v2011
    %v2026 = vpack.c.b16 %v2014, %v2013
    %v2027 = vpack.c.b16 %v2016, %v2015
    %v2028 = vpack.c.b16 %v2018, %v2017
    %v2029 = vpack.c.b16 %v2020, %v2019
    %v2030 = vpack.c.b16 %v2022, %v2021
    %2039 = vmatprep.subr.bf16.mxu0 0
    %2040 = vmatpush1.bf16.msra.mxu0 %v2030
    %2041 = vmatprep.subr.bf16.mxu0 0
    %2042 = vmatpush1.bf16.msra.mxu0 %v2029
    %2043 = vmatprep.subr.bf16.mxu0 0
    %2044 = vmatpush1.bf16.msra.mxu0 %v2028
    %2045 = vmatprep.subr.bf16.mxu0 0
    %2046 = vmatpush1.bf16.msra.mxu0 %v2027
    %2047 = vmatprep.subr.bf16.mxu0 0
    %2048 = vmatpush1.bf16.msra.mxu0 %v2026
    %2049 = vmatprep.subr.bf16.mxu0 0
    %2050 = vmatpush1.bf16.msra.mxu0 %v2025
    %2051 = vmatprep.subr.bf16.mxu0 0
    %2052 = vmatpush1.bf16.msra.mxu0 %v2024
    %2053 = vmatprep.subr.bf16.mxu0 0
    %2054 = vmatpush1.bf16.msra.mxu0 %v2023
    %2055 = vmatprep.subr.bf16.mxu0 0
    %2056 = vmatpush2.bf16.msra.mxu0 0
    %2057 = vmatprep.subr.bf16.mxu0 0
    %2058 = vmatpush2.bf16.msra.mxu0 0
    %2059 = vmatprep.subr.bf16.mxu0 0
    %2060 = vmatpush2.bf16.msra.mxu0 0
    %2061 = vmatprep.subr.bf16.mxu0 0
    %2062 = vmatpush2.bf16.msra.mxu0 0
    %2063 = vmatprep.subr.bf16.mxu0 0
    %2064 = vmatpush2.bf16.msra.mxu0 0
    %2065 = vmatprep.subr.bf16.mxu0 0
    %2066 = vmatpush2.bf16.msra.mxu0 0
    %2067 = vmatprep.subr.bf16.mxu0 0
    %2068 = vmatpush2.bf16.msra.mxu0 0
    %2069 = vmatprep.subr.bf16.mxu0 0
    %2070 = vmatpush2.bf16.msra.mxu0 0
    %2071 = vmatprep.mubr.bf16.mxu0 0
    %2072 = vmatmul.mubr.bf16.gmra.mxu0 %v1141
    %v2073 = vpop.f32.mrf.mxu0
    %v2074 = vadd.f32 %v1985, %v2073
    %v2075 = vpop.f32.mrf.mxu0
    %v2076 = vpop.f32.mrf.mxu0
    %v2077 = vadd.f32 %v1988, %v2076
    %v2078 = vpop.f32.mrf.mxu0
    %2079 = vdwg.mxu0
    %s2080 = scalar_lea.vmem [#allocation7], 1
    %v2081 = vld [vmem:[%s2080] sm:$0x1]
    %v2083 = vlaneseq
    %v2084 = vshrl.u32 %v2083, 7
    %v2085 = vsub.s32 0, %v2084
    %v2086 = vrot.slane %v2081, %v2085
    %v2088 = vadd.f32 %v2074, %v2086
    %v2089 = vadd.f32 %v2077, %v2086
    %v2090 = vpack.c.bf16 %v2089, %v2088
    %s2091 = scalar_lea.vmem [#allocation2], 128
    %v2092 = vld [vmem:[%s2091] sm:$0xf]
    %v2093 = vld [vmem:[%s2091 + $0x4] sm:$0xf]
    %v2094 = vld [vmem:[%s2091 + $0x8] sm:$0xf]
    %v2095 = vld [vmem:[%s2091 + $0xc] sm:$0xf]
    %v2096 = vld [vmem:[%s2091 + $0x10] sm:$0xf]
    %v2097 = vld [vmem:[%s2091 + $0x14] sm:$0xf]
    %v2098 = vld [vmem:[%s2091 + $0x18] sm:$0xf]
    %v2099 = vld [vmem:[%s2091 + $0x1c] sm:$0xf]
    %v2100 = vld [vmem:[%s2091 + $0x20] sm:$0xf]
    %v2101 = vld [vmem:[%s2091 + $0x24] sm:$0xf]
    %v2102 = vld [vmem:[%s2091 + $0x28] sm:$0xf]
    %v2103 = vld [vmem:[%s2091 + $0x2c] sm:$0xf]
    %v2104 = vld [vmem:[%s2091 + $0x30] sm:$0xf]
    %v2105 = vld [vmem:[%s2091 + $0x34] sm:$0xf]
    %v2106 = vld [vmem:[%s2091 + $0x38] sm:$0xf]
    %v2107 = vld [vmem:[%s2091 + $0x3c] sm:$0xf]
    %s2108 = scalar_lea.vmem %s4, 2
    %v2109 = vld [vmem:[%s2108] sm:$0x1]
    %v2111 = vlaneseq
    %v2112 = vshrl.u32 %v2111, 7
    %v2113 = vsub.s32 0, %v2112
    %v2114 = vrot.slane %v2109, %v2113
    %v2132 = vunpack.c.l.b16 %v2092
    %v2133 = vunpack.c.l.b16 %v2093
    %v2134 = vunpack.c.l.b16 %v2094
    %v2135 = vunpack.c.l.b16 %v2095
    %v2136 = vunpack.c.l.b16 %v2096
    %v2137 = vunpack.c.l.b16 %v2097
    %v2138 = vunpack.c.l.b16 %v2098
    %v2139 = vunpack.c.l.b16 %v2099
    %v2140 = vunpack.c.l.b16 %v2100
    %v2141 = vunpack.c.l.b16 %v2101
    %v2142 = vunpack.c.l.b16 %v2102
    %v2143 = vunpack.c.l.b16 %v2103
    %v2144 = vunpack.c.l.b16 %v2104
    %v2145 = vunpack.c.l.b16 %v2105
    %v2146 = vunpack.c.l.b16 %v2106
    %v2147 = vunpack.c.l.b16 %v2107
    %v2148 = vpack.c.b16 %v2133, %v2132
    %v2149 = vpack.c.b16 %v2135, %v2134
    %v2150 = vpack.c.b16 %v2137, %v2136
    %v2151 = vpack.c.b16 %v2139, %v2138
    %v2152 = vpack.c.b16 %v2141, %v2140
    %v2153 = vpack.c.b16 %v2143, %v2142
    %v2154 = vpack.c.b16 %v2145, %v2144
    %v2155 = vpack.c.b16 %v2147, %v2146
    %2164 = vmatprep.subr.bf16.mxu0 0
    %2165 = vmatpush1.bf16.msra.mxu0 %v2155
    %2166 = vmatprep.subr.bf16.mxu0 0
    %2167 = vmatpush1.bf16.msra.mxu0 %v2154
    %2168 = vmatprep.subr.bf16.mxu0 0
    %2169 = vmatpush1.bf16.msra.mxu0 %v2153
    %2170 = vmatprep.subr.bf16.mxu0 0
    %2171 = vmatpush1.bf16.msra.mxu0 %v2152
    %2172 = vmatprep.subr.bf16.mxu0 0
    %2173 = vmatpush1.bf16.msra.mxu0 %v2151
    %2174 = vmatprep.subr.bf16.mxu0 0
    %2175 = vmatpush1.bf16.msra.mxu0 %v2150
    %2176 = vmatprep.subr.bf16.mxu0 0
    %2177 = vmatpush1.bf16.msra.mxu0 %v2149
    %2178 = vmatprep.subr.bf16.mxu0 0
    %2179 = vmatpush1.bf16.msra.mxu0 %v2148
    %2180 = vmatprep.subr.bf16.mxu0 0
    %2181 = vmatpush2.bf16.msra.mxu0 0
    %2182 = vmatprep.subr.bf16.mxu0 0
    %2183 = vmatpush2.bf16.msra.mxu0 0
    %2184 = vmatprep.subr.bf16.mxu0 0
    %2185 = vmatpush2.bf16.msra.mxu0 0
    %2186 = vmatprep.subr.bf16.mxu0 0
    %2187 = vmatpush2.bf16.msra.mxu0 0
    %2188 = vmatprep.subr.bf16.mxu0 0
    %2189 = vmatpush2.bf16.msra.mxu0 0
    %2190 = vmatprep.subr.bf16.mxu0 0
    %2191 = vmatpush2.bf16.msra.mxu0 0
    %2192 = vmatprep.subr.bf16.mxu0 0
    %2193 = vmatpush2.bf16.msra.mxu0 0
    %2194 = vmatprep.subr.bf16.mxu0 0
    %2195 = vmatpush2.bf16.msra.mxu0 0
    %2196 = vmatprep.mubr.bf16.mxu0 0
    %2197 = vmatmul.mubr.bf16.gmra.mxu0 %v2090
    %v2198 = vpop.f32.mrf.mxu0
    %v2199 = vadd.f32 %v2114, %v2198
    %v2200 = vpop.f32.mrf.mxu0
    %v2201 = vpop.f32.mrf.mxu0
    %v2202 = vadd.f32 %v2114, %v2201
    %v2203 = vpop.f32.mrf.mxu0
    %2204 = vdwg.mxu0
    %2205 = vmatprep.subr.mxu0 0.0
    %2206 = vmatpush1.msra.mxu0 0.0
    %2207 = vmatprep.subr.mxu0 0.0
    %2208 = vmatpush1.msra.mxu0 0.0
    %2209 = vmatprep.subr.mxu0 0.0
    %2210 = vmatpush1.msra.mxu0 0.0
    %2211 = vmatprep.subr.mxu0 0.0
    %2212 = vmatpush1.msra.mxu0 0.0
    %2213 = vmatprep.subr.mxu0 0.0
    %2214 = vmatpush1.msra.mxu0 0.0
    %2215 = vmatprep.subr.mxu0 0.0
    %2216 = vmatpush1.msra.mxu0 0.0
    %2217 = vmatprep.subr.mxu0 0.0
    %2218 = vmatpush1.msra.mxu0 0.0
    %2219 = vmatprep.subr.mxu0 0.0
    %2220 = vmatpush1.msra.mxu0 0.0
    %2221 = vmatprep.subr.mxu0 0.0
    %2222 = vmatpush1.msra.mxu0 0.0
    %2223 = vmatprep.subr.mxu0 0.0
    %2224 = vmatpush1.msra.mxu0 0.0
    %2225 = vmatprep.subr.mxu0 0.0
    %2226 = vmatpush1.msra.mxu0 0.0
    %2227 = vmatprep.subr.mxu0 0.0
    %2228 = vmatpush1.msra.mxu0 0.0
    %2229 = vmatprep.subr.mxu0 0.0
    %2230 = vmatpush1.msra.mxu0 0.0
    %2231 = vmatprep.subr.mxu0 0.0
    %2232 = vmatpush1.msra.mxu0 0.0
    %2233 = vmatprep.subr.mxu0 0.0
    %2234 = vmatpush1.msra.mxu0 %v2202
    %2235 = vmatprep.subr.mxu0 0.0
    %2236 = vmatpush1.msra.mxu0 %v2199
    %2237 = vmatprep.subr.mxu0 0.0
    %2238 = vmatpush2.msra.mxu0 0.0
    %2239 = vmatprep.subr.mxu0 0.0
    %2240 = vmatpush2.msra.mxu0 0.0
    %2241 = vmatprep.subr.mxu0 0.0
    %2242 = vmatpush2.msra.mxu0 0.0
    %2243 = vmatprep.subr.mxu0 0.0
    %2244 = vmatpush2.msra.mxu0 0.0
    %2245 = vmatprep.subr.mxu0 0.0
    %2246 = vmatpush2.msra.mxu0 0.0
    %2247 = vmatprep.subr.mxu0 0.0
    %2248 = vmatpush2.msra.mxu0 0.0
    %2249 = vmatprep.subr.mxu0 0.0
    %2250 = vmatpush2.msra.mxu0 0.0
    %2251 = vmatprep.subr.mxu0 0.0
    %2252 = vmatpush2.msra.mxu0 0.0
    %2253 = vmatprep.subr.mxu0 0.0
    %2254 = vmatpush2.msra.mxu0 0.0
    %2255 = vmatprep.subr.mxu0 0.0
    %2256 = vmatpush2.msra.mxu0 0.0
    %2257 = vmatprep.subr.mxu0 0.0
    %2258 = vmatpush2.msra.mxu0 0.0
    %2259 = vmatprep.subr.mxu0 0.0
    %2260 = vmatpush2.msra.mxu0 0.0
    %2261 = vmatprep.subr.mxu0 0.0
    %2262 = vmatpush2.msra.mxu0 0.0
    %2263 = vmatprep.subr.mxu0 0.0
    %2264 = vmatpush2.msra.mxu0 0.0
    %2265 = vmatprep.subr.mxu0 0.0
    %2266 = vmatpush2.msra.mxu0 0.0
    %2267 = vmatprep.subr.mxu0 0.0
    %2268 = vmatpush2.msra.mxu0 0.0
    %2269 = vmatprep.mubr.f32.mxu0 0.0
    %2270 = vmatmul.mubr.f32.gmra.mxu0 %v287
    %v2271 = vpop.f32.mrf.mxu0
    %v2272 = vadd.f32 0.0, %v2271
    %v2273 = vpop.f32.mrf.mxu0
    %2274 = vmatprep.mubr.f32.mxu0 0.0
    %2275 = vmatmul.mubr.f32.gmra.mxu0 %v290
    %v2276 = vpop.f32.mrf.mxu0
    %v2277 = vadd.f32 0.0, %v2276
    %v2278 = vpop.f32.mrf.mxu0
    %2279 = vdwg.mxu0
    %v2280 = vxor.u32 %v2272, 2147483648
    %v2281 = vxor.u32 %v2277, 2147483648
    %v2282 = vmul.f32 %v2280, 1.442695
    %v2283 = vpow.pop %v2282
    %v2284 = vmul.f32 %v2281, 1.442695
    %v2285 = vpow.pop %v2284
    %v2286 = vadd.f32 %v2283, 1.0
    %v2287 = vadd.f32 %v2285, 1.0
    %v2288 = vrcp.pop %v2286
    %v2289 = vmul.f32 1.0, %v2288
    %v2290 = vrcp.pop %v2287
    %v2291 = vmul.f32 1.0, %v2290
    %v2292 = vtanh.pop %v2272
    %v2293 = vtanh.pop %v2277
    %v2294 = vmul.f32 %v2289, 0.0
    %v2295 = vmul.f32 %v2291, 0.0
    %2298 = vrot.lane.b32.xlu0 %v2292, 64
    %v2299 = vpop.permute.xlu0 %2298
    %2300 = vrot.lane.b32.xlu0 %v2293, 64
    %v2301 = vpop.permute.xlu0 %2300
    %v2304 = vmul.f32 %v2289, %v2299
    %v2305 = vmul.f32 %v2291, %v2301
    %2308 = vrot.lane.b32.xlu0 %v2304, 32
    %v2309 = vpop.permute.xlu0 %2308
    %2310 = vrot.lane.b32.xlu0 %v2305, 32
    %v2311 = vpop.permute.xlu0 %2310
    %v2314 = vadd.f32 %v2294, %v2309
    %v2315 = vadd.f32 %v2295, %v2311
    %v2316 = vtanh.pop %v2314
    %v2317 = vtanh.pop %v2315
    %2320 = vrot.lane.b32.xlu0 %v2316, 64
    %v2321 = vpop.permute.xlu0 %2320
    %2322 = vrot.lane.b32.xlu0 %v2317, 64
    %v2323 = vpop.permute.xlu0 %2322
    %v2326 = vmul.f32 %v2289, %v2321
    %v2327 = vmul.f32 %v2291, %v2323
    %v2328 = vpack.c.bf16 %v2327, %v2326
    %s2329 = scalar_lea.vmem %s3, 32
    %v2330 = vld [vmem:[%s2329] sm:$0xf]
    %v2331 = vld [vmem:[%s2329 + $0x4] sm:$0xf]
    %v2332 = vld [vmem:[%s2329 + $0x8] sm:$0xf]
    %v2333 = vld [vmem:[%s2329 + $0xc] sm:$0xf]
    %2335 = vrot.lane.b32.xlu0 %v2328, 32
    %v2336 = vpop.permute.xlu0 %2335
    %v2341 = vunpack.c.l.b16 %v2330
    %v2342 = vunpack.c.l.b16 %v2331
    %v2343 = vunpack.c.l.b16 %v2332
    %v2344 = vunpack.c.l.b16 %v2333
    %v2345 = vpack.c.b16 %v2342, %v2341
    %v2346 = vpack.c.b16 %v2344, %v2343
    %v2350 = vsel %vm435, %v2336, 0
    %2352 = vmatprep.subr.bf16.mxu0 0
    %2353 = vmatpush1.bf16.msra.mxu0 0
    %2354 = vmatprep.subr.bf16.mxu0 0
    %2355 = vmatpush1.bf16.msra.mxu0 0
    %2356 = vmatprep.subr.bf16.mxu0 0
    %2357 = vmatpush1.bf16.msra.mxu0 0
    %2358 = vmatprep.subr.bf16.mxu0 0
    %2359 = vmatpush1.bf16.msra.mxu0 0
    %2360 = vmatprep.subr.bf16.mxu0 0
    %2361 = vmatpush1.bf16.msra.mxu0 0
    %2362 = vmatprep.subr.bf16.mxu0 0
    %2363 = vmatpush1.bf16.msra.mxu0 0
    %2364 = vmatprep.subr.bf16.mxu0 0
    %2365 = vmatpush1.bf16.msra.mxu0 %v2346
    %2366 = vmatprep.subr.bf16.mxu0 0
    %2367 = vmatpush1.bf16.msra.mxu0 %v2345
    %2368 = vmatprep.subr.bf16.mxu0 0
    %2369 = vmatpush2.bf16.msra.mxu0 0
    %2370 = vmatprep.subr.bf16.mxu0 0
    %2371 = vmatpush2.bf16.msra.mxu0 0
    %2372 = vmatprep.subr.bf16.mxu0 0
    %2373 = vmatpush2.bf16.msra.mxu0 0
    %2374 = vmatprep.subr.bf16.mxu0 0
    %2375 = vmatpush2.bf16.msra.mxu0 0
    %2376 = vmatprep.subr.bf16.mxu0 0
    %2377 = vmatpush2.bf16.msra.mxu0 0
    %2378 = vmatprep.subr.bf16.mxu0 0
    %2379 = vmatpush2.bf16.msra.mxu0 0
    %2380 = vmatprep.subr.bf16.mxu0 0
    %2381 = vmatpush2.bf16.msra.mxu0 0
    %2382 = vmatprep.subr.bf16.mxu0 0
    %2383 = vmatpush2.bf16.msra.mxu0 0
    %2384 = vmatprep.mubr.bf16.mxu0 0
    %2385 = vmatmul.mubr.bf16.gmra.mxu0 %v2350
    %v2386 = vpop.f32.mrf.mxu0
    %v2387 = vadd.f32 0.0, %v2386
    %v2388 = vpop.f32.mrf.mxu0
    %v2389 = vpop.f32.mrf.mxu0
    %v2390 = vadd.f32 0.0, %v2389
    %v2391 = vpop.f32.mrf.mxu0
    %2392 = vdwg.mxu0
    %2393 = vmatprep.subr.mxu0 0.0
    %2394 = vmatpush1.msra.mxu0 0.0
    %2395 = vmatprep.subr.mxu0 0.0
    %2396 = vmatpush1.msra.mxu0 0.0
    %2397 = vmatprep.subr.mxu0 0.0
    %2398 = vmatpush1.msra.mxu0 0.0
    %2399 = vmatprep.subr.mxu0 0.0
    %2400 = vmatpush1.msra.mxu0 0.0
    %2401 = vmatprep.subr.mxu0 0.0
    %2402 = vmatpush1.msra.mxu0 0.0
    %2403 = vmatprep.subr.mxu0 0.0
    %2404 = vmatpush1.msra.mxu0 0.0
    %2405 = vmatprep.subr.mxu0 0.0
    %2406 = vmatpush1.msra.mxu0 0.0
    %2407 = vmatprep.subr.mxu0 0.0
    %2408 = vmatpush1.msra.mxu0 0.0
    %2409 = vmatprep.subr.mxu0 0.0
    %2410 = vmatpush1.msra.mxu0 0.0
    %2411 = vmatprep.subr.mxu0 0.0
    %2412 = vmatpush1.msra.mxu0 0.0
    %2413 = vmatprep.subr.mxu0 0.0
    %2414 = vmatpush1.msra.mxu0 0.0
    %2415 = vmatprep.subr.mxu0 0.0
    %2416 = vmatpush1.msra.mxu0 0.0
    %2417 = vmatprep.subr.mxu0 0.0
    %2418 = vmatpush1.msra.mxu0 0.0
    %2419 = vmatprep.subr.mxu0 0.0
    %2420 = vmatpush1.msra.mxu0 0.0
    %2421 = vmatprep.subr.mxu0 0.0
    %2422 = vmatpush1.msra.mxu0 %v2202
    %2423 = vmatprep.subr.mxu0 0.0
    %2424 = vmatpush1.msra.mxu0 %v2199
    %2425 = vmatprep.subr.mxu0 0.0
    %2426 = vmatpush2.msra.mxu0 0.0
    %2427 = vmatprep.subr.mxu0 0.0
    %2428 = vmatpush2.msra.mxu0 0.0
    %2429 = vmatprep.subr.mxu0 0.0
    %2430 = vmatpush2.msra.mxu0 0.0
    %2431 = vmatprep.subr.mxu0 0.0
    %2432 = vmatpush2.msra.mxu0 0.0
    %2433 = vmatprep.subr.mxu0 0.0
    %2434 = vmatpush2.msra.mxu0 0.0
    %2435 = vmatprep.subr.mxu0 0.0
    %2436 = vmatpush2.msra.mxu0 0.0
    %2437 = vmatprep.subr.mxu0 0.0
    %2438 = vmatpush2.msra.mxu0 0.0
    %2439 = vmatprep.subr.mxu0 0.0
    %2440 = vmatpush2.msra.mxu0 0.0
    %2441 = vmatprep.subr.mxu0 0.0
    %2442 = vmatpush2.msra.mxu0 0.0
    %2443 = vmatprep.subr.mxu0 0.0
    %2444 = vmatpush2.msra.mxu0 0.0
    %2445 = vmatprep.subr.mxu0 0.0
    %2446 = vmatpush2.msra.mxu0 0.0
    %2447 = vmatprep.subr.mxu0 0.0
    %2448 = vmatpush2.msra.mxu0 0.0
    %2449 = vmatprep.subr.mxu0 0.0
    %2450 = vmatpush2.msra.mxu0 0.0
    %2451 = vmatprep.subr.mxu0 0.0
    %2452 = vmatpush2.msra.mxu0 0.0
    %2453 = vmatprep.subr.mxu0 0.0
    %2454 = vmatpush2.msra.mxu0 0.0
    %2455 = vmatprep.subr.mxu0 0.0
    %2456 = vmatpush2.msra.mxu0 0.0
    %2457 = vmatprep.mubr.f32.mxu0 0.0
    %2458 = vmatmul.mubr.f32.gmra.mxu0 %v481
    %v2459 = vpop.f32.mrf.mxu0
    %v2460 = vadd.f32 %v2387, %v2459
    %v2461 = vpop.f32.mrf.mxu0
    %2462 = vmatprep.mubr.f32.mxu0 0.0
    %2463 = vmatmul.mubr.f32.gmra.mxu0 %v484
    %v2464 = vpop.f32.mrf.mxu0
    %v2465 = vadd.f32 %v2390, %v2464
    %v2466 = vpop.f32.mrf.mxu0
    %2467 = vdwg.mxu0
    %v2468 = vxor.u32 %v2460, 2147483648
    %v2469 = vxor.u32 %v2465, 2147483648
    %v2470 = vmul.f32 %v2468, 1.442695
    %v2471 = vpow.pop %v2470
    %v2472 = vmul.f32 %v2469, 1.442695
    %v2473 = vpow.pop %v2472
    %v2474 = vadd.f32 %v2471, 1.0
    %v2475 = vadd.f32 %v2473, 1.0
    %v2476 = vrcp.pop %v2474
    %v2477 = vmul.f32 1.0, %v2476
    %v2478 = vrcp.pop %v2475
    %v2479 = vmul.f32 1.0, %v2478
    %v2480 = vtanh.pop %v2460
    %v2481 = vtanh.pop %v2465
    %v2482 = vmul.f32 %v2477, %v2314
    %v2483 = vmul.f32 %v2479, %v2315
    %2486 = vrot.lane.b32.xlu0 %v2480, 64
    %v2487 = vpop.permute.xlu0 %2486
    %2488 = vrot.lane.b32.xlu0 %v2481, 64
    %v2489 = vpop.permute.xlu0 %2488
    %v2492 = vmul.f32 %v2477, %v2487
    %v2493 = vmul.f32 %v2479, %v2489
    %2496 = vrot.lane.b32.xlu0 %v2492, 32
    %v2497 = vpop.permute.xlu0 %2496
    %2498 = vrot.lane.b32.xlu0 %v2493, 32
    %v2499 = vpop.permute.xlu0 %2498
    %v2502 = vadd.f32 %v2482, %v2497
    %v2503 = vadd.f32 %v2483, %v2499
    %v2504 = vtanh.pop %v2502
    %v2505 = vtanh.pop %v2503
    %2508 = vrot.lane.b32.xlu0 %v2504, 64
    %v2509 = vpop.permute.xlu0 %2508
    %2510 = vrot.lane.b32.xlu0 %v2505, 64
    %v2511 = vpop.permute.xlu0 %2510
    %v2514 = vmul.f32 %v2477, %v2509
    %v2515 = vmul.f32 %v2479, %v2511
    %v2516 = vpack.c.bf16 %v2515, %v2514
    %2518 = vrot.lane.b32.xlu0 %v2516, 32
    %v2519 = vpop.permute.xlu0 %2518
    %v2521 = vsel %vm435, %v2519, 0
    %2523 = vmatprep.subr.bf16.mxu0 0
    %2524 = vmatpush1.bf16.msra.mxu0 0
    %2525 = vmatprep.subr.bf16.mxu0 0
    %2526 = vmatpush1.bf16.msra.mxu0 0
    %2527 = vmatprep.subr.bf16.mxu0 0
    %2528 = vmatpush1.bf16.msra.mxu0 0
    %2529 = vmatprep.subr.bf16.mxu0 0
    %2530 = vmatpush1.bf16.msra.mxu0 0
    %2531 = vmatprep.subr.bf16.mxu0 0
    %2532 = vmatpush1.bf16.msra.mxu0 0
    %2533 = vmatprep.subr.bf16.mxu0 0
    %2534 = vmatpush1.bf16.msra.mxu0 0
    %2535 = vmatprep.subr.bf16.mxu0 0
    %2536 = vmatpush1.bf16.msra.mxu0 %v2346
    %2537 = vmatprep.subr.bf16.mxu0 0
    %2538 = vmatpush1.bf16.msra.mxu0 %v2345
    %2539 = vmatprep.subr.bf16.mxu0 0
    %2540 = vmatpush2.bf16.msra.mxu0 0
    %2541 = vmatprep.subr.bf16.mxu0 0
    %2542 = vmatpush2.bf16.msra.mxu0 0
    %2543 = vmatprep.subr.bf16.mxu0 0
    %2544 = vmatpush2.bf16.msra.mxu0 0
    %2545 = vmatprep.subr.bf16.mxu0 0
    %2546 = vmatpush2.bf16.msra.mxu0 0
    %2547 = vmatprep.subr.bf16.mxu0 0
    %2548 = vmatpush2.bf16.msra.mxu0 0
    %2549 = vmatprep.subr.bf16.mxu0 0
    %2550 = vmatpush2.bf16.msra.mxu0 0
    %2551 = vmatprep.subr.bf16.mxu0 0
    %2552 = vmatpush2.bf16.msra.mxu0 0
    %2553 = vmatprep.subr.bf16.mxu0 0
    %2554 = vmatpush2.bf16.msra.mxu0 0
    %2555 = vmatprep.mubr.bf16.mxu0 0
    %2556 = vmatmul.mubr.bf16.gmra.mxu0 %v2521
    %v2557 = vpop.f32.mrf.mxu0
    %v2558 = vadd.f32 0.0, %v2557
    %v2559 = vpop.f32.mrf.mxu0
    %v2560 = vpop.f32.mrf.mxu0
    %v2561 = vadd.f32 0.0, %v2560
    %v2562 = vpop.f32.mrf.mxu0
    %2563 = vdwg.mxu0
    %2564 = vmatprep.subr.mxu0 0.0
    %2565 = vmatpush1.msra.mxu0 0.0
    %2566 = vmatprep.subr.mxu0 0.0
    %2567 = vmatpush1.msra.mxu0 0.0
    %2568 = vmatprep.subr.mxu0 0.0
    %2569 = vmatpush1.msra.mxu0 0.0
    %2570 = vmatprep.subr.mxu0 0.0
    %2571 = vmatpush1.msra.mxu0 0.0
    %2572 = vmatprep.subr.mxu0 0.0
    %2573 = vmatpush1.msra.mxu0 0.0
    %2574 = vmatprep.subr.mxu0 0.0
    %2575 = vmatpush1.msra.mxu0 0.0
    %2576 = vmatprep.subr.mxu0 0.0
    %2577 = vmatpush1.msra.mxu0 0.0
    %2578 = vmatprep.subr.mxu0 0.0
    %2579 = vmatpush1.msra.mxu0 0.0
    %2580 = vmatprep.subr.mxu0 0.0
    %2581 = vmatpush1.msra.mxu0 0.0
    %2582 = vmatprep.subr.mxu0 0.0
    %2583 = vmatpush1.msra.mxu0 0.0
    %2584 = vmatprep.subr.mxu0 0.0
    %2585 = vmatpush1.msra.mxu0 0.0
    %2586 = vmatprep.subr.mxu0 0.0
    %2587 = vmatpush1.msra.mxu0 0.0
    %2588 = vmatprep.subr.mxu0 0.0
    %2589 = vmatpush1.msra.mxu0 0.0
    %2590 = vmatprep.subr.mxu0 0.0
    %2591 = vmatpush1.msra.mxu0 0.0
    %2592 = vmatprep.subr.mxu0 0.0
    %2593 = vmatpush1.msra.mxu0 %v2202
    %2594 = vmatprep.subr.mxu0 0.0
    %2595 = vmatpush1.msra.mxu0 %v2199
    %2596 = vmatprep.subr.mxu0 0.0
    %2597 = vmatpush2.msra.mxu0 0.0
    %2598 = vmatprep.subr.mxu0 0.0
    %2599 = vmatpush2.msra.mxu0 0.0
    %2600 = vmatprep.subr.mxu0 0.0
    %2601 = vmatpush2.msra.mxu0 0.0
    %2602 = vmatprep.subr.mxu0 0.0
    %2603 = vmatpush2.msra.mxu0 0.0
    %2604 = vmatprep.subr.mxu0 0.0
    %2605 = vmatpush2.msra.mxu0 0.0
    %2606 = vmatprep.subr.mxu0 0.0
    %2607 = vmatpush2.msra.mxu0 0.0
    %2608 = vmatprep.subr.mxu0 0.0
    %2609 = vmatpush2.msra.mxu0 0.0
    %2610 = vmatprep.subr.mxu0 0.0
    %2611 = vmatpush2.msra.mxu0 0.0
    %2612 = vmatprep.subr.mxu0 0.0
    %2613 = vmatpush2.msra.mxu0 0.0
    %2614 = vmatprep.subr.mxu0 0.0
    %2615 = vmatpush2.msra.mxu0 0.0
    %2616 = vmatprep.subr.mxu0 0.0
    %2617 = vmatpush2.msra.mxu0 0.0
    %2618 = vmatprep.subr.mxu0 0.0
    %2619 = vmatpush2.msra.mxu0 0.0
    %2620 = vmatprep.subr.mxu0 0.0
    %2621 = vmatpush2.msra.mxu0 0.0
    %2622 = vmatprep.subr.mxu0 0.0
    %2623 = vmatpush2.msra.mxu0 0.0
    %2624 = vmatprep.subr.mxu0 0.0
    %2625 = vmatpush2.msra.mxu0 0.0
    %2626 = vmatprep.subr.mxu0 0.0
    %2627 = vmatpush2.msra.mxu0 0.0
    %2628 = vmatprep.mubr.f32.mxu0 0.0
    %2629 = vmatmul.mubr.f32.gmra.mxu0 %v658
    %v2630 = vpop.f32.mrf.mxu0
    %v2631 = vadd.f32 %v2558, %v2630
    %v2632 = vpop.f32.mrf.mxu0
    %2633 = vmatprep.mubr.f32.mxu0 0.0
    %2634 = vmatmul.mubr.f32.gmra.mxu0 %v661
    %v2635 = vpop.f32.mrf.mxu0
    %v2636 = vadd.f32 %v2561, %v2635
    %v2637 = vpop.f32.mrf.mxu0
    %2638 = vdwg.mxu0
    %v2639 = vxor.u32 %v2631, 2147483648
    %v2640 = vxor.u32 %v2636, 2147483648
    %v2641 = vmul.f32 %v2639, 1.442695
    %v2642 = vpow.pop %v2641
    %v2643 = vmul.f32 %v2640, 1.442695
    %v2644 = vpow.pop %v2643
    %v2645 = vadd.f32 %v2642, 1.0
    %v2646 = vadd.f32 %v2644, 1.0
    %v2647 = vrcp.pop %v2645
    %v2648 = vmul.f32 1.0, %v2647
    %v2649 = vrcp.pop %v2646
    %v2650 = vmul.f32 1.0, %v2649
    %v2651 = vtanh.pop %v2631
    %v2652 = vtanh.pop %v2636
    %v2653 = vmul.f32 %v2648, %v2502
    %v2654 = vmul.f32 %v2650, %v2503
    %2657 = vrot.lane.b32.xlu0 %v2651, 64
    %v2658 = vpop.permute.xlu0 %2657
    %2659 = vrot.lane.b32.xlu0 %v2652, 64
    %v2660 = vpop.permute.xlu0 %2659
    %v2663 = vmul.f32 %v2648, %v2658
    %v2664 = vmul.f32 %v2650, %v2660
    %2667 = vrot.lane.b32.xlu0 %v2663, 32
    %v2668 = vpop.permute.xlu0 %2667
    %2669 = vrot.lane.b32.xlu0 %v2664, 32
    %v2670 = vpop.permute.xlu0 %2669
    %v2673 = vadd.f32 %v2653, %v2668
    %v2674 = vadd.f32 %v2654, %v2670
    %v2675 = vtanh.pop %v2673
    %v2676 = vtanh.pop %v2674
    %2679 = vrot.lane.b32.xlu0 %v2675, 64
    %v2680 = vpop.permute.xlu0 %2679
    %2681 = vrot.lane.b32.xlu0 %v2676, 64
    %v2682 = vpop.permute.xlu0 %2681
    %v2685 = vmul.f32 %v2648, %v2680
    %v2686 = vmul.f32 %v2650, %v2682
    %v2687 = vpack.c.bf16 %v2686, %v2685
    %2689 = vrot.lane.b32.xlu0 %v2687, 32
    %v2690 = vpop.permute.xlu0 %2689
    %v2692 = vsel %vm435, %v2690, 0
    %2694 = vmatprep.subr.bf16.mxu0 0
    %2695 = vmatpush1.bf16.msra.mxu0 0
    %2696 = vmatprep.subr.bf16.mxu0 0
    %2697 = vmatpush1.bf16.msra.mxu0 0
    %2698 = vmatprep.subr.bf16.mxu0 0
    %2699 = vmatpush1.bf16.msra.mxu0 0
    %2700 = vmatprep.subr.bf16.mxu0 0
    %2701 = vmatpush1.bf16.msra.mxu0 0
    %2702 = vmatprep.subr.bf16.mxu0 0
    %2703 = vmatpush1.bf16.msra.mxu0 0
    %2704 = vmatprep.subr.bf16.mxu0 0
    %2705 = vmatpush1.bf16.msra.mxu0 0
    %2706 = vmatprep.subr.bf16.mxu0 0
    %2707 = vmatpush1.bf16.msra.mxu0 %v2346
    %2708 = vmatprep.subr.bf16.mxu0 0
    %2709 = vmatpush1.bf16.msra.mxu0 %v2345
    %2710 = vmatprep.subr.bf16.mxu0 0
    %2711 = vmatpush2.bf16.msra.mxu0 0
    %2712 = vmatprep.subr.bf16.mxu0 0
    %2713 = vmatpush2.bf16.msra.mxu0 0
    %2714 = vmatprep.subr.bf16.mxu0 0
    %2715 = vmatpush2.bf16.msra.mxu0 0
    %2716 = vmatprep.subr.bf16.mxu0 0
    %2717 = vmatpush2.bf16.msra.mxu0 0
    %2718 = vmatprep.subr.bf16.mxu0 0
    %2719 = vmatpush2.bf16.msra.mxu0 0
    %2720 = vmatprep.subr.bf16.mxu0 0
    %2721 = vmatpush2.bf16.msra.mxu0 0
    %2722 = vmatprep.subr.bf16.mxu0 0
    %2723 = vmatpush2.bf16.msra.mxu0 0
    %2724 = vmatprep.subr.bf16.mxu0 0
    %2725 = vmatpush2.bf16.msra.mxu0 0
    %2726 = vmatprep.mubr.bf16.mxu0 0
    %2727 = vmatmul.mubr.bf16.gmra.mxu0 %v2692
    %v2728 = vpop.f32.mrf.mxu0
    %v2729 = vadd.f32 0.0, %v2728
    %v2730 = vpop.f32.mrf.mxu0
    %v2731 = vpop.f32.mrf.mxu0
    %v2732 = vadd.f32 0.0, %v2731
    %v2733 = vpop.f32.mrf.mxu0
    %2734 = vdwg.mxu0
    %2735 = vmatprep.subr.mxu0 0.0
    %2736 = vmatpush1.msra.mxu0 0.0
    %2737 = vmatprep.subr.mxu0 0.0
    %2738 = vmatpush1.msra.mxu0 0.0
    %2739 = vmatprep.subr.mxu0 0.0
    %2740 = vmatpush1.msra.mxu0 0.0
    %2741 = vmatprep.subr.mxu0 0.0
    %2742 = vmatpush1.msra.mxu0 0.0
    %2743 = vmatprep.subr.mxu0 0.0
    %2744 = vmatpush1.msra.mxu0 0.0
    %2745 = vmatprep.subr.mxu0 0.0
    %2746 = vmatpush1.msra.mxu0 0.0
    %2747 = vmatprep.subr.mxu0 0.0
    %2748 = vmatpush1.msra.mxu0 0.0
    %2749 = vmatprep.subr.mxu0 0.0
    %2750 = vmatpush1.msra.mxu0 0.0
    %2751 = vmatprep.subr.mxu0 0.0
    %2752 = vmatpush1.msra.mxu0 0.0
    %2753 = vmatprep.subr.mxu0 0.0
    %2754 = vmatpush1.msra.mxu0 0.0
    %2755 = vmatprep.subr.mxu0 0.0
    %2756 = vmatpush1.msra.mxu0 0.0
    %2757 = vmatprep.subr.mxu0 0.0
    %2758 = vmatpush1.msra.mxu0 0.0
    %2759 = vmatprep.subr.mxu0 0.0
    %2760 = vmatpush1.msra.mxu0 0.0
    %2761 = vmatprep.subr.mxu0 0.0
    %2762 = vmatpush1.msra.mxu0 0.0
    %2763 = vmatprep.subr.mxu0 0.0
    %2764 = vmatpush1.msra.mxu0 %v2202
    %2765 = vmatprep.subr.mxu0 0.0
    %2766 = vmatpush1.msra.mxu0 %v2199
    %2767 = vmatprep.subr.mxu0 0.0
    %2768 = vmatpush2.msra.mxu0 0.0
    %2769 = vmatprep.subr.mxu0 0.0
    %2770 = vmatpush2.msra.mxu0 0.0
    %2771 = vmatprep.subr.mxu0 0.0
    %2772 = vmatpush2.msra.mxu0 0.0
    %2773 = vmatprep.subr.mxu0 0.0
    %2774 = vmatpush2.msra.mxu0 0.0
    %2775 = vmatprep.subr.mxu0 0.0
    %2776 = vmatpush2.msra.mxu0 0.0
    %2777 = vmatprep.subr.mxu0 0.0
    %2778 = vmatpush2.msra.mxu0 0.0
    %2779 = vmatprep.subr.mxu0 0.0
    %2780 = vmatpush2.msra.mxu0 0.0
    %2781 = vmatprep.subr.mxu0 0.0
    %2782 = vmatpush2.msra.mxu0 0.0
    %2783 = vmatprep.subr.mxu0 0.0
    %2784 = vmatpush2.msra.mxu0 0.0
    %2785 = vmatprep.subr.mxu0 0.0
    %2786 = vmatpush2.msra.mxu0 0.0
    %2787 = vmatprep.subr.mxu0 0.0
    %2788 = vmatpush2.msra.mxu0 0.0
    %2789 = vmatprep.subr.mxu0 0.0
    %2790 = vmatpush2.msra.mxu0 0.0
    %2791 = vmatprep.subr.mxu0 0.0
    %2792 = vmatpush2.msra.mxu0 0.0
    %2793 = vmatprep.subr.mxu0 0.0
    %2794 = vmatpush2.msra.mxu0 0.0
    %2795 = vmatprep.subr.mxu0 0.0
    %2796 = vmatpush2.msra.mxu0 0.0
    %2797 = vmatprep.subr.mxu0 0.0
    %2798 = vmatpush2.msra.mxu0 0.0
    %2799 = vmatprep.mubr.f32.mxu0 0.0
    %2800 = vmatmul.mubr.f32.gmra.mxu0 %v835
    %v2801 = vpop.f32.mrf.mxu0
    %v2802 = vadd.f32 %v2729, %v2801
    %v2803 = vpop.f32.mrf.mxu0
    %2804 = vmatprep.mubr.f32.mxu0 0.0
    %2805 = vmatmul.mubr.f32.gmra.mxu0 %v838
    %v2806 = vpop.f32.mrf.mxu0
    %v2807 = vadd.f32 %v2732, %v2806
    %v2808 = vpop.f32.mrf.mxu0
    %2809 = vdwg.mxu0
    %v2810 = vxor.u32 %v2802, 2147483648
    %v2811 = vxor.u32 %v2807, 2147483648
    %v2812 = vmul.f32 %v2810, 1.442695
    %v2813 = vpow.pop %v2812
    %v2814 = vmul.f32 %v2811, 1.442695
    %v2815 = vpow.pop %v2814
    %v2816 = vadd.f32 %v2813, 1.0
    %v2817 = vadd.f32 %v2815, 1.0
    %v2818 = vrcp.pop %v2816
    %v2819 = vmul.f32 1.0, %v2818
    %v2820 = vrcp.pop %v2817
    %v2821 = vmul.f32 1.0, %v2820
    %v2822 = vtanh.pop %v2802
    %v2823 = vtanh.pop %v2807
    %v2824 = vmul.f32 %v2819, %v2673
    %v2825 = vmul.f32 %v2821, %v2674
    %2828 = vrot.lane.b32.xlu0 %v2822, 64
    %v2829 = vpop.permute.xlu0 %2828
    %2830 = vrot.lane.b32.xlu0 %v2823, 64
    %v2831 = vpop.permute.xlu0 %2830
    %v2834 = vmul.f32 %v2819, %v2829
    %v2835 = vmul.f32 %v2821, %v2831
    %2838 = vrot.lane.b32.xlu0 %v2834, 32
    %v2839 = vpop.permute.xlu0 %2838
    %2840 = vrot.lane.b32.xlu0 %v2835, 32
    %v2841 = vpop.permute.xlu0 %2840
    %v2844 = vadd.f32 %v2824, %v2839
    %v2845 = vadd.f32 %v2825, %v2841
    %v2846 = vtanh.pop %v2844
    %v2847 = vtanh.pop %v2845
    %2850 = vrot.lane.b32.xlu0 %v2846, 64
    %v2851 = vpop.permute.xlu0 %2850
    %2852 = vrot.lane.b32.xlu0 %v2847, 64
    %v2853 = vpop.permute.xlu0 %2852
    %v2856 = vmul.f32 %v2819, %v2851
    %v2857 = vmul.f32 %v2821, %v2853
    %s2858 = scalar_lea.vmem [#allocation4], 128
    %v2859 = vld [vmem:[%s2858] sm:$0xf]
    %v2860 = vld [vmem:[%s2858 + $0x4] sm:$0xf]
    %v2861 = vld [vmem:[%s2858 + $0x8] sm:$0xf]
    %v2862 = vld [vmem:[%s2858 + $0xc] sm:$0xf]
    %v2863 = vld [vmem:[%s2858 + $0x10] sm:$0xf]
    %v2864 = vld [vmem:[%s2858 + $0x14] sm:$0xf]
    %v2865 = vld [vmem:[%s2858 + $0x18] sm:$0xf]
    %v2866 = vld [vmem:[%s2858 + $0x1c] sm:$0xf]
    %v2867 = vld [vmem:[%s2858 + $0x20] sm:$0xf]
    %v2868 = vld [vmem:[%s2858 + $0x24] sm:$0xf]
    %v2869 = vld [vmem:[%s2858 + $0x28] sm:$0xf]
    %v2870 = vld [vmem:[%s2858 + $0x2c] sm:$0xf]
    %v2871 = vld [vmem:[%s2858 + $0x30] sm:$0xf]
    %v2872 = vld [vmem:[%s2858 + $0x34] sm:$0xf]
    %v2873 = vld [vmem:[%s2858 + $0x38] sm:$0xf]
    %v2874 = vld [vmem:[%s2858 + $0x3c] sm:$0xf]
    %v2875 = vpack.c.bf16 %v2857, %v2856
    %s2876 = scalar_lea.vmem [#allocation6], 32
    %v2877 = vld [vmem:[%s2876] sm:$0xf]
    %v2878 = vld [vmem:[%s2876 + $0x4] sm:$0xf]
    %v2879 = vld [vmem:[%s2876 + $0x8] sm:$0xf]
    %v2880 = vld [vmem:[%s2876 + $0xc] sm:$0xf]
    %2882 = vrot.lane.b32.xlu0 %v2875, 32
    %v2883 = vpop.permute.xlu0 %2882
    %v2888 = vunpack.c.l.b16 %v2877
    %v2889 = vunpack.c.l.b16 %v2878
    %v2890 = vunpack.c.l.b16 %v2879
    %v2891 = vunpack.c.l.b16 %v2880
    %v2892 = vpack.c.b16 %v2889, %v2888
    %v2893 = vpack.c.b16 %v2891, %v2890
    %v2897 = vsel %vm435, %v2883, 0
    %2899 = vmatprep.subr.bf16.mxu0 0
    %2900 = vmatpush1.bf16.msra.mxu0 0
    %2901 = vmatprep.subr.bf16.mxu0 0
    %2902 = vmatpush1.bf16.msra.mxu0 0
    %2903 = vmatprep.subr.bf16.mxu0 0
    %2904 = vmatpush1.bf16.msra.mxu0 0
    %2905 = vmatprep.subr.bf16.mxu0 0
    %2906 = vmatpush1.bf16.msra.mxu0 0
    %2907 = vmatprep.subr.bf16.mxu0 0
    %2908 = vmatpush1.bf16.msra.mxu0 0
    %2909 = vmatprep.subr.bf16.mxu0 0
    %2910 = vmatpush1.bf16.msra.mxu0 0
    %2911 = vmatprep.subr.bf16.mxu0 0
    %2912 = vmatpush1.bf16.msra.mxu0 %v2893
    %2913 = vmatprep.subr.bf16.mxu0 0
    %2914 = vmatpush1.bf16.msra.mxu0 %v2892
    %2915 = vmatprep.subr.bf16.mxu0 0
    %2916 = vmatpush2.bf16.msra.mxu0 0
    %2917 = vmatprep.subr.bf16.mxu0 0
    %2918 = vmatpush2.bf16.msra.mxu0 0
    %2919 = vmatprep.subr.bf16.mxu0 0
    %2920 = vmatpush2.bf16.msra.mxu0 0
    %2921 = vmatprep.subr.bf16.mxu0 0
    %2922 = vmatpush2.bf16.msra.mxu0 0
    %2923 = vmatprep.subr.bf16.mxu0 0
    %2924 = vmatpush2.bf16.msra.mxu0 0
    %2925 = vmatprep.subr.bf16.mxu0 0
    %2926 = vmatpush2.bf16.msra.mxu0 0
    %2927 = vmatprep.subr.bf16.mxu0 0
    %2928 = vmatpush2.bf16.msra.mxu0 0
    %2929 = vmatprep.subr.bf16.mxu0 0
    %2930 = vmatpush2.bf16.msra.mxu0 0
    %2931 = vmatprep.mubr.bf16.mxu0 0
    %2932 = vmatmul.mubr.bf16.gmra.mxu0 %v2897
    %v2933 = vpop.f32.mrf.mxu0
    %v2934 = vadd.f32 0.0, %v2933
    %v2935 = vpop.f32.mrf.mxu0
    %v2936 = vpop.f32.mrf.mxu0
    %v2937 = vadd.f32 0.0, %v2936
    %v2938 = vpop.f32.mrf.mxu0
    %2939 = vdwg.mxu0
    %v2956 = vunpack.c.l.b16 %v2859
    %v2957 = vunpack.c.l.b16 %v2860
    %v2958 = vunpack.c.l.b16 %v2861
    %v2959 = vunpack.c.l.b16 %v2862
    %v2960 = vunpack.c.l.b16 %v2863
    %v2961 = vunpack.c.l.b16 %v2864
    %v2962 = vunpack.c.l.b16 %v2865
    %v2963 = vunpack.c.l.b16 %v2866
    %v2964 = vunpack.c.l.b16 %v2867
    %v2965 = vunpack.c.l.b16 %v2868
    %v2966 = vunpack.c.l.b16 %v2869
    %v2967 = vunpack.c.l.b16 %v2870
    %v2968 = vunpack.c.l.b16 %v2871
    %v2969 = vunpack.c.l.b16 %v2872
    %v2970 = vunpack.c.l.b16 %v2873
    %v2971 = vunpack.c.l.b16 %v2874
    %v2972 = vpack.c.b16 %v2957, %v2956
    %v2973 = vpack.c.b16 %v2959, %v2958
    %v2974 = vpack.c.b16 %v2961, %v2960
    %v2975 = vpack.c.b16 %v2963, %v2962
    %v2976 = vpack.c.b16 %v2965, %v2964
    %v2977 = vpack.c.b16 %v2967, %v2966
    %v2978 = vpack.c.b16 %v2969, %v2968
    %v2979 = vpack.c.b16 %v2971, %v2970
    %2988 = vmatprep.subr.bf16.mxu0 0
    %2989 = vmatpush1.bf16.msra.mxu0 %v2979
    %2990 = vmatprep.subr.bf16.mxu0 0
    %2991 = vmatpush1.bf16.msra.mxu0 %v2978
    %2992 = vmatprep.subr.bf16.mxu0 0
    %2993 = vmatpush1.bf16.msra.mxu0 %v2977
    %2994 = vmatprep.subr.bf16.mxu0 0
    %2995 = vmatpush1.bf16.msra.mxu0 %v2976
    %2996 = vmatprep.subr.bf16.mxu0 0
    %2997 = vmatpush1.bf16.msra.mxu0 %v2975
    %2998 = vmatprep.subr.bf16.mxu0 0
    %2999 = vmatpush1.bf16.msra.mxu0 %v2974
    %3000 = vmatprep.subr.bf16.mxu0 0
    %3001 = vmatpush1.bf16.msra.mxu0 %v2973
    %3002 = vmatprep.subr.bf16.mxu0 0
    %3003 = vmatpush1.bf16.msra.mxu0 %v2972
    %3004 = vmatprep.subr.bf16.mxu0 0
    %3005 = vmatpush2.bf16.msra.mxu0 0
    %3006 = vmatprep.subr.bf16.mxu0 0
    %3007 = vmatpush2.bf16.msra.mxu0 0
    %3008 = vmatprep.subr.bf16.mxu0 0
    %3009 = vmatpush2.bf16.msra.mxu0 0
    %3010 = vmatprep.subr.bf16.mxu0 0
    %3011 = vmatpush2.bf16.msra.mxu0 0
    %3012 = vmatprep.subr.bf16.mxu0 0
    %3013 = vmatpush2.bf16.msra.mxu0 0
    %3014 = vmatprep.subr.bf16.mxu0 0
    %3015 = vmatpush2.bf16.msra.mxu0 0
    %3016 = vmatprep.subr.bf16.mxu0 0
    %3017 = vmatpush2.bf16.msra.mxu0 0
    %3018 = vmatprep.subr.bf16.mxu0 0
    %3019 = vmatpush2.bf16.msra.mxu0 0
    %3020 = vmatprep.mubr.bf16.mxu0 0
    %3021 = vmatmul.mubr.bf16.gmra.mxu0 %v2090
    %v3022 = vpop.f32.mrf.mxu0
    %v3023 = vadd.f32 %v2934, %v3022
    %v3024 = vpop.f32.mrf.mxu0
    %v3025 = vpop.f32.mrf.mxu0
    %v3026 = vadd.f32 %v2937, %v3025
    %v3027 = vpop.f32.mrf.mxu0
    %3028 = vdwg.mxu0
    %s3029 = scalar_lea.vmem [#allocation7], 2
    %v3030 = vld [vmem:[%s3029] sm:$0x1]
    %v3032 = vlaneseq
    %v3033 = vshrl.u32 %v3032, 7
    %v3034 = vsub.s32 0, %v3033
    %v3035 = vrot.slane %v3030, %v3034
    %v3037 = vadd.f32 %v3023, %v3035
    %v3038 = vadd.f32 %v3026, %v3035
    %v3039 = vpack.c.bf16 %v3038, %v3037
    %v3040 = vld [vmem:[#allocation9] sm:$0xf]
    %v3041 = vld [vmem:[#allocation9 + $0x4] sm:$0xf]
    %v3042 = vld [vmem:[#allocation9 + $0x8] sm:$0xf]
    %v3043 = vld [vmem:[#allocation9 + $0xc] sm:$0xf]
    %v3044 = vld [vmem:[#allocation9 + $0x10] sm:$0xf]
    %v3045 = vld [vmem:[#allocation9 + $0x14] sm:$0xf]
    %v3046 = vld [vmem:[#allocation9 + $0x18] sm:$0xf]
    %v3047 = vld [vmem:[#allocation9 + $0x1c] sm:$0xf]
    %v3048 = vld [vmem:[#allocation9 + $0x20] sm:$0xf]
    %v3049 = vld [vmem:[#allocation9 + $0x24] sm:$0xf]
    %v3050 = vld [vmem:[#allocation9 + $0x28] sm:$0xf]
    %v3051 = vld [vmem:[#allocation9 + $0x2c] sm:$0xf]
    %v3052 = vld [vmem:[#allocation9 + $0x30] sm:$0xf]
    %v3053 = vld [vmem:[#allocation9 + $0x34] sm:$0xf]
    %v3054 = vld [vmem:[#allocation9 + $0x38] sm:$0xf]
    %v3055 = vld [vmem:[#allocation9 + $0x3c] sm:$0xf]
    %v3056 = vld [vmem:[%s9] sm:$0x1]
    %v3058 = vlaneseq
    %v3059 = vshrl.u32 %v3058, 7
    %v3060 = vsub.s32 0, %v3059
    %v3061 = vrot.slane %v3056, %v3060
    %v3079 = vunpack.c.l.b16 %v3040
    %v3080 = vunpack.c.l.b16 %v3041
    %v3081 = vunpack.c.l.b16 %v3042
    %v3082 = vunpack.c.l.b16 %v3043
    %v3083 = vunpack.c.l.b16 %v3044
    %v3084 = vunpack.c.l.b16 %v3045
    %v3085 = vunpack.c.l.b16 %v3046
    %v3086 = vunpack.c.l.b16 %v3047
    %v3087 = vunpack.c.l.b16 %v3048
    %v3088 = vunpack.c.l.b16 %v3049
    %v3089 = vunpack.c.l.b16 %v3050
    %v3090 = vunpack.c.l.b16 %v3051
    %v3091 = vunpack.c.l.b16 %v3052
    %v3092 = vunpack.c.l.b16 %v3053
    %v3093 = vunpack.c.l.b16 %v3054
    %v3094 = vunpack.c.l.b16 %v3055
    %v3095 = vpack.c.b16 %v3080, %v3079
    %v3096 = vpack.c.b16 %v3082, %v3081
    %v3097 = vpack.c.b16 %v3084, %v3083
    %v3098 = vpack.c.b16 %v3086, %v3085
    %v3099 = vpack.c.b16 %v3088, %v3087
    %v3100 = vpack.c.b16 %v3090, %v3089
    %v3101 = vpack.c.b16 %v3092, %v3091
    %v3102 = vpack.c.b16 %v3094, %v3093
    %3111 = vmatprep.subr.bf16.mxu0 0
    %3112 = vmatpush1.bf16.msra.mxu0 %v3102
    %3113 = vmatprep.subr.bf16.mxu0 0
    %3114 = vmatpush1.bf16.msra.mxu0 %v3101
    %3115 = vmatprep.subr.bf16.mxu0 0
    %3116 = vmatpush1.bf16.msra.mxu0 %v3100
    %3117 = vmatprep.subr.bf16.mxu0 0
    %3118 = vmatpush1.bf16.msra.mxu0 %v3099
    %3119 = vmatprep.subr.bf16.mxu0 0
    %3120 = vmatpush1.bf16.msra.mxu0 %v3098
    %3121 = vmatprep.subr.bf16.mxu0 0
    %3122 = vmatpush1.bf16.msra.mxu0 %v3097
    %3123 = vmatprep.subr.bf16.mxu0 0
    %3124 = vmatpush1.bf16.msra.mxu0 %v3096
    %3125 = vmatprep.subr.bf16.mxu0 0
    %3126 = vmatpush1.bf16.msra.mxu0 %v3095
    %3127 = vmatprep.subr.bf16.mxu0 0
    %3128 = vmatpush2.bf16.msra.mxu0 0
    %3129 = vmatprep.subr.bf16.mxu0 0
    %3130 = vmatpush2.bf16.msra.mxu0 0
    %3131 = vmatprep.subr.bf16.mxu0 0
    %3132 = vmatpush2.bf16.msra.mxu0 0
    %3133 = vmatprep.subr.bf16.mxu0 0
    %3134 = vmatpush2.bf16.msra.mxu0 0
    %3135 = vmatprep.subr.bf16.mxu0 0
    %3136 = vmatpush2.bf16.msra.mxu0 0
    %3137 = vmatprep.subr.bf16.mxu0 0
    %3138 = vmatpush2.bf16.msra.mxu0 0
    %3139 = vmatprep.subr.bf16.mxu0 0
    %3140 = vmatpush2.bf16.msra.mxu0 0
    %3141 = vmatprep.subr.bf16.mxu0 0
    %3142 = vmatpush2.bf16.msra.mxu0 0
    %3143 = vmatprep.mubr.bf16.mxu0 0
    %3144 = vmatmul.mubr.bf16.gmra.mxu0 %v3039
    %v3145 = vpop.f32.mrf.mxu0
    %v3146 = vadd.f32 %v3061, %v3145
    %v3147 = vpop.f32.mrf.mxu0
    %v3148 = vpop.f32.mrf.mxu0
    %v3149 = vadd.f32 %v3061, %v3148
    %v3150 = vpop.f32.mrf.mxu0
    %3151 = vdwg.mxu0
    %3152 = vst [vmem:[%s10] sm:$0xff] %v3146
    %3153 = vst [vmem:[%s10 + $0x8] sm:$0xff] %v3149
    // Predicated region
    $region62: #{net_forward.1} parent=1 // pred_check
      _
    $region63: #{net_forward.1} parent=1 // pred_check_branch
      %3155 = sbr.rel (0) target = $region65
    $region64: #{net_forward.1} parent=1 // pred_region
      _
    $region65: #{net_forward.1} parent=1 // pred_fallthru
      _
    // Predicated region
    $region66: #{net_forward.1} parent=1 // pred_check
      _
    $region67: #{net_forward.1} parent=1 // pred_check_branch
      %3157 = sbr.rel (0) target = $region69
    $region68: #{net_forward.1} parent=1 // pred_region
      _
    $region69: #{net_forward.1} parent=1 // pred_fallthru
      _
    %3158 = vsyncpa [#allocation3], 1
    %3159 = vsyncpa [#allocation5], 1
    %3160 = vsyncpa [#allocation8], 1

</llo_original>
